<compile_context>
chip_gen: v7x
topology: tpu7x:2x2x1
jax: 0.10.0
libtpu: 0.0.40
codegen_flags: <defaults>
</compile_context>

<pallas_src>
import math
import functools

import jax
import jax.numpy as jnp
from jax import lax
from jax.experimental import pallas as pl
from jax.experimental.pallas import tpu as pltpu


_VMEM_LIMIT = 32 * 1024 * 1024   # >= default on v6e/v7x, raises v5e's 16 MiB default


def _compiler_params(dims):
    return pltpu.CompilerParams(dimension_semantics=dims,
                                vmem_limit_bytes=_VMEM_LIMIT)


# ----------------------------- tiling helpers -----------------------------

def _pick_tile(dim, pref, align):
    """Largest tile <= pref that divides dim and is `align`-aligned; else full dim.

    TODO(synk): for pathological dims (> pref with no aligned divisor) this falls
    back to the full dim; a pad-to-multiple + pl.cdiv grid + edge masking path would
    bound VMEM in that case too."""
    if dim <= pref:
        return dim
    t = pref
    while t >= align:
        if dim % t == 0:
            return t
        t -= align
    return dim


def _pick_head_group(num_heads, tq, tkv, budget_bytes=4 << 20):
    """Heads per attention grid step: as many as keep the f32 scores+probs within
    `budget_bytes` (amortizes per-grid-step overhead without blowing VMEM)."""
    per_head = 2 * tq * tkv * 4
    hg = max(1, min(num_heads, budget_bytes // max(per_head, 1)))
    while num_heads % hg:
        hg -= 1
    return hg


# ----------------------------- Pallas kernels -----------------------------

def _layernorm(x, g, b):
    mean = jnp.mean(x, axis=-1, keepdims=True)
    var = jnp.mean(jnp.square(x - mean), axis=-1, keepdims=True)   # biased, as torch
    return (x - mean) * lax.rsqrt(var + 1e-5) * g + b


def _ln_kernel(x_ref, g_ref, b_ref, o_ref):
    # Standalone LayerNorm (only used for layer 0's LN1, which has no preceding
    # matmul whose epilogue could host it).  Output bf16 = next matmul's operand.
    o_ref[...] = _layernorm(x_ref[...], g_ref[...], b_ref[...]).astype(o_ref.dtype)


def _qkv_kernel(x_ref, wq_ref, bq_ref, wk_ref, bk_ref, wv_ref, bv_ref,
                q_ref, k_ref, v_ref):
    # Fused Q/K/V projection: xn read once, three N-tiled bf16 matmuls, f32 accumulate.
    x = x_ref[...]
    q_ref[...] = (jnp.dot(x, wq_ref[...], preferred_element_type=jnp.float32)
                  + bq_ref[...]).astype(q_ref.dtype)
    k_ref[...] = (jnp.dot(x, wk_ref[...], preferred_element_type=jnp.float32)
                  + bk_ref[...]).astype(k_ref.dtype)
    v_ref[...] = (jnp.dot(x, wv_ref[...], preferred_element_type=jnp.float32)
                  + bv_ref[...]).astype(v_ref.dtype)


def _flash_attn_kernel(mask_ref, q_ref, k_ref, v_ref, o_ref, m_sc, l_sc, acc_sc):
    # Online-softmax attention over kv tiles.  One (batch, head-group, q-tile) cell
    # is accumulated across the innermost kv grid axis in f32 VMEM scratch.
    ki = pl.program_id(3)

    @pl.when(ki == 0)
    def _():
        m_sc[...] = jnp.full_like(m_sc, -jnp.inf)
        l_sc[...] = jnp.zeros_like(l_sc)
        acc_sc[...] = jnp.zeros_like(acc_sc)

    q = q_ref[0]                         # (hg, tq, dk)  bf16
    k = k_ref[0]                         # (hg, tkv, dk) bf16
    v = v_ref[0]                         # (hg, tkv, dk) bf16
    scale = 1.0 / math.sqrt(q_ref.shape[-1])

    # scores: contract dk, batch over heads (bf16 MXU, f32 accumulate)
    s = lax.dot_general(q, k, (((2,), (2,)), ((0,), (0,))),
                        preferred_element_type=jnp.float32) * scale   # (hg, tq, tkv)
    kmask = mask_ref[0]                  # (1, tkv) int32 key-padding mask (1=keep)
    s = jnp.where(kmask[:, None, :] == 0, -1e9, s)   # torch masked_fill(mask==0,-1e9)

    m_prev = m_sc[...]
    m_new = jnp.maximum(m_prev, jnp.max(s, axis=-1, keepdims=True))
    alpha = jnp.exp(m_prev - m_new)
    p = jnp.exp(s - m_new)
    l_sc[...] = alpha * l_sc[...] + jnp.sum(p, axis=-1, keepdims=True)
    pv = lax.dot_general(p.astype(v.dtype), v, (((2,), (1,)), ((0,), (0,))),
                         preferred_element_type=jnp.float32)          # (hg, tq, dk)
    acc_sc[...] = alpha * acc_sc[...] + pv
    m_sc[...] = m_new

    @pl.when(ki == pl.num_programs(3) - 1)
    def _():
        # exact reciprocal (approx=False) -> matches torch softmax numerics
        inv_l = pl.reciprocal(l_sc[...])
        o_ref[...] = (acc_sc[...] * inv_l).astype(o_ref.dtype)


def _wo_res_ln_kernel(x_ref, w_ref, b_ref, res_ref, g_ref, beta_ref, o_ref, on_ref):
    # Wo projection with the torch head-concat folded into the reduction:
    #   out = sum_h attn[h] @ Wo[h*dk:(h+1)*dk, :]  + bias + residual
    # followed by a fused LayerNorm2 epilogue (bf16 output feeds the FFN matmul).
    H = x_ref.shape[0]
    acc = jnp.zeros(o_ref.shape, dtype=jnp.float32)
    for h in range(H):                   # static unroll over heads (H <= 16)
        acc = acc + jnp.dot(x_ref[h], w_ref[h], preferred_element_type=jnp.float32)
    y = acc + b_ref[...] + res_ref[...]
    o_ref[...] = y
    on_ref[...] = _layernorm(y, g_ref[...], beta_ref[...]).astype(on_ref.dtype)


def _mm_gelu_kernel(x_ref, w_ref, b_ref, o_ref):
    # FFN first matmul + exact (erf) GELU.  bf16 operands, f32 accumulate.
    y = jnp.dot(x_ref[...], w_ref[...], preferred_element_type=jnp.float32) + b_ref[...]
    o_ref[...] = (0.5 * y * (1.0 + lax.erf(y * (1.0 / math.sqrt(2.0))))).astype(o_ref.dtype)


def _mm_res_ln_kernel(x_ref, w_ref, b_ref, res_ref, g_ref, beta_ref,
                      o_ref, on_ref, acc_ref):
    # K-tiled matmul (f32 accumulator) + bias + residual + fused LayerNorm epilogue
    # (the LN'd output is the *next* sublayer's matmul operand, in bf16).
    kk = pl.program_id(1)

    @pl.when(kk == 0)
    def _():
        acc_ref[...] = jnp.zeros_like(acc_ref)

    acc_ref[...] += jnp.dot(x_ref[...], w_ref[...], preferred_element_type=jnp.float32)

    @pl.when(kk == pl.num_programs(1) - 1)
    def _():
        y = acc_ref[...] + b_ref[...] + res_ref[...]
        o_ref[...] = y
        on_ref[...] = _layernorm(y, g_ref[...], beta_ref[...]).astype(on_ref.dtype)


# ----------------------------- kernel wrappers -----------------------------

def pallas_layernorm(x, g, b, *, tm):
    M, D = x.shape
    return pl.pallas_call(
        _ln_kernel,
        out_shape=jax.ShapeDtypeStruct((M, D), jnp.bfloat16),
        grid=(M // tm,),
        in_specs=[pl.BlockSpec((tm, D), lambda i: (i, 0)),
                  pl.BlockSpec((1, D), lambda i: (0, 0)),
                  pl.BlockSpec((1, D), lambda i: (0, 0))],
        out_specs=pl.BlockSpec((tm, D), lambda i: (i, 0)),
        compiler_params=_compiler_params(("parallel",)),
    )(x, g.reshape(1, D), b.reshape(1, D))


def pallas_qkv(xn, wq, bq, wk, bk, wv, bv, *, tm, tn):
    M, D = xn.shape
    grid = (M // tm, D // tn)
    row = pl.BlockSpec((tm, D), lambda i, j: (i, 0))
    wsp = pl.BlockSpec((D, tn), lambda i, j: (0, j))
    bsp = pl.BlockSpec((1, tn), lambda i, j: (0, j))
    osp = pl.BlockSpec((tm, tn), lambda i, j: (i, j))
    return pl.pallas_call(
        _qkv_kernel,
        out_shape=tuple(jax.ShapeDtypeStruct((M, D), jnp.bfloat16) for _ in range(3)),
        grid=grid,
        in_specs=[row, wsp, bsp, wsp, bsp, wsp, bsp],
        out_specs=(osp, osp, osp),
        compiler_params=_compiler_params(("parallel", "parallel")),
    )(xn, wq, bq.reshape(1, D), wk, bk.reshape(1, D), wv, bv.reshape(1, D))


def pallas_flash_attention(qh, kh, vh, key_mask, *, tq, tkv):
    B, H, L, dk = qh.shape
    M = B * L
    hg = _pick_head_group(H, tq, tkv)
    nq = L // tq
    grid = (B, H // hg, nq, L // tkv)
    return pl.pallas_call(
        _flash_attn_kernel,
        out_shape=jax.ShapeDtypeStruct((H, M, dk), jnp.bfloat16),
        grid=grid,
        in_specs=[
            pl.BlockSpec((1, 1, tkv), lambda b, hi, qi, ki: (b, 0, ki)),
            pl.BlockSpec((1, hg, tq, dk), lambda b, hi, qi, ki: (b, hi, qi, 0)),
            pl.BlockSpec((1, hg, tkv, dk), lambda b, hi, qi, ki: (b, hi, ki, 0)),
            pl.BlockSpec((1, hg, tkv, dk), lambda b, hi, qi, ki: (b, hi, ki, 0)),
        ],
        # heads-major (H, B*L, dk) output: consumed directly by the Wo head-fold,
        # no concat / relayout needed.
        out_specs=pl.BlockSpec((hg, tq, dk),
                               lambda b, hi, qi, ki: (hi, b * nq + qi, 0)),
        scratch_shapes=[pltpu.VMEM((hg, tq, 1), jnp.float32),
                        pltpu.VMEM((hg, tq, 1), jnp.float32),
                        pltpu.VMEM((hg, tq, dk), jnp.float32)],
        compiler_params=_compiler_params(
            ("parallel", "parallel", "parallel", "arbitrary")),
    )(key_mask, qh, kh, vh)


def pallas_wo_res_ln(attn_h, wo_h, bias, res, g, beta, *, tm):
    H, M, dk = attn_h.shape
    D = wo_h.shape[-1]
    vec = pl.BlockSpec((1, D), lambda i: (0, 0))
    rowD = pl.BlockSpec((tm, D), lambda i: (i, 0))
    return pl.pallas_call(
        _wo_res_ln_kernel,
        out_shape=(jax.ShapeDtypeStruct((M, D), jnp.float32),    # new residual stream
                   jax.ShapeDtypeStruct((M, D), jnp.bfloat16)),  # LN2(x), FFN operand
        grid=(M // tm,),
        in_specs=[
            pl.BlockSpec((H, tm, dk), lambda i: (0, i, 0)),
            pl.BlockSpec((H, dk, D), lambda i: (0, 0, 0)),
            vec,
            rowD,          # residual
            vec, vec,      # LN2 gamma/beta
        ],
        out_specs=(rowD, rowD),
        input_output_aliases={3: 0},          # residual buffer reused as output 0
        compiler_params=_compiler_params(("parallel",)),
    )(attn_h, wo_h, bias.reshape(1, D), res, g.reshape(1, D), beta.reshape(1, D))


def pallas_mm_gelu(x, w, bias, *, tm, tn):
    M, K = x.shape
    N = w.shape[1]
    grid = (M // tm, N // tn)
    return pl.pallas_call(
        _mm_gelu_kernel,
        out_shape=jax.ShapeDtypeStruct((M, N), jnp.bfloat16),
        grid=grid,
        in_specs=[pl.BlockSpec((tm, K), lambda i, j: (i, 0)),
                  pl.BlockSpec((K, tn), lambda i, j: (0, j)),
                  pl.BlockSpec((1, tn), lambda i, j: (0, j))],
        out_specs=pl.BlockSpec((tm, tn), lambda i, j: (i, j)),
        compiler_params=_compiler_params(("parallel", "parallel")),
    )(x, w, bias.reshape(1, N))


def pallas_mm_res_ln(x, w, bias, res, g, beta, *, tm, tk):
    M, K = x.shape
    D = w.shape[1]
    grid = (M // tm, K // tk)
    vec = pl.BlockSpec((1, D), lambda i, k: (0, 0))
    rowD = pl.BlockSpec((tm, D), lambda i, k: (i, 0))
    return pl.pallas_call(
        _mm_res_ln_kernel,
        out_shape=(jax.ShapeDtypeStruct((M, D), jnp.float32),
                   jax.ShapeDtypeStruct((M, D), jnp.bfloat16)),
        grid=grid,
        in_specs=[
            pl.BlockSpec((tm, tk), lambda i, k: (i, k)),
            pl.BlockSpec((tk, D), lambda i, k: (k, 0)),
            vec,
            rowD,          # residual
            vec, vec,      # LN gamma/beta for the *next* sublayer's norm
        ],
        out_specs=(rowD, rowD),
        scratch_shapes=[pltpu.VMEM((tm, D), jnp.float32)],
        input_output_aliases={3: 0},
        compiler_params=_compiler_params(("parallel", "arbitrary")),
    )(x, w, bias.reshape(1, D), res, g.reshape(1, D), beta.reshape(1, D))


# ----------------------------- parameter setup -----------------------------

def _init_linear(key, fan_in, fan_out):
    # nn.Linear default: U(-1/sqrt(fan_in), 1/sqrt(fan_in)) for W and b.
    # Weights are stored bf16 (MXU-native operands); biases stay f32.
    k1, k2 = jax.random.split(key)
    bound = 1.0 / math.sqrt(fan_in)
    w = jax.random.uniform(k1, (fan_in, fan_out), jnp.float32, -bound, bound)
    b = jax.random.uniform(k2, (fan_out,), jnp.float32, -bound, bound)
    return w.astype(jnp.bfloat16), b


def _make_positional_encoding(d_model, max_len):
    pos = jnp.arange(max_len, dtype=jnp.float32)[:, None]
    div = jnp.exp(
        jnp.arange(0, d_model, 2, dtype=jnp.float32) * (-math.log(10000.0) / d_model)
    )
    pe = jnp.zeros((max_len, d_model), jnp.float32)
    pe = pe.at[:, 0::2].set(jnp.sin(pos * div))
    pe = pe.at[:, 1::2].set(jnp.cos(pos * div))
    return pe


def init_bert_params(key, vocab_size, d_model, num_layers, dff, max_len):
    keys = jax.random.split(key, num_layers + 1)
    params = {
        "embedding": jax.random.normal(keys[0], (vocab_size, d_model), jnp.float32),
        "pe": _make_positional_encoding(d_model, max_len),
        "layers": [],
    }
    for li in range(num_layers):
        lk = jax.random.split(keys[li + 1], 6)
        wq, bq = _init_linear(lk[0], d_model, d_model)
        wk, bk = _init_linear(lk[1], d_model, d_model)
        wv, bv = _init_linear(lk[2], d_model, d_model)
        wo, bo = _init_linear(lk[3], d_model, d_model)
        w1, b1 = _init_linear(lk[4], d_model, dff)
        w2, b2 = _init_linear(lk[5], dff, d_model)
        params["layers"].append({
            "ln1_g": jnp.ones((d_model,), jnp.float32),
            "ln1_b": jnp.zeros((d_model,), jnp.float32),
            "wq": wq, "bq": bq, "wk": wk, "bk": bk,
            "wv": wv, "bv": bv, "wo": wo, "bo": bo,
            "ln2_g": jnp.ones((d_model,), jnp.float32),
            "ln2_b": jnp.zeros((d_model,), jnp.float32),
            "w1": w1, "b1": b1, "w2": w2, "b2": b2,
        })
    return params


# ----------------------------- forward pass -----------------------------

def bert_forward(params, tokens, *, d_model, num_heads):
    B, L = tokens.shape
    H = num_heads
    dk = d_model // H
    D = d_model
    M = B * L

    # key-padding mask as a tiny (B, 1, L) int32 tensor; broadcast happens in-kernel.
    key_mask = (tokens > 0).astype(jnp.int32).reshape(B, 1, L)

    # embedding gather + positional-encoding add kept in XLA (glue ops).
    x = params["embedding"][tokens] + params["pe"][None, :L, :]
    x2d = x.reshape(M, D).astype(jnp.float32)

    tm = _pick_tile(M, 256, 8)
    tq = _pick_tile(L, 128, 8)
    tkv = _pick_tile(L, 256, 128)
    tn_qkv = _pick_tile(D, 512, 128)

    layers = params["layers"]
    n_layers = len(layers)

    # LN1 of layer 0 (no preceding Pallas matmul epilogue to host it).
    xn = pallas_layernorm(x2d, layers[0]["ln1_g"], layers[0]["ln1_b"], tm=tm)

    for li, lp in enumerate(layers):
        # --- self-attention sublayer (pre-norm residual) ---
        q2d, k2d, v2d = pallas_qkv(xn, lp["wq"], lp["bq"], lp["wk"], lp["bk"],
                                   lp["wv"], lp["bv"], tm=tm, tn=tn_qkv)
        # PyTorch's .view(B, H, -1, d_k) head split (no transpose!) -> free reshape.
        qh = q2d.reshape(B, H, L, dk)
        kh = k2d.reshape(B, H, L, dk)
        vh = v2d.reshape(B, H, L, dk)

        # flash attention -> heads-major (H, M, dk) output, no concat.
        attn_h = pallas_flash_attention(qh, kh, vh, key_mask, tq=tq, tkv=tkv)

        # Wo (head-fold) + bias + residual, with LN2 fused in the epilogue.
        wo_h = lp["wo"].reshape(H, dk, D)       # free reshape of (D, D)
        x2d, xn2 = pallas_wo_res_ln(attn_h, wo_h, lp["bo"], x2d,
                                    lp["ln2_g"], lp["ln2_b"], tm=tm)

        # --- feed-forward sublayer (pre-norm residual) ---
        h = pallas_mm_gelu(xn2, lp["w1"], lp["b1"], tm=tm,
                           tn=_pick_tile(lp["w1"].shape[1], 1024, 128))
        # LN1 of the NEXT layer fused in this epilogue; for the last layer the LN
        # output is simply unused (one discarded (M, D) bf16 write).
        nxt = layers[li + 1] if li + 1 < n_layers else lp
        x2d, xn = pallas_mm_res_ln(h, lp["w2"], lp["b2"], x2d,
                                   nxt["ln1_g"], nxt["ln1_b"], tm=tm,
                                   tk=_pick_tile(lp["w2"].shape[0], 1024, 128))
        # trailing EncoderLayer dropout is identity in eval mode.

    return x2d.reshape(B, L, D)


# ----------------------------- pure-JAX f32 reference -----------------------------

def bert_forward_ref(params, tokens, *, d_model, num_heads):
    """f32 reference mirroring the PyTorch module (same bf16-stored weights, upcast)."""
    B, L = tokens.shape
    H = num_heads
    dk = d_model // H
    D = d_model
    f32 = jnp.float32

    keep = (tokens > 0)[:, None, None, :]             # (B,1,1,L) key-padding mask
    x = params["embedding"][tokens] + params["pe"][None, :L, :]

    def ln(v, g, b):
        mu = jnp.mean(v, axis=-1, keepdims=True)
        var = jnp.mean(jnp.square(v - mu), axis=-1, keepdims=True)
        return (v - mu) * lax.rsqrt(var + 1e-5) * g + b

    for lp in params["layers"]:
        xn = ln(x, lp["ln1_g"], lp["ln1_b"])
        x2 = xn.reshape(B * L, D)

        def proj(w, b):
            return (x2 @ w.astype(f32) + b).reshape(B, H, L, dk)   # torch .view split

        q = proj(lp["wq"], lp["bq"])
        k = proj(lp["wk"], lp["bk"])
        v = proj(lp["wv"], lp["bv"])
        s = jnp.einsum("bhqd,bhkd->bhqk", q, k) / math.sqrt(dk)
        s = jnp.where(keep, s, -1e9)
        p = jax.nn.softmax(s, axis=-1)
        o = jnp.einsum("bhqk,bhkd->bhqd", p, v)
        o = jnp.transpose(o, (0, 2, 1, 3)).reshape(B, L, D)
        x = x + (o @ lp["wo"].astype(f32) + lp["bo"])

        xn2 = ln(x, lp["ln2_g"], lp["ln2_b"])
        hmid = xn2 @ lp["w1"].astype(f32) + lp["b1"]
        hmid = 0.5 * hmid * (1.0 + lax.erf(hmid / math.sqrt(2.0)))
        x = x + (hmid @ lp["w2"].astype(f32) + lp["b2"])
    return x


# ----------------------------- main -----------------------------

if __name__ == "__main__":
    vocab_size = 50
    d_model = 32
    num_layers = 2
    num_heads = 4
    dff = 128
    max_len = 16
    B, L = 2, 8

    root = jax.random.PRNGKey(0)
    k_params, k_tokens = jax.random.split(root)
    params = init_bert_params(k_params, vocab_size, d_model, num_layers, dff, max_len)
    tokens = jax.random.randint(k_tokens, (B, L), 0, vocab_size, dtype=jnp.int32)

    fwd = jax.jit(functools.partial(bert_forward, d_model=d_model, num_heads=num_heads))
    out = fwd(params, tokens)
    jax.block_until_ready(out)
    assert out.shape == (B, L, d_model)

    # bf16-operand / f32-accumulate kernels vs. pure-f32 reference (same weights):
    # loose tolerance documents the deliberate mixed-precision deviation.
    ref = bert_forward_ref(params, tokens, d_model=d_model, num_heads=num_heads)
    err = float(jnp.max(jnp.abs(out.astype(jnp.float32) - ref)))
    assert err < 2e-1, f"max abs err {err}"

    print("KERNEL_OK")
</pallas_src>

<mosaic_0001>
module attributes {stable_mosaic.version = 11 : i64} {
  func.func @_ln_kernel(%arg0: i32, %arg1: memref<16x32xf32, #tpu.memory_space<vmem>>, %arg2: memref<1x32xf32, #tpu.memory_space<vmem>>, %arg3: memref<1x32xf32, #tpu.memory_space<vmem>>, %arg4: memref<16x32xbf16, #tpu.memory_space<vmem>>) attributes {dimension_semantics = [#tpu.dimension_semantics<parallel>], iteration_bounds = array<i64: 1>, scalar_prefetch = 0 : i64, scratch_operands = 0 : i64, tpu.core_type = #tpu.core_type<tc>, window_params = [{transform_indices = @transform_0, window_bounds = array<i64: 16, 32>}, {pipeline_mode = #tpu.pipeline_mode<synchronous>, transform_indices = @transform_1, window_bounds = array<i64: 1, 32>}, {pipeline_mode = #tpu.pipeline_mode<synchronous>, transform_indices = @transform_2, window_bounds = array<i64: 1, 32>}, {transform_indices = @transform_3, window_bounds = array<i64: 16, 32>}]} {
    %c0 = arith.constant 0 : index
    %c0_0 = arith.constant 0 : index
    %0 = vector.load %arg1[%c0, %c0_0] : memref<16x32xf32, #tpu.memory_space<vmem>>, vector<16x32xf32>
    %c0_1 = arith.constant 0 : index
    %c0_2 = arith.constant 0 : index
    %1 = vector.load %arg2[%c0_1, %c0_2] : memref<1x32xf32, #tpu.memory_space<vmem>>, vector<1x32xf32>
    %c0_3 = arith.constant 0 : index
    %c0_4 = arith.constant 0 : index
    %2 = vector.load %arg3[%c0_3, %c0_4] : memref<1x32xf32, #tpu.memory_space<vmem>>, vector<1x32xf32>
    %cst = arith.constant dense<0.000000e+00> : vector<16xf32>
    %3 = vector.multi_reduction <add>, %0, %cst [1] : vector<16x32xf32> to vector<16xf32>
    %4 = vector.shape_cast %3 : vector<16xf32> to vector<16x1xf32>
    %cst_5 = arith.constant 3.200000e+01 : f32
    %5 = vector.broadcast %cst_5 : f32 to vector<16x1xf32>
    %6 = arith.divf %4, %5 : vector<16x1xf32>
    %7 = vector.broadcast %6 : vector<16x1xf32> to vector<16x32xf32>
    %8 = arith.subf %0, %7 : vector<16x32xf32>
    %9 = arith.mulf %8, %8 : vector<16x32xf32>
    %cst_6 = arith.constant dense<0.000000e+00> : vector<16xf32>
    %10 = vector.multi_reduction <add>, %9, %cst_6 [1] : vector<16x32xf32> to vector<16xf32>
    %11 = vector.shape_cast %10 : vector<16xf32> to vector<16x1xf32>
    %cst_7 = arith.constant 3.200000e+01 : f32
    %12 = vector.broadcast %cst_7 : f32 to vector<16x1xf32>
    %13 = arith.divf %11, %12 : vector<16x1xf32>
    %14 = vector.broadcast %6 : vector<16x1xf32> to vector<16x32xf32>
    %15 = arith.subf %0, %14 : vector<16x32xf32>
    %cst_8 = arith.constant 9.99999974E-6 : f32
    %16 = vector.broadcast %cst_8 : f32 to vector<16x1xf32>
    %17 = arith.addf %13, %16 : vector<16x1xf32>
    %18 = math.rsqrt %17 : vector<16x1xf32>
    %19 = vector.broadcast %18 : vector<16x1xf32> to vector<16x32xf32>
    %20 = arith.mulf %15, %19 : vector<16x32xf32>
    %21 = vector.broadcast %1 : vector<1x32xf32> to vector<16x32xf32>
    %22 = arith.mulf %20, %21 : vector<16x32xf32>
    %23 = vector.broadcast %2 : vector<1x32xf32> to vector<16x32xf32>
    %24 = arith.addf %22, %23 : vector<16x32xf32>
    %25 = arith.truncf %24 : vector<16x32xf32> to vector<16x32xbf16>
    %c0_9 = arith.constant 0 : index
    %c0_10 = arith.constant 0 : index
    %26 = vector.load %arg4[%c0_9, %c0_10] : memref<16x32xbf16, #tpu.memory_space<vmem>>, vector<16x32xbf16>
    tpu.vector_store %arg4[%c0_9, %c0_10], %25 {strides = array<i32>} : memref<16x32xbf16, #tpu.memory_space<vmem>>, vector<16x32xbf16>,
    return
  }
  func.func @transform_0(%arg0: i32) -> (i32, i32) {
    %c0_i32 = arith.constant 0 : i32
    %c0_i32_0 = arith.constant 0 : i32
    return %arg0, %c0_i32 : i32, i32
  }
  func.func @transform_1(%arg0: i32) -> (i32, i32) {
    %c0_i32 = arith.constant 0 : i32
    %c0_i32_0 = arith.constant 0 : i32
    %c0_i32_1 = arith.constant 0 : i32
    return %c0_i32, %c0_i32_0 : i32, i32
  }
  func.func @transform_2(%arg0: i32) -> (i32, i32) {
    %c0_i32 = arith.constant 0 : i32
    %c0_i32_0 = arith.constant 0 : i32
    %c0_i32_1 = arith.constant 0 : i32
    return %c0_i32, %c0_i32_0 : i32, i32
  }
  func.func @transform_3(%arg0: i32) -> (i32, i32) {
    %c0_i32 = arith.constant 0 : i32
    %c0_i32_0 = arith.constant 0 : i32
    return %arg0, %c0_i32 : i32, i32
  }
}

module attributes {stable_mosaic.version = 11 : i64} {
  func.func @_qkv_kernel(%arg0: i32, %arg1: i32, %arg2: memref<16x32xbf16, #tpu.memory_space<vmem>>, %arg3: memref<32x32xbf16, #tpu.memory_space<vmem>>, %arg4: memref<1x32xf32, #tpu.memory_space<vmem>>, %arg5: memref<32x32xbf16, #tpu.memory_space<vmem>>, %arg6: memref<1x32xf32, #tpu.memory_space<vmem>>, %arg7: memref<32x32xbf16, #tpu.memory_space<vmem>>, %arg8: memref<1x32xf32, #tpu.memory_space<vmem>>, %arg9: memref<16x32xbf16, #tpu.memory_space<vmem>>, %arg10: memref<16x32xbf16, #tpu.memory_space<vmem>>, %arg11: memref<16x32xbf16, #tpu.memory_space<vmem>>) attributes {dimension_semantics = [#tpu.dimension_semantics<parallel>, #tpu.dimension_semantics<parallel>], iteration_bounds = array<i64: 1, 1>, scalar_prefetch = 0 : i64, scratch_operands = 0 : i64, tpu.core_type = #tpu.core_type<tc>, window_params = [{transform_indices = @transform_0, window_bounds = array<i64: 16, 32>}, {transform_indices = @transform_1, window_bounds = array<i64: 32, 32>}, {transform_indices = @transform_2, window_bounds = array<i64: 1, 32>}, {transform_indices = @transform_3, window_bounds = array<i64: 32, 32>}, {transform_indices = @transform_4, window_bounds = array<i64: 1, 32>}, {transform_indices = @transform_5, window_bounds = array<i64: 32, 32>}, {transform_indices = @transform_6, window_bounds = array<i64: 1, 32>}, {transform_indices = @transform_7, window_bounds = array<i64: 16, 32>}, {transform_indices = @transform_8, window_bounds = array<i64: 16, 32>}, {transform_indices = @transform_9, window_bounds = array<i64: 16, 32>}]} {
    %c0 = arith.constant 0 : index
    %c0_0 = arith.constant 0 : index
    %0 = vector.load %arg2[%c0, %c0_0] : memref<16x32xbf16, #tpu.memory_space<vmem>>, vector<16x32xbf16>
    %c0_1 = arith.constant 0 : index
    %c0_2 = arith.constant 0 : index
    %1 = vector.load %arg3[%c0_1, %c0_2] : memref<32x32xbf16, #tpu.memory_space<vmem>>, vector<32x32xbf16>
    %cst = arith.constant dense<0.000000e+00> : vector<16x32xf32>
    %2 = tpu.matmul %0, %1, %cst {dimension_numbers = #tpu.dot_dimension_numbers<[1], [0], [0], [1], [0, 0, 1, 1], [], []>} : vector<16x32xbf16>, vector<32x32xbf16>, vector<16x32xf32> -> vector<16x32xf32>
    %c0_3 = arith.constant 0 : index
    %c0_4 = arith.constant 0 : index
    %3 = vector.load %arg4[%c0_3, %c0_4] : memref<1x32xf32, #tpu.memory_space<vmem>>, vector<1x32xf32>
    %4 = vector.broadcast %3 : vector<1x32xf32> to vector<16x32xf32>
    %5 = arith.addf %2, %4 : vector<16x32xf32>
    %6 = arith.truncf %5 : vector<16x32xf32> to vector<16x32xbf16>
    %c0_5 = arith.constant 0 : index
    %c0_6 = arith.constant 0 : index
    %7 = vector.load %arg9[%c0_5, %c0_6] : memref<16x32xbf16, #tpu.memory_space<vmem>>, vector<16x32xbf16>
    tpu.vector_store %arg9[%c0_5, %c0_6], %6 {strides = array<i32>} : memref<16x32xbf16, #tpu.memory_space<vmem>>, vector<16x32xbf16>,
    %c0_7 = arith.constant 0 : index
    %c0_8 = arith.constant 0 : index
    %8 = vector.load %arg5[%c0_7, %c0_8] : memref<32x32xbf16, #tpu.memory_space<vmem>>, vector<32x32xbf16>
    %cst_9 = arith.constant dense<0.000000e+00> : vector<16x32xf32>
    %9 = tpu.matmul %0, %8, %cst_9 {dimension_numbers = #tpu.dot_dimension_numbers<[1], [0], [0], [1], [0, 0, 1, 1], [], []>} : vector<16x32xbf16>, vector<32x32xbf16>, vector<16x32xf32> -> vector<16x32xf32>
    %c0_10 = arith.constant 0 : index
    %c0_11 = arith.constant 0 : index
    %10 = vector.load %arg6[%c0_10, %c0_11] : memref<1x32xf32, #tpu.memory_space<vmem>>, vector<1x32xf32>
    %11 = vector.broadcast %10 : vector<1x32xf32> to vector<16x32xf32>
    %12 = arith.addf %9, %11 : vector<16x32xf32>
    %13 = arith.truncf %12 : vector<16x32xf32> to vector<16x32xbf16>
    %c0_12 = arith.constant 0 : index
    %c0_13 = arith.constant 0 : index
    %14 = vector.load %arg10[%c0_12, %c0_13] : memref<16x32xbf16, #tpu.memory_space<vmem>>, vector<16x32xbf16>
    tpu.vector_store %arg10[%c0_12, %c0_13], %13 {strides = array<i32>} : memref<16x32xbf16, #tpu.memory_space<vmem>>, vector<16x32xbf16>,
    %c0_14 = arith.constant 0 : index
    %c0_15 = arith.constant 0 : index
    %15 = vector.load %arg7[%c0_14, %c0_15] : memref<32x32xbf16, #tpu.memory_space<vmem>>, vector<32x32xbf16>
    %cst_16 = arith.constant dense<0.000000e+00> : vector<16x32xf32>
    %16 = tpu.matmul %0, %15, %cst_16 {dimension_numbers = #tpu.dot_dimension_numbers<[1], [0], [0], [1], [0, 0, 1, 1], [], []>} : vector<16x32xbf16>, vector<32x32xbf16>, vector<16x32xf32> -> vector<16x32xf32>
    %c0_17 = arith.constant 0 : index
    %c0_18 = arith.constant 0 : index
    %17 = vector.load %arg8[%c0_17, %c0_18] : memref<1x32xf32, #tpu.memory_space<vmem>>, vector<1x32xf32>
    %18 = vector.broadcast %17 : vector<1x32xf32> to vector<16x32xf32>
    %19 = arith.addf %16, %18 : vector<16x32xf32>
    %20 = arith.truncf %19 : vector<16x32xf32> to vector<16x32xbf16>
    %c0_19 = arith.constant 0 : index
    %c0_20 = arith.constant 0 : index
    %21 = vector.load %arg11[%c0_19, %c0_20] : memref<16x32xbf16, #tpu.memory_space<vmem>>, vector<16x32xbf16>
    tpu.vector_store %arg11[%c0_19, %c0_20], %20 {strides = array<i32>} : memref<16x32xbf16, #tpu.memory_space<vmem>>, vector<16x32xbf16>,
    return
  }
  func.func @transform_0(%arg0: i32, %arg1: i32) -> (i32, i32) {
    %c0_i32 = arith.constant 0 : i32
    %c0_i32_0 = arith.constant 0 : i32
    return %arg0, %c0_i32 : i32, i32
  }
  func.func @transform_1(%arg0: i32, %arg1: i32) -> (i32, i32) {
    %c0_i32 = arith.constant 0 : i32
    %c0_i32_0 = arith.constant 0 : i32
    return %c0_i32, %arg1 : i32, i32
  }
  func.func @transform_2(%arg0: i32, %arg1: i32) -> (i32, i32) {
    %c0_i32 = arith.constant 0 : i32
    %c0_i32_0 = arith.constant 0 : i32
    return %c0_i32, %arg1 : i32, i32
  }
  func.func @transform_3(%arg0: i32, %arg1: i32) -> (i32, i32) {
    %c0_i32 = arith.constant 0 : i32
    %c0_i32_0 = arith.constant 0 : i32
    return %c0_i32, %arg1 : i32, i32
  }
  func.func @transform_4(%arg0: i32, %arg1: i32) -> (i32, i32) {
    %c0_i32 = arith.constant 0 : i32
    %c0_i32_0 = arith.constant 0 : i32
    return %c0_i32, %arg1 : i32, i32
  }
  func.func @transform_5(%arg0: i32, %arg1: i32) -> (i32, i32) {
    %c0_i32 = arith.constant 0 : i32
    %c0_i32_0 = arith.constant 0 : i32
    return %c0_i32, %arg1 : i32, i32
  }
  func.func @transform_6(%arg0: i32, %arg1: i32) -> (i32, i32) {
    %c0_i32 = arith.constant 0 : i32
    %c0_i32_0 = arith.constant 0 : i32
    return %c0_i32, %arg1 : i32, i32
  }
  func.func @transform_7(%arg0: i32, %arg1: i32) -> (i32, i32) {
    %c0_i32 = arith.constant 0 : i32
    return %arg0, %arg1 : i32, i32
  }
  func.func @transform_8(%arg0: i32, %arg1: i32) -> (i32, i32) {
    %c0_i32 = arith.constant 0 : i32
    return %arg0, %arg1 : i32, i32
  }
  func.func @transform_9(%arg0: i32, %arg1: i32) -> (i32, i32) {
    %c0_i32 = arith.constant 0 : i32
    return %arg0, %arg1 : i32, i32
  }
}

module attributes {stable_mosaic.version = 11 : i64} {
  func.func @_flash_attn_kernel(%arg0: i32, %arg1: i32, %arg2: i32, %arg3: i32, %arg4: memref<1x1x8xi32, #tpu.memory_space<vmem>>, %arg5: memref<1x4x8x8xbf16, #tpu.memory_space<vmem>>, %arg6: memref<1x4x8x8xbf16, #tpu.memory_space<vmem>>, %arg7: memref<1x4x8x8xbf16, #tpu.memory_space<vmem>>, %arg8: memref<4x8x8xbf16, #tpu.memory_space<vmem>>, %arg9: memref<4x8x1xf32, #tpu.memory_space<vmem>>, %arg10: memref<4x8x1xf32, #tpu.memory_space<vmem>>, %arg11: memref<4x8x8xf32, #tpu.memory_space<vmem>>) attributes {dimension_semantics = [#tpu.dimension_semantics<parallel>, #tpu.dimension_semantics<parallel>, #tpu.dimension_semantics<parallel>, #tpu.dimension_semantics<arbitrary>], iteration_bounds = array<i64: 2, 1, 1, 1>, scalar_prefetch = 0 : i64, scratch_operands = 3 : i64, tpu.core_type = #tpu.core_type<tc>, window_params = [{transform_indices = @transform_0, window_bounds = array<i64: 1, 1, 8>}, {transform_indices = @transform_1, window_bounds = array<i64: 1, 4, 8, 8>}, {transform_indices = @transform_2, window_bounds = array<i64: 1, 4, 8, 8>}, {transform_indices = @transform_3, window_bounds = array<i64: 1, 4, 8, 8>}, {transform_indices = @transform_4, window_bounds = array<i64: 4, 8, 8>}]} {
    %c0_i32 = arith.constant 0 : i32
    %0 = arith.cmpi eq, %arg3, %c0_i32 : i32
    %1 = arith.extui %0 : i1 to i32
    %c0_i32_0 = arith.constant 0 : i32
    %2 = arith.cmpi ne, %1, %c0_i32_0 : i32
    scf.if %2 {
      %cst_41 = arith.constant 0xFF800000 : f32
      %47 = vector.broadcast %cst_41 : f32 to vector<4x8x1xf32>
      %c0_42 = arith.constant 0 : index
      %c0_43 = arith.constant 0 : index
      %c0_44 = arith.constant 0 : index
      %48 = vector.load %arg9[%c0_42, %c0_43, %c0_44] : memref<4x8x1xf32, #tpu.memory_space<vmem>>, vector<4x8x1xf32>
      tpu.vector_store %arg9[%c0_42, %c0_43, %c0_44], %47 {strides = array<i32>} : memref<4x8x1xf32, #tpu.memory_space<vmem>>, vector<4x8x1xf32>,
      %cst_45 = arith.constant 0.000000e+00 : f32
      %49 = vector.broadcast %cst_45 : f32 to vector<4x8x1xf32>
      %c0_46 = arith.constant 0 : index
      %c0_47 = arith.constant 0 : index
      %c0_48 = arith.constant 0 : index
      %50 = vector.load %arg10[%c0_46, %c0_47, %c0_48] : memref<4x8x1xf32, #tpu.memory_space<vmem>>, vector<4x8x1xf32>
      tpu.vector_store %arg10[%c0_46, %c0_47, %c0_48], %49 {strides = array<i32>} : memref<4x8x1xf32, #tpu.memory_space<vmem>>, vector<4x8x1xf32>,
      %cst_49 = arith.constant 0.000000e+00 : f32
      %51 = vector.broadcast %cst_49 : f32 to vector<4x8x8xf32>
      %c0_50 = arith.constant 0 : index
      %c0_51 = arith.constant 0 : index
      %c0_52 = arith.constant 0 : index
      %52 = vector.load %arg11[%c0_50, %c0_51, %c0_52] : memref<4x8x8xf32, #tpu.memory_space<vmem>>, vector<4x8x8xf32>
      tpu.vector_store %arg11[%c0_50, %c0_51, %c0_52], %51 {strides = array<i32>} : memref<4x8x8xf32, #tpu.memory_space<vmem>>, vector<4x8x8xf32>,
    } else {
    }
    %c0 = arith.constant 0 : index
    %c0_1 = arith.constant 0 : index
    %c0_2 = arith.constant 0 : index
    %c0_3 = arith.constant 0 : index
    %3 = vector.load %arg5[%c0, %c0_1, %c0_2, %c0_3] : memref<1x4x8x8xbf16, #tpu.memory_space<vmem>>, vector<1x4x8x8xbf16>
    %4 = vector.shape_cast %3 : vector<1x4x8x8xbf16> to vector<4x8x8xbf16>
    %c0_4 = arith.constant 0 : index
    %c0_5 = arith.constant 0 : index
    %c0_6 = arith.constant 0 : index
    %c0_7 = arith.constant 0 : index
    %5 = vector.load %arg6[%c0_4, %c0_5, %c0_6, %c0_7] : memref<1x4x8x8xbf16, #tpu.memory_space<vmem>>, vector<1x4x8x8xbf16>
    %6 = vector.shape_cast %5 : vector<1x4x8x8xbf16> to vector<4x8x8xbf16>
    %c0_8 = arith.constant 0 : index
    %c0_9 = arith.constant 0 : index
    %c0_10 = arith.constant 0 : index
    %c0_11 = arith.constant 0 : index
    %7 = vector.load %arg7[%c0_8, %c0_9, %c0_10, %c0_11] : memref<1x4x8x8xbf16, #tpu.memory_space<vmem>>, vector<1x4x8x8xbf16>
    %8 = vector.shape_cast %7 : vector<1x4x8x8xbf16> to vector<4x8x8xbf16>
    %cst = arith.constant dense<0.000000e+00> : vector<4x8x8xf32>
    %9 = tpu.matmul %4, %6, %cst {dimension_numbers = #tpu.dot_dimension_numbers<[2], [2], [1], [1], [0, 0, 0, 1, 1, 1], [0], [0]>} : vector<4x8x8xbf16>, vector<4x8x8xbf16>, vector<4x8x8xf32> -> vector<4x8x8xf32>
    %cst_12 = arith.constant 0.353553385 : f32
    %10 = vector.broadcast %cst_12 : f32 to vector<4x8x8xf32>
    %11 = arith.mulf %9, %10 : vector<4x8x8xf32>
    %c0_13 = arith.constant 0 : index
    %c0_14 = arith.constant 0 : index
    %c0_15 = arith.constant 0 : index
    %12 = vector.load %arg4[%c0_13, %c0_14, %c0_15] : memref<1x1x8xi32, #tpu.memory_space<vmem>>, vector<1x1x8xi32>
    %13 = vector.shape_cast %12 : vector<1x1x8xi32> to vector<1x8xi32>
    %14 = vector.shape_cast %13 : vector<1x8xi32> to vector<1x1x8xi32>
    %c0_i32_16 = arith.constant 0 : i32
    %15 = vector.broadcast %c0_i32_16 : i32 to vector<1x1x8xi32>
    %16 = arith.cmpi eq, %14, %15 : vector<1x1x8xi32>
    %cst_17 = arith.constant -1.000000e+09 : f32
    %17 = vector.shape_cast %16 : vector<1x1x8xi1> to vector<1x1x8xi1>
    %18 = vector.broadcast %17 : vector<1x1x8xi1> to vector<4x8x8xi1>
    %19 = vector.broadcast %cst_17 : f32 to vector<4x8x8xf32>
    %20 = arith.select %18, %19, %11 : vector<4x8x8xi1>, vector<4x8x8xf32>
    %c0_18 = arith.constant 0 : index
    %c0_19 = arith.constant 0 : index
    %c0_20 = arith.constant 0 : index
    %21 = vector.load %arg9[%c0_18, %c0_19, %c0_20] : memref<4x8x1xf32, #tpu.memory_space<vmem>>, vector<4x8x1xf32>
    %cst_21 = arith.constant dense<0xFF800000> : vector<4x8xf32>
    %22 = vector.multi_reduction <maximumf>, %20, %cst_21 [2] : vector<4x8x8xf32> to vector<4x8xf32>
    %23 = vector.shape_cast %22 : vector<4x8xf32> to vector<4x8x1xf32>
    %24 = arith.maximumf %21, %23 : vector<4x8x1xf32>
    %25 = arith.subf %21, %24 : vector<4x8x1xf32>
    %26 = math.exp %25 : vector<4x8x1xf32>
    %27 = vector.broadcast %24 : vector<4x8x1xf32> to vector<4x8x8xf32>
    %28 = arith.subf %20, %27 : vector<4x8x8xf32>
    %29 = math.exp %28 : vector<4x8x8xf32>
    %c0_22 = arith.constant 0 : index
    %c0_23 = arith.constant 0 : index
    %c0_24 = arith.constant 0 : index
    %30 = vector.load %arg10[%c0_22, %c0_23, %c0_24] : memref<4x8x1xf32, #tpu.memory_space<vmem>>, vector<4x8x1xf32>
    %31 = arith.mulf %26, %30 : vector<4x8x1xf32>
    %cst_25 = arith.constant dense<0.000000e+00> : vector<4x8xf32>
    %32 = vector.multi_reduction <add>, %29, %cst_25 [2] : vector<4x8x8xf32> to vector<4x8xf32>
    %33 = vector.shape_cast %32 : vector<4x8xf32> to vector<4x8x1xf32>
    %34 = arith.addf %31, %33 : vector<4x8x1xf32>
    %c0_26 = arith.constant 0 : index
    %c0_27 = arith.constant 0 : index
    %c0_28 = arith.constant 0 : index
    %35 = vector.load %arg10[%c0_26, %c0_27, %c0_28] : memref<4x8x1xf32, #tpu.memory_space<vmem>>, vector<4x8x1xf32>
    tpu.vector_store %arg10[%c0_26, %c0_27, %c0_28], %34 {strides = array<i32>} : memref<4x8x1xf32, #tpu.memory_space<vmem>>, vector<4x8x1xf32>,
    %36 = arith.truncf %29 : vector<4x8x8xf32> to vector<4x8x8xbf16>
    %cst_29 = arith.constant dense<0.000000e+00> : vector<4x8x8xf32>
    %37 = tpu.matmul %36, %8, %cst_29 {dimension_numbers = #tpu.dot_dimension_numbers<[2], [1], [1], [2], [0, 0, 0, 1, 1, 2], [0], [0]>} : vector<4x8x8xbf16>, vector<4x8x8xbf16>, vector<4x8x8xf32> -> vector<4x8x8xf32>
    %c0_30 = arith.constant 0 : index
    %c0_31 = arith.constant 0 : index
    %c0_32 = arith.constant 0 : index
    %38 = vector.load %arg11[%c0_30, %c0_31, %c0_32] : memref<4x8x8xf32, #tpu.memory_space<vmem>>, vector<4x8x8xf32>
    %39 = vector.broadcast %26 : vector<4x8x1xf32> to vector<4x8x8xf32>
    %40 = arith.mulf %39, %38 : vector<4x8x8xf32>
    %41 = arith.addf %40, %37 : vector<4x8x8xf32>
    %c0_33 = arith.constant 0 : index
    %c0_34 = arith.constant 0 : index
    %c0_35 = arith.constant 0 : index
    %42 = vector.load %arg11[%c0_33, %c0_34, %c0_35] : memref<4x8x8xf32, #tpu.memory_space<vmem>>, vector<4x8x8xf32>
    tpu.vector_store %arg11[%c0_33, %c0_34, %c0_35], %41 {strides = array<i32>} : memref<4x8x8xf32, #tpu.memory_space<vmem>>, vector<4x8x8xf32>,
    %c0_36 = arith.constant 0 : index
    %c0_37 = arith.constant 0 : index
    %c0_38 = arith.constant 0 : index
    %43 = vector.load %arg9[%c0_36, %c0_37, %c0_38] : memref<4x8x1xf32, #tpu.memory_space<vmem>>, vector<4x8x1xf32>
    tpu.vector_store %arg9[%c0_36, %c0_37, %c0_38], %24 {strides = array<i32>} : memref<4x8x1xf32, #tpu.memory_space<vmem>>, vector<4x8x1xf32>,
    %c0_i32_39 = arith.constant 0 : i32
    %44 = arith.cmpi eq, %arg3, %c0_i32_39 : i32
    %45 = arith.extui %44 : i1 to i32
    %c0_i32_40 = arith.constant 0 : i32
    %46 = arith.cmpi ne, %45, %c0_i32_40 : i32
    scf.if %46 {
      %c0_41 = arith.constant 0 : index
      %c0_42 = arith.constant 0 : index
      %c0_43 = arith.constant 0 : index
      %47 = vector.load %arg10[%c0_41, %c0_42, %c0_43] : memref<4x8x1xf32, #tpu.memory_space<vmem>>, vector<4x8x1xf32>
      %48 = tpu.reciprocal %47 : vector<4x8x1xf32> -> vector<4x8x1xf32>
      %c0_44 = arith.constant 0 : index
      %c0_45 = arith.constant 0 : index
      %c0_46 = arith.constant 0 : index
      %49 = vector.load %arg11[%c0_44, %c0_45, %c0_46] : memref<4x8x8xf32, #tpu.memory_space<vmem>>, vector<4x8x8xf32>
      %50 = vector.broadcast %48 : vector<4x8x1xf32> to vector<4x8x8xf32>
      %51 = arith.mulf %49, %50 : vector<4x8x8xf32>
      %52 = arith.truncf %51 : vector<4x8x8xf32> to vector<4x8x8xbf16>
      %c0_47 = arith.constant 0 : index
      %c0_48 = arith.constant 0 : index
      %c0_49 = arith.constant 0 : index
      %53 = vector.load %arg8[%c0_47, %c0_48, %c0_49] : memref<4x8x8xbf16, #tpu.memory_space<vmem>>, vector<4x8x8xbf16>
      tpu.vector_store %arg8[%c0_47, %c0_48, %c0_49], %52 {strides = array<i32>} : memref<4x8x8xbf16, #tpu.memory_space<vmem>>, vector<4x8x8xbf16>,
    } else {
    }
    return
  }
  func.func @transform_0(%arg0: i32, %arg1: i32, %arg2: i32, %arg3: i32) -> (i32, i32, i32) {
    %c0_i32 = arith.constant 0 : i32
    %c0_i32_0 = arith.constant 0 : i32
    return %arg0, %c0_i32, %arg3 : i32, i32, i32
  }
  func.func @transform_1(%arg0: i32, %arg1: i32, %arg2: i32, %arg3: i32) -> (i32, i32, i32, i32) {
    %c0_i32 = arith.constant 0 : i32
    %c0_i32_0 = arith.constant 0 : i32
    return %arg0, %arg1, %arg2, %c0_i32 : i32, i32, i32, i32
  }
  func.func @transform_2(%arg0: i32, %arg1: i32, %arg2: i32, %arg3: i32) -> (i32, i32, i32, i32) {
    %c0_i32 = arith.constant 0 : i32
    %c0_i32_0 = arith.constant 0 : i32
    return %arg0, %arg1, %arg3, %c0_i32 : i32, i32, i32, i32
  }
  func.func @transform_3(%arg0: i32, %arg1: i32, %arg2: i32, %arg3: i32) -> (i32, i32, i32, i32) {
    %c0_i32 = arith.constant 0 : i32
    %c0_i32_0 = arith.constant 0 : i32
    return %arg0, %arg1, %arg3, %c0_i32 : i32, i32, i32, i32
  }
  func.func @transform_4(%arg0: i32, %arg1: i32, %arg2: i32, %arg3: i32) -> (i32, i32, i32) {
    %c1_i32 = arith.constant 1 : i32
    %0 = arith.muli %arg0, %c1_i32 : i32
    %1 = arith.addi %0, %arg2 : i32
    %c0_i32 = arith.constant 0 : i32
    %c0_i32_0 = arith.constant 0 : i32
    return %arg1, %1, %c0_i32 : i32, i32, i32
  }
}

module attributes {stable_mosaic.version = 11 : i64} {
  func.func @_wo_res_ln_kernel(%arg0: i32, %arg1: memref<4x16x8xbf16, #tpu.memory_space<vmem>>, %arg2: memref<4x8x32xbf16, #tpu.memory_space<vmem>>, %arg3: memref<1x32xf32, #tpu.memory_space<vmem>>, %arg4: memref<16x32xf32, #tpu.memory_space<vmem>>, %arg5: memref<1x32xf32, #tpu.memory_space<vmem>>, %arg6: memref<1x32xf32, #tpu.memory_space<vmem>>, %arg7: memref<16x32xf32, #tpu.memory_space<vmem>>, %arg8: memref<16x32xbf16, #tpu.memory_space<vmem>>) attributes {dimension_semantics = [#tpu.dimension_semantics<parallel>], iteration_bounds = array<i64: 1>, scalar_prefetch = 0 : i64, scratch_operands = 0 : i64, tpu.core_type = #tpu.core_type<tc>, window_params = [{transform_indices = @transform_0, window_bounds = array<i64: 4, 16, 8>}, {pipeline_mode = #tpu.pipeline_mode<synchronous>, transform_indices = @transform_1, window_bounds = array<i64: 4, 8, 32>}, {pipeline_mode = #tpu.pipeline_mode<synchronous>, transform_indices = @transform_2, window_bounds = array<i64: 1, 32>}, {transform_indices = @transform_3, window_bounds = array<i64: 16, 32>}, {pipeline_mode = #tpu.pipeline_mode<synchronous>, transform_indices = @transform_4, window_bounds = array<i64: 1, 32>}, {pipeline_mode = #tpu.pipeline_mode<synchronous>, transform_indices = @transform_5, window_bounds = array<i64: 1, 32>}, {transform_indices = @transform_6, window_bounds = array<i64: 16, 32>}, {transform_indices = @transform_7, window_bounds = array<i64: 16, 32>}]} {
    %cst = arith.constant 0.000000e+00 : f32
    %0 = vector.broadcast %cst : f32 to vector<16x32xf32>
    %c0 = arith.constant 0 : index
    %c0_0 = arith.constant 0 : index
    %c0_1 = arith.constant 0 : index
    %1 = vector.load %arg1[%c0, %c0_0, %c0_1] : memref<4x16x8xbf16, #tpu.memory_space<vmem>>, vector<1x16x8xbf16>
    %2 = vector.shape_cast %1 : vector<1x16x8xbf16> to vector<16x8xbf16>
    %c0_2 = arith.constant 0 : index
    %c0_3 = arith.constant 0 : index
    %c0_4 = arith.constant 0 : index
    %3 = vector.load %arg2[%c0_2, %c0_3, %c0_4] : memref<4x8x32xbf16, #tpu.memory_space<vmem>>, vector<1x8x32xbf16>
    %4 = vector.shape_cast %3 : vector<1x8x32xbf16> to vector<8x32xbf16>
    %cst_5 = arith.constant dense<0.000000e+00> : vector<16x32xf32>
    %5 = tpu.matmul %2, %4, %cst_5 {dimension_numbers = #tpu.dot_dimension_numbers<[1], [0], [0], [1], [0, 0, 1, 1], [], []>} : vector<16x8xbf16>, vector<8x32xbf16>, vector<16x32xf32> -> vector<16x32xf32>
    %6 = arith.addf %0, %5 : vector<16x32xf32>
    %c1 = arith.constant 1 : index
    %c0_6 = arith.constant 0 : index
    %c0_7 = arith.constant 0 : index
    %7 = vector.load %arg1[%c1, %c0_6, %c0_7] : memref<4x16x8xbf16, #tpu.memory_space<vmem>>, vector<1x16x8xbf16>
    %8 = vector.shape_cast %7 : vector<1x16x8xbf16> to vector<16x8xbf16>
    %c1_8 = arith.constant 1 : index
    %c0_9 = arith.constant 0 : index
    %c0_10 = arith.constant 0 : index
    %9 = vector.load %arg2[%c1_8, %c0_9, %c0_10] : memref<4x8x32xbf16, #tpu.memory_space<vmem>>, vector<1x8x32xbf16>
    %10 = vector.shape_cast %9 : vector<1x8x32xbf16> to vector<8x32xbf16>
    %cst_11 = arith.constant dense<0.000000e+00> : vector<16x32xf32>
    %11 = tpu.matmul %8, %10, %cst_11 {dimension_numbers = #tpu.dot_dimension_numbers<[1], [0], [0], [1], [0, 0, 1, 1], [], []>} : vector<16x8xbf16>, vector<8x32xbf16>, vector<16x32xf32> -> vector<16x32xf32>
    %12 = arith.addf %6, %11 : vector<16x32xf32>
    %c2 = arith.constant 2 : index
    %c0_12 = arith.constant 0 : index
    %c0_13 = arith.constant 0 : index
    %13 = vector.load %arg1[%c2, %c0_12, %c0_13] : memref<4x16x8xbf16, #tpu.memory_space<vmem>>, vector<1x16x8xbf16>
    %14 = vector.shape_cast %13 : vector<1x16x8xbf16> to vector<16x8xbf16>
    %c2_14 = arith.constant 2 : index
    %c0_15 = arith.constant 0 : index
    %c0_16 = arith.constant 0 : index
    %15 = vector.load %arg2[%c2_14, %c0_15, %c0_16] : memref<4x8x32xbf16, #tpu.memory_space<vmem>>, vector<1x8x32xbf16>
    %16 = vector.shape_cast %15 : vector<1x8x32xbf16> to vector<8x32xbf16>
    %cst_17 = arith.constant dense<0.000000e+00> : vector<16x32xf32>
    %17 = tpu.matmul %14, %16, %cst_17 {dimension_numbers = #tpu.dot_dimension_numbers<[1], [0], [0], [1], [0, 0, 1, 1], [], []>} : vector<16x8xbf16>, vector<8x32xbf16>, vector<16x32xf32> -> vector<16x32xf32>
    %18 = arith.addf %12, %17 : vector<16x32xf32>
    %c3 = arith.constant 3 : index
    %c0_18 = arith.constant 0 : index
    %c0_19 = arith.constant 0 : index
    %19 = vector.load %arg1[%c3, %c0_18, %c0_19] : memref<4x16x8xbf16, #tpu.memory_space<vmem>>, vector<1x16x8xbf16>
    %20 = vector.shape_cast %19 : vector<1x16x8xbf16> to vector<16x8xbf16>
    %c3_20 = arith.constant 3 : index
    %c0_21 = arith.constant 0 : index
    %c0_22 = arith.constant 0 : index
    %21 = vector.load %arg2[%c3_20, %c0_21, %c0_22] : memref<4x8x32xbf16, #tpu.memory_space<vmem>>, vector<1x8x32xbf16>
    %22 = vector.shape_cast %21 : vector<1x8x32xbf16> to vector<8x32xbf16>
    %cst_23 = arith.constant dense<0.000000e+00> : vector<16x32xf32>
    %23 = tpu.matmul %20, %22, %cst_23 {dimension_numbers = #tpu.dot_dimension_numbers<[1], [0], [0], [1], [0, 0, 1, 1], [], []>} : vector<16x8xbf16>, vector<8x32xbf16>, vector<16x32xf32> -> vector<16x32xf32>
    %24 = arith.addf %18, %23 : vector<16x32xf32>
    %c0_24 = arith.constant 0 : index
    %c0_25 = arith.constant 0 : index
    %25 = vector.load %arg3[%c0_24, %c0_25] : memref<1x32xf32, #tpu.memory_space<vmem>>, vector<1x32xf32>
    %26 = vector.broadcast %25 : vector<1x32xf32> to vector<16x32xf32>
    %27 = arith.addf %24, %26 : vector<16x32xf32>
    %c0_26 = arith.constant 0 : index
    %c0_27 = arith.constant 0 : index
    %28 = vector.load %arg4[%c0_26, %c0_27] : memref<16x32xf32, #tpu.memory_space<vmem>>, vector<16x32xf32>
    %29 = arith.addf %27, %28 : vector<16x32xf32>
    %c0_28 = arith.constant 0 : index
    %c0_29 = arith.constant 0 : index
    %30 = vector.load %arg7[%c0_28, %c0_29] : memref<16x32xf32, #tpu.memory_space<vmem>>, vector<16x32xf32>
    tpu.vector_store %arg7[%c0_28, %c0_29], %29 {strides = array<i32>} : memref<16x32xf32, #tpu.memory_space<vmem>>, vector<16x32xf32>,
    %c0_30 = arith.constant 0 : index
    %c0_31 = arith.constant 0 : index
    %31 = vector.load %arg5[%c0_30, %c0_31] : memref<1x32xf32, #tpu.memory_space<vmem>>, vector<1x32xf32>
    %c0_32 = arith.constant 0 : index
    %c0_33 = arith.constant 0 : index
    %32 = vector.load %arg6[%c0_32, %c0_33] : memref<1x32xf32, #tpu.memory_space<vmem>>, vector<1x32xf32>
    %cst_34 = arith.constant dense<0.000000e+00> : vector<16xf32>
    %33 = vector.multi_reduction <add>, %29, %cst_34 [1] : vector<16x32xf32> to vector<16xf32>
    %34 = vector.shape_cast %33 : vector<16xf32> to vector<16x1xf32>
    %cst_35 = arith.constant 3.200000e+01 : f32
    %35 = vector.broadcast %cst_35 : f32 to vector<16x1xf32>
    %36 = arith.divf %34, %35 : vector<16x1xf32>
    %37 = vector.broadcast %36 : vector<16x1xf32> to vector<16x32xf32>
    %38 = arith.subf %29, %37 : vector<16x32xf32>
    %39 = arith.mulf %38, %38 : vector<16x32xf32>
    %cst_36 = arith.constant dense<0.000000e+00> : vector<16xf32>
    %40 = vector.multi_reduction <add>, %39, %cst_36 [1] : vector<16x32xf32> to vector<16xf32>
    %41 = vector.shape_cast %40 : vector<16xf32> to vector<16x1xf32>
    %cst_37 = arith.constant 3.200000e+01 : f32
    %42 = vector.broadcast %cst_37 : f32 to vector<16x1xf32>
    %43 = arith.divf %41, %42 : vector<16x1xf32>
    %44 = vector.broadcast %36 : vector<16x1xf32> to vector<16x32xf32>
    %45 = arith.subf %29, %44 : vector<16x32xf32>
    %cst_38 = arith.constant 9.99999974E-6 : f32
    %46 = vector.broadcast %cst_38 : f32 to vector<16x1xf32>
    %47 = arith.addf %43, %46 : vector<16x1xf32>
    %48 = math.rsqrt %47 : vector<16x1xf32>
    %49 = vector.broadcast %48 : vector<16x1xf32> to vector<16x32xf32>
    %50 = arith.mulf %45, %49 : vector<16x32xf32>
    %51 = vector.broadcast %31 : vector<1x32xf32> to vector<16x32xf32>
    %52 = arith.mulf %50, %51 : vector<16x32xf32>
    %53 = vector.broadcast %32 : vector<1x32xf32> to vector<16x32xf32>
    %54 = arith.addf %52, %53 : vector<16x32xf32>
    %55 = arith.truncf %54 : vector<16x32xf32> to vector<16x32xbf16>
    %c0_39 = arith.constant 0 : index
    %c0_40 = arith.constant 0 : index
    %56 = vector.load %arg8[%c0_39, %c0_40] : memref<16x32xbf16, #tpu.memory_space<vmem>>, vector<16x32xbf16>
    tpu.vector_store %arg8[%c0_39, %c0_40], %55 {strides = array<i32>} : memref<16x32xbf16, #tpu.memory_space<vmem>>, vector<16x32xbf16>,
    return
  }
  func.func @transform_0(%arg0: i32) -> (i32, i32, i32) {
    %c0_i32 = arith.constant 0 : i32
    %c0_i32_0 = arith.constant 0 : i32
    %c0_i32_1 = arith.constant 0 : i32
    return %c0_i32, %arg0, %c0_i32_0 : i32, i32, i32
  }
  func.func @transform_1(%arg0: i32) -> (i32, i32, i32) {
    %c0_i32 = arith.constant 0 : i32
    %c0_i32_0 = arith.constant 0 : i32
    %c0_i32_1 = arith.constant 0 : i32
    %c0_i32_2 = arith.constant 0 : i32
    return %c0_i32, %c0_i32_0, %c0_i32_1 : i32, i32, i32
  }
  func.func @transform_2(%arg0: i32) -> (i32, i32) {
    %c0_i32 = arith.constant 0 : i32
    %c0_i32_0 = arith.constant 0 : i32
    %c0_i32_1 = arith.constant 0 : i32
    return %c0_i32, %c0_i32_0 : i32, i32
  }
  func.func @transform_3(%arg0: i32) -> (i32, i32) {
    %c0_i32 = arith.constant 0 : i32
    %c0_i32_0 = arith.constant 0 : i32
    return %arg0, %c0_i32 : i32, i32
  }
  func.func @transform_4(%arg0: i32) -> (i32, i32) {
    %c0_i32 = arith.constant 0 : i32
    %c0_i32_0 = arith.constant 0 : i32
    %c0_i32_1 = arith.constant 0 : i32
    return %c0_i32, %c0_i32_0 : i32, i32
  }
  func.func @transform_5(%arg0: i32) -> (i32, i32) {
    %c0_i32 = arith.constant 0 : i32
    %c0_i32_0 = arith.constant 0 : i32
    %c0_i32_1 = arith.constant 0 : i32
    return %c0_i32, %c0_i32_0 : i32, i32
  }
  func.func @transform_6(%arg0: i32) -> (i32, i32) {
    %c0_i32 = arith.constant 0 : i32
    %c0_i32_0 = arith.constant 0 : i32
    return %arg0, %c0_i32 : i32, i32
  }
  func.func @transform_7(%arg0: i32) -> (i32, i32) {
    %c0_i32 = arith.constant 0 : i32
    %c0_i32_0 = arith.constant 0 : i32
    return %arg0, %c0_i32 : i32, i32
  }
}

module attributes {stable_mosaic.version = 11 : i64} {
  func.func @_mm_gelu_kernel(%arg0: i32, %arg1: i32, %arg2: memref<16x32xbf16, #tpu.memory_space<vmem>>, %arg3: memref<32x128xbf16, #tpu.memory_space<vmem>>, %arg4: memref<1x128xf32, #tpu.memory_space<vmem>>, %arg5: memref<16x128xbf16, #tpu.memory_space<vmem>>) attributes {dimension_semantics = [#tpu.dimension_semantics<parallel>, #tpu.dimension_semantics<parallel>], iteration_bounds = array<i64: 1, 1>, scalar_prefetch = 0 : i64, scratch_operands = 0 : i64, tpu.core_type = #tpu.core_type<tc>, window_params = [{transform_indices = @transform_0, window_bounds = array<i64: 16, 32>}, {transform_indices = @transform_1, window_bounds = array<i64: 32, 128>}, {transform_indices = @transform_2, window_bounds = array<i64: 1, 128>}, {transform_indices = @transform_3, window_bounds = array<i64: 16, 128>}]} {
    %c0 = arith.constant 0 : index
    %c0_0 = arith.constant 0 : index
    %0 = vector.load %arg2[%c0, %c0_0] : memref<16x32xbf16, #tpu.memory_space<vmem>>, vector<16x32xbf16>
    %c0_1 = arith.constant 0 : index
    %c0_2 = arith.constant 0 : index
    %1 = vector.load %arg3[%c0_1, %c0_2] : memref<32x128xbf16, #tpu.memory_space<vmem>>, vector<32x128xbf16>
    %cst = arith.constant dense<0.000000e+00> : vector<16x128xf32>
    %2 = tpu.matmul %0, %1, %cst {dimension_numbers = #tpu.dot_dimension_numbers<[1], [0], [0], [1], [0, 0, 1, 1], [], []>} : vector<16x32xbf16>, vector<32x128xbf16>, vector<16x128xf32> -> vector<16x128xf32>
    %c0_3 = arith.constant 0 : index
    %c0_4 = arith.constant 0 : index
    %3 = vector.load %arg4[%c0_3, %c0_4] : memref<1x128xf32, #tpu.memory_space<vmem>>, vector<1x128xf32>
    %4 = vector.broadcast %3 : vector<1x128xf32> to vector<16x128xf32>
    %5 = arith.addf %2, %4 : vector<16x128xf32>
    %cst_5 = arith.constant 5.000000e-01 : f32
    %6 = vector.broadcast %cst_5 : f32 to vector<16x128xf32>
    %7 = arith.mulf %6, %5 : vector<16x128xf32>
    %cst_6 = arith.constant 0.707106769 : f32
    %8 = vector.broadcast %cst_6 : f32 to vector<16x128xf32>
    %9 = arith.mulf %5, %8 : vector<16x128xf32>
    %10 = math.erf %9 : vector<16x128xf32>
    %cst_7 = arith.constant 1.000000e+00 : f32
    %11 = vector.broadcast %cst_7 : f32 to vector<16x128xf32>
    %12 = arith.addf %11, %10 : vector<16x128xf32>
    %13 = arith.mulf %7, %12 : vector<16x128xf32>
    %14 = arith.truncf %13 : vector<16x128xf32> to vector<16x128xbf16>
    %c0_8 = arith.constant 0 : index
    %c0_9 = arith.constant 0 : index
    %15 = vector.load %arg5[%c0_8, %c0_9] : memref<16x128xbf16, #tpu.memory_space<vmem>>, vector<16x128xbf16>
    tpu.vector_store %arg5[%c0_8, %c0_9], %14 {strides = array<i32>} : memref<16x128xbf16, #tpu.memory_space<vmem>>, vector<16x128xbf16>,
    return
  }
  func.func @transform_0(%arg0: i32, %arg1: i32) -> (i32, i32) {
    %c0_i32 = arith.constant 0 : i32
    %c0_i32_0 = arith.constant 0 : i32
    return %arg0, %c0_i32 : i32, i32
  }
  func.func @transform_1(%arg0: i32, %arg1: i32) -> (i32, i32) {
    %c0_i32 = arith.constant 0 : i32
    %c0_i32_0 = arith.constant 0 : i32
    return %c0_i32, %arg1 : i32, i32
  }
  func.func @transform_2(%arg0: i32, %arg1: i32) -> (i32, i32) {
    %c0_i32 = arith.constant 0 : i32
    %c0_i32_0 = arith.constant 0 : i32
    return %c0_i32, %arg1 : i32, i32
  }
  func.func @transform_3(%arg0: i32, %arg1: i32) -> (i32, i32) {
    %c0_i32 = arith.constant 0 : i32
    return %arg0, %arg1 : i32, i32
  }
}

module attributes {stable_mosaic.version = 11 : i64} {
  func.func @_mm_res_ln_kernel(%arg0: i32, %arg1: i32, %arg2: memref<16x128xbf16, #tpu.memory_space<vmem>>, %arg3: memref<128x32xbf16, #tpu.memory_space<vmem>>, %arg4: memref<1x32xf32, #tpu.memory_space<vmem>>, %arg5: memref<16x32xf32, #tpu.memory_space<vmem>>, %arg6: memref<1x32xf32, #tpu.memory_space<vmem>>, %arg7: memref<1x32xf32, #tpu.memory_space<vmem>>, %arg8: memref<16x32xf32, #tpu.memory_space<vmem>>, %arg9: memref<16x32xbf16, #tpu.memory_space<vmem>>, %arg10: memref<16x32xf32, #tpu.memory_space<vmem>>) attributes {dimension_semantics = [#tpu.dimension_semantics<parallel>, #tpu.dimension_semantics<arbitrary>], iteration_bounds = array<i64: 1, 1>, scalar_prefetch = 0 : i64, scratch_operands = 1 : i64, tpu.core_type = #tpu.core_type<tc>, window_params = [{transform_indices = @transform_0, window_bounds = array<i64: 16, 128>}, {transform_indices = @transform_1, window_bounds = array<i64: 128, 32>}, {pipeline_mode = #tpu.pipeline_mode<synchronous>, transform_indices = @transform_2, window_bounds = array<i64: 1, 32>}, {transform_indices = @transform_3, window_bounds = array<i64: 16, 32>}, {pipeline_mode = #tpu.pipeline_mode<synchronous>, transform_indices = @transform_4, window_bounds = array<i64: 1, 32>}, {pipeline_mode = #tpu.pipeline_mode<synchronous>, transform_indices = @transform_5, window_bounds = array<i64: 1, 32>}, {transform_indices = @transform_6, window_bounds = array<i64: 16, 32>}, {transform_indices = @transform_7, window_bounds = array<i64: 16, 32>}]} {
    %c0_i32 = arith.constant 0 : i32
    %0 = arith.cmpi eq, %arg1, %c0_i32 : i32
    %1 = arith.extui %0 : i1 to i32
    %c0_i32_0 = arith.constant 0 : i32
    %2 = arith.cmpi ne, %1, %c0_i32_0 : i32
    scf.if %2 {
      %cst_10 = arith.constant 0.000000e+00 : f32
      %12 = vector.broadcast %cst_10 : f32 to vector<16x32xf32>
      %c0_11 = arith.constant 0 : index
      %c0_12 = arith.constant 0 : index
      %13 = vector.load %arg10[%c0_11, %c0_12] : memref<16x32xf32, #tpu.memory_space<vmem>>, vector<16x32xf32>
      tpu.vector_store %arg10[%c0_11, %c0_12], %12 {strides = array<i32>} : memref<16x32xf32, #tpu.memory_space<vmem>>, vector<16x32xf32>,
    } else {
    }
    %c0 = arith.constant 0 : index
    %c0_1 = arith.constant 0 : index
    %3 = vector.load %arg10[%c0, %c0_1] : memref<16x32xf32, #tpu.memory_space<vmem>>, vector<16x32xf32>
    %c0_2 = arith.constant 0 : index
    %c0_3 = arith.constant 0 : index
    %4 = vector.load %arg2[%c0_2, %c0_3] : memref<16x128xbf16, #tpu.memory_space<vmem>>, vector<16x128xbf16>
    %c0_4 = arith.constant 0 : index
    %c0_5 = arith.constant 0 : index
    %5 = vector.load %arg3[%c0_4, %c0_5] : memref<128x32xbf16, #tpu.memory_space<vmem>>, vector<128x32xbf16>
    %cst = arith.constant dense<0.000000e+00> : vector<16x32xf32>
    %6 = tpu.matmul %4, %5, %cst {dimension_numbers = #tpu.dot_dimension_numbers<[1], [0], [0], [1], [0, 0, 1, 1], [], []>} : vector<16x128xbf16>, vector<128x32xbf16>, vector<16x32xf32> -> vector<16x32xf32>
    %7 = arith.addf %3, %6 : vector<16x32xf32>
    %c0_6 = arith.constant 0 : index
    %c0_7 = arith.constant 0 : index
    %8 = vector.load %arg10[%c0_6, %c0_7] : memref<16x32xf32, #tpu.memory_space<vmem>>, vector<16x32xf32>
    tpu.vector_store %arg10[%c0_6, %c0_7], %7 {strides = array<i32>} : memref<16x32xf32, #tpu.memory_space<vmem>>, vector<16x32xf32>,
    %c0_i32_8 = arith.constant 0 : i32
    %9 = arith.cmpi eq, %arg1, %c0_i32_8 : i32
    %10 = arith.extui %9 : i1 to i32
    %c0_i32_9 = arith.constant 0 : i32
    %11 = arith.cmpi ne, %10, %c0_i32_9 : i32
    scf.if %11 {
      %c0_10 = arith.constant 0 : index
      %c0_11 = arith.constant 0 : index
      %12 = vector.load %arg10[%c0_10, %c0_11] : memref<16x32xf32, #tpu.memory_space<vmem>>, vector<16x32xf32>
      %c0_12 = arith.constant 0 : index
      %c0_13 = arith.constant 0 : index
      %13 = vector.load %arg4[%c0_12, %c0_13] : memref<1x32xf32, #tpu.memory_space<vmem>>, vector<1x32xf32>
      %14 = vector.broadcast %13 : vector<1x32xf32> to vector<16x32xf32>
      %15 = arith.addf %12, %14 : vector<16x32xf32>
      %c0_14 = arith.constant 0 : index
      %c0_15 = arith.constant 0 : index
      %16 = vector.load %arg5[%c0_14, %c0_15] : memref<16x32xf32, #tpu.memory_space<vmem>>, vector<16x32xf32>
      %17 = arith.addf %15, %16 : vector<16x32xf32>
      %c0_16 = arith.constant 0 : index
      %c0_17 = arith.constant 0 : index
      %18 = vector.load %arg8[%c0_16, %c0_17] : memref<16x32xf32, #tpu.memory_space<vmem>>, vector<16x32xf32>
      tpu.vector_store %arg8[%c0_16, %c0_17], %17 {strides = array<i32>} : memref<16x32xf32, #tpu.memory_space<vmem>>, vector<16x32xf32>,
      %c0_18 = arith.constant 0 : index
      %c0_19 = arith.constant 0 : index
      %19 = vector.load %arg6[%c0_18, %c0_19] : memref<1x32xf32, #tpu.memory_space<vmem>>, vector<1x32xf32>
      %c0_20 = arith.constant 0 : index
      %c0_21 = arith.constant 0 : index
      %20 = vector.load %arg7[%c0_20, %c0_21] : memref<1x32xf32, #tpu.memory_space<vmem>>, vector<1x32xf32>
      %cst_22 = arith.constant dense<0.000000e+00> : vector<16xf32>
      %21 = vector.multi_reduction <add>, %17, %cst_22 [1] : vector<16x32xf32> to vector<16xf32>
      %22 = vector.shape_cast %21 : vector<16xf32> to vector<16x1xf32>
      %cst_23 = arith.constant 3.200000e+01 : f32
      %23 = vector.broadcast %cst_23 : f32 to vector<16x1xf32>
      %24 = arith.divf %22, %23 : vector<16x1xf32>
      %25 = vector.broadcast %24 : vector<16x1xf32> to vector<16x32xf32>
      %26 = arith.subf %17, %25 : vector<16x32xf32>
      %27 = arith.mulf %26, %26 : vector<16x32xf32>
      %cst_24 = arith.constant dense<0.000000e+00> : vector<16xf32>
      %28 = vector.multi_reduction <add>, %27, %cst_24 [1] : vector<16x32xf32> to vector<16xf32>
      %29 = vector.shape_cast %28 : vector<16xf32> to vector<16x1xf32>
      %cst_25 = arith.constant 3.200000e+01 : f32
      %30 = vector.broadcast %cst_25 : f32 to vector<16x1xf32>
      %31 = arith.divf %29, %30 : vector<16x1xf32>
      %32 = vector.broadcast %24 : vector<16x1xf32> to vector<16x32xf32>
      %33 = arith.subf %17, %32 : vector<16x32xf32>
      %cst_26 = arith.constant 9.99999974E-6 : f32
      %34 = vector.broadcast %cst_26 : f32 to vector<16x1xf32>
      %35 = arith.addf %31, %34 : vector<16x1xf32>
      %36 = math.rsqrt %35 : vector<16x1xf32>
      %37 = vector.broadcast %36 : vector<16x1xf32> to vector<16x32xf32>
      %38 = arith.mulf %33, %37 : vector<16x32xf32>
      %39 = vector.broadcast %19 : vector<1x32xf32> to vector<16x32xf32>
      %40 = arith.mulf %38, %39 : vector<16x32xf32>
      %41 = vector.broadcast %20 : vector<1x32xf32> to vector<16x32xf32>
      %42 = arith.addf %40, %41 : vector<16x32xf32>
      %43 = arith.truncf %42 : vector<16x32xf32> to vector<16x32xbf16>
      %c0_27 = arith.constant 0 : index
      %c0_28 = arith.constant 0 : index
      %44 = vector.load %arg9[%c0_27, %c0_28] : memref<16x32xbf16, #tpu.memory_space<vmem>>, vector<16x32xbf16>
      tpu.vector_store %arg9[%c0_27, %c0_28], %43 {strides = array<i32>} : memref<16x32xbf16, #tpu.memory_space<vmem>>, vector<16x32xbf16>,
    } else {
    }
    return
  }
  func.func @transform_0(%arg0: i32, %arg1: i32) -> (i32, i32) {
    %c0_i32 = arith.constant 0 : i32
    return %arg0, %arg1 : i32, i32
  }
  func.func @transform_1(%arg0: i32, %arg1: i32) -> (i32, i32) {
    %c0_i32 = arith.constant 0 : i32
    %c0_i32_0 = arith.constant 0 : i32
    return %arg1, %c0_i32 : i32, i32
  }
  func.func @transform_2(%arg0: i32, %arg1: i32) -> (i32, i32) {
    %c0_i32 = arith.constant 0 : i32
    %c0_i32_0 = arith.constant 0 : i32
    %c0_i32_1 = arith.constant 0 : i32
    return %c0_i32, %c0_i32_0 : i32, i32
  }
  func.func @transform_3(%arg0: i32, %arg1: i32) -> (i32, i32) {
    %c0_i32 = arith.constant 0 : i32
    %c0_i32_0 = arith.constant 0 : i32
    return %arg0, %c0_i32 : i32, i32
  }
  func.func @transform_4(%arg0: i32, %arg1: i32) -> (i32, i32) {
    %c0_i32 = arith.constant 0 : i32
    %c0_i32_0 = arith.constant 0 : i32
    %c0_i32_1 = arith.constant 0 : i32
    return %c0_i32, %c0_i32_0 : i32, i32
  }
  func.func @transform_5(%arg0: i32, %arg1: i32) -> (i32, i32) {
    %c0_i32 = arith.constant 0 : i32
    %c0_i32_0 = arith.constant 0 : i32
    %c0_i32_1 = arith.constant 0 : i32
    return %c0_i32, %c0_i32_0 : i32, i32
  }
  func.func @transform_6(%arg0: i32, %arg1: i32) -> (i32, i32) {
    %c0_i32 = arith.constant 0 : i32
    %c0_i32_0 = arith.constant 0 : i32
    return %arg0, %c0_i32 : i32, i32
  }
  func.func @transform_7(%arg0: i32, %arg1: i32) -> (i32, i32) {
    %c0_i32 = arith.constant 0 : i32
    %c0_i32_0 = arith.constant 0 : i32
    return %arg0, %c0_i32 : i32, i32
  }
}

module attributes {stable_mosaic.version = 11 : i64} {
  func.func @_mm_res_ln_kernel(%arg0: i32, %arg1: i32, %arg2: memref<16x128xbf16, #tpu.memory_space<vmem>>, %arg3: memref<128x32xbf16, #tpu.memory_space<vmem>>, %arg4: memref<1x32xf32, #tpu.memory_space<vmem>>, %arg5: memref<16x32xf32, #tpu.memory_space<vmem>>, %arg6: memref<1x32xf32, #tpu.memory_space<vmem>>, %arg7: memref<1x32xf32, #tpu.memory_space<vmem>>, %arg8: memref<16x32xf32, #tpu.memory_space<vmem>>, %arg9: memref<16x32xbf16, #tpu.memory_space<vmem>>, %arg10: memref<16x32xf32, #tpu.memory_space<vmem>>) attributes {dimension_semantics = [#tpu.dimension_semantics<parallel>, #tpu.dimension_semantics<arbitrary>], iteration_bounds = array<i64: 1, 1>, scalar_prefetch = 0 : i64, scratch_operands = 1 : i64, tpu.core_type = #tpu.core_type<tc>, window_params = [{transform_indices = @transform_0, window_bounds = array<i64: 16, 128>}, {transform_indices = @transform_1, window_bounds = array<i64: 128, 32>}, {pipeline_mode = #tpu.pipeline_mode<synchronous>, transform_indices = @transform_2, window_bounds = array<i64: 1, 32>}, {transform_indices = @transform_3, window_bounds = array<i64: 16, 32>}, {pipeline_mode = #tpu.pipeline_mode<synchronous>, transform_indices = @transform_4, window_bounds = array<i64: 1, 32>}, {pipeline_mode = #tpu.pipeline_mode<synchronous>, transform_indices = @transform_5, window_bounds = array<i64: 1, 32>}, {transform_indices = @transform_6, window_bounds = array<i64: 16, 32>}, {transform_indices = @transform_7, window_bounds = array<i64: 16, 32>}]} {
    %c0_i32 = arith.constant 0 : i32
    %0 = arith.cmpi eq, %arg1, %c0_i32 : i32
    %1 = arith.extui %0 : i1 to i32
    %c0_i32_0 = arith.constant 0 : i32
    %2 = arith.cmpi ne, %1, %c0_i32_0 : i32
    scf.if %2 {
      %cst_10 = arith.constant 0.000000e+00 : f32
      %12 = vector.broadcast %cst_10 : f32 to vector<16x32xf32>
      %c0_11 = arith.constant 0 : index
      %c0_12 = arith.constant 0 : index
      %13 = vector.load %arg10[%c0_11, %c0_12] : memref<16x32xf32, #tpu.memory_space<vmem>>, vector<16x32xf32>
      tpu.vector_store %arg10[%c0_11, %c0_12], %12 {strides = array<i32>} : memref<16x32xf32, #tpu.memory_space<vmem>>, vector<16x32xf32>,
    } else {
    }
    %c0 = arith.constant 0 : index
    %c0_1 = arith.constant 0 : index
    %3 = vector.load %arg10[%c0, %c0_1] : memref<16x32xf32, #tpu.memory_space<vmem>>, vector<16x32xf32>
    %c0_2 = arith.constant 0 : index
    %c0_3 = arith.constant 0 : index
    %4 = vector.load %arg2[%c0_2, %c0_3] : memref<16x128xbf16, #tpu.memory_space<vmem>>, vector<16x128xbf16>
    %c0_4 = arith.constant 0 : index
    %c0_5 = arith.constant 0 : index
    %5 = vector.load %arg3[%c0_4, %c0_5] : memref<128x32xbf16, #tpu.memory_space<vmem>>, vector<128x32xbf16>
    %cst = arith.constant dense<0.000000e+00> : vector<16x32xf32>
    %6 = tpu.matmul %4, %5, %cst {dimension_numbers = #tpu.dot_dimension_numbers<[1], [0], [0], [1], [0, 0, 1, 1], [], []>} : vector<16x128xbf16>, vector<128x32xbf16>, vector<16x32xf32> -> vector<16x32xf32>
    %7 = arith.addf %3, %6 : vector<16x32xf32>
    %c0_6 = arith.constant 0 : index
    %c0_7 = arith.constant 0 : index
    %8 = vector.load %arg10[%c0_6, %c0_7] : memref<16x32xf32, #tpu.memory_space<vmem>>, vector<16x32xf32>
    tpu.vector_store %arg10[%c0_6, %c0_7], %7 {strides = array<i32>} : memref<16x32xf32, #tpu.memory_space<vmem>>, vector<16x32xf32>,
    %c0_i32_8 = arith.constant 0 : i32
    %9 = arith.cmpi eq, %arg1, %c0_i32_8 : i32
    %10 = arith.extui %9 : i1 to i32
    %c0_i32_9 = arith.constant 0 : i32
    %11 = arith.cmpi ne, %10, %c0_i32_9 : i32
    scf.if %11 {
      %c0_10 = arith.constant 0 : index
      %c0_11 = arith.constant 0 : index
      %12 = vector.load %arg10[%c0_10, %c0_11] : memref<16x32xf32, #tpu.memory_space<vmem>>, vector<16x32xf32>
      %c0_12 = arith.constant 0 : index
      %c0_13 = arith.constant 0 : index
      %13 = vector.load %arg4[%c0_12, %c0_13] : memref<1x32xf32, #tpu.memory_space<vmem>>, vector<1x32xf32>
      %14 = vector.broadcast %13 : vector<1x32xf32> to vector<16x32xf32>
      %15 = arith.addf %12, %14 : vector<16x32xf32>
      %c0_14 = arith.constant 0 : index
      %c0_15 = arith.constant 0 : index
      %16 = vector.load %arg5[%c0_14, %c0_15] : memref<16x32xf32, #tpu.memory_space<vmem>>, vector<16x32xf32>
      %17 = arith.addf %15, %16 : vector<16x32xf32>
      %c0_16 = arith.constant 0 : index
      %c0_17 = arith.constant 0 : index
      %18 = vector.load %arg8[%c0_16, %c0_17] : memref<16x32xf32, #tpu.memory_space<vmem>>, vector<16x32xf32>
      tpu.vector_store %arg8[%c0_16, %c0_17], %17 {strides = array<i32>} : memref<16x32xf32, #tpu.memory_space<vmem>>, vector<16x32xf32>,
      %c0_18 = arith.constant 0 : index
      %c0_19 = arith.constant 0 : index
      %19 = vector.load %arg6[%c0_18, %c0_19] : memref<1x32xf32, #tpu.memory_space<vmem>>, vector<1x32xf32>
      %c0_20 = arith.constant 0 : index
      %c0_21 = arith.constant 0 : index
      %20 = vector.load %arg7[%c0_20, %c0_21] : memref<1x32xf32, #tpu.memory_space<vmem>>, vector<1x32xf32>
      %cst_22 = arith.constant dense<0.000000e+00> : vector<16xf32>
      %21 = vector.multi_reduction <add>, %17, %cst_22 [1] : vector<16x32xf32> to vector<16xf32>
      %22 = vector.shape_cast %21 : vector<16xf32> to vector<16x1xf32>
      %cst_23 = arith.constant 3.200000e+01 : f32
      %23 = vector.broadcast %cst_23 : f32 to vector<16x1xf32>
      %24 = arith.divf %22, %23 : vector<16x1xf32>
      %25 = vector.broadcast %24 : vector<16x1xf32> to vector<16x32xf32>
      %26 = arith.subf %17, %25 : vector<16x32xf32>
      %27 = arith.mulf %26, %26 : vector<16x32xf32>
      %cst_24 = arith.constant dense<0.000000e+00> : vector<16xf32>
      %28 = vector.multi_reduction <add>, %27, %cst_24 [1] : vector<16x32xf32> to vector<16xf32>
      %29 = vector.shape_cast %28 : vector<16xf32> to vector<16x1xf32>
      %cst_25 = arith.constant 3.200000e+01 : f32
      %30 = vector.broadcast %cst_25 : f32 to vector<16x1xf32>
      %31 = arith.divf %29, %30 : vector<16x1xf32>
      %32 = vector.broadcast %24 : vector<16x1xf32> to vector<16x32xf32>
      %33 = arith.subf %17, %32 : vector<16x32xf32>
      %cst_26 = arith.constant 9.99999974E-6 : f32
      %34 = vector.broadcast %cst_26 : f32 to vector<16x1xf32>
      %35 = arith.addf %31, %34 : vector<16x1xf32>
      %36 = math.rsqrt %35 : vector<16x1xf32>
      %37 = vector.broadcast %36 : vector<16x1xf32> to vector<16x32xf32>
      %38 = arith.mulf %33, %37 : vector<16x32xf32>
      %39 = vector.broadcast %19 : vector<1x32xf32> to vector<16x32xf32>
      %40 = arith.mulf %38, %39 : vector<16x32xf32>
      %41 = vector.broadcast %20 : vector<1x32xf32> to vector<16x32xf32>
      %42 = arith.addf %40, %41 : vector<16x32xf32>
      %43 = arith.truncf %42 : vector<16x32xf32> to vector<16x32xbf16>
      %c0_27 = arith.constant 0 : index
      %c0_28 = arith.constant 0 : index
      %44 = vector.load %arg9[%c0_27, %c0_28] : memref<16x32xbf16, #tpu.memory_space<vmem>>, vector<16x32xbf16>
      tpu.vector_store %arg9[%c0_27, %c0_28], %43 {strides = array<i32>} : memref<16x32xbf16, #tpu.memory_space<vmem>>, vector<16x32xbf16>,
    } else {
    }
    return
  }
  func.func @transform_0(%arg0: i32, %arg1: i32) -> (i32, i32) {
    %c0_i32 = arith.constant 0 : i32
    return %arg0, %arg1 : i32, i32
  }
  func.func @transform_1(%arg0: i32, %arg1: i32) -> (i32, i32) {
    %c0_i32 = arith.constant 0 : i32
    %c0_i32_0 = arith.constant 0 : i32
    return %arg1, %c0_i32 : i32, i32
  }
  func.func @transform_2(%arg0: i32, %arg1: i32) -> (i32, i32) {
    %c0_i32 = arith.constant 0 : i32
    %c0_i32_0 = arith.constant 0 : i32
    %c0_i32_1 = arith.constant 0 : i32
    return %c0_i32, %c0_i32_0 : i32, i32
  }
  func.func @transform_3(%arg0: i32, %arg1: i32) -> (i32, i32) {
    %c0_i32 = arith.constant 0 : i32
    %c0_i32_0 = arith.constant 0 : i32
    return %arg0, %c0_i32 : i32, i32
  }
  func.func @transform_4(%arg0: i32, %arg1: i32) -> (i32, i32) {
    %c0_i32 = arith.constant 0 : i32
    %c0_i32_0 = arith.constant 0 : i32
    %c0_i32_1 = arith.constant 0 : i32
    return %c0_i32, %c0_i32_0 : i32, i32
  }
  func.func @transform_5(%arg0: i32, %arg1: i32) -> (i32, i32) {
    %c0_i32 = arith.constant 0 : i32
    %c0_i32_0 = arith.constant 0 : i32
    %c0_i32_1 = arith.constant 0 : i32
    return %c0_i32, %c0_i32_0 : i32, i32
  }
  func.func @transform_6(%arg0: i32, %arg1: i32) -> (i32, i32) {
    %c0_i32 = arith.constant 0 : i32
    %c0_i32_0 = arith.constant 0 : i32
    return %arg0, %c0_i32 : i32, i32
  }
  func.func @transform_7(%arg0: i32, %arg1: i32) -> (i32, i32) {
    %c0_i32 = arith.constant 0 : i32
    %c0_i32_0 = arith.constant 0 : i32
    return %arg0, %c0_i32 : i32, i32
  }
}

</mosaic_0001>

<llo_original>
// kernel: bert_forward.11
$region0: #{bert_forward.11}
  #allocation0 [shape = 'u32[]', space=smem, size = 0x4, offset = 0x4, fixed_abs, tag = 'smem constant byte address 0x4 - core index']
  #allocation1 [shape = 'u32[144,128]{1,0:T(1,128)}', space=vmem, size = 0x12000, scoped, tag = 'internal scratch']
  %s0 = inlined_call_operand.vmem [shape: f32[16,32], index: 0, kind: input, shape index: {}]
  %s1 = inlined_call_operand.vmem [shape: f32[1,32], index: 1, kind: input, shape index: {}]
  %s2 = inlined_call_operand.vmem [shape: f32[1,32], index: 2, kind: input, shape index: {}]
  %s3 = inlined_call_operand.vmem [shape: bf16[16,32], index: 3, kind: output, shape index: {}]
  %s4 = sld [smem:[#allocation0]]
  $region22: #{bert_forward.11} parent=0
    _
  %s6 = ssub.s32 1, %s4
  %s7 = scalar_select 0, %s6, %s4
  // Predicated region
  $region2: #{bert_forward.11} parent=0 // pred_check
    _
  $region3: #{bert_forward.11} parent=0 // pred_check_branch
    %9 = sbr.rel (0) target = $region5
  $region4: #{bert_forward.11} parent=0 // pred_region
    _
  $region5: #{bert_forward.11} parent=0 // pred_fallthru
    _
  // Predicated region
  $region6: #{bert_forward.11} parent=0 // pred_check
    _
  $region7: #{bert_forward.11} parent=0 // pred_check_branch
    %11 = sbr.rel (0) target = $region9
  $region8: #{bert_forward.11} parent=0 // pred_region
    _
  $region9: #{bert_forward.11} parent=0 // pred_fallthru
    _
  // Predicated region
  $region10: #{bert_forward.11} parent=0 // pred_check
    _
  $region11: #{bert_forward.11} parent=0 // pred_check_branch
    %13 = sbr.rel (0) target = $region13
  $region12: #{bert_forward.11} parent=0 // pred_region
    _
  $region13: #{bert_forward.11} parent=0 // pred_fallthru
    _
  %v14 = vld [vmem:[%s0] sm:$0xff]
  %v15 = vld [vmem:[%s0 + $0x8] sm:$0xff]
  %v16 = vld [vmem:[%s1] sm:$0x1]
  %v17 = vld [vmem:[%s2] sm:$0x1]
  %vm18 = vcmask 261120
  %v19 = vsel %vm18, %v14, 0.0
  %20 = vadd.xlane.f32.xlu0 %v19
  %v21 = vpop.xlane.xlu0 %20
  %v22 = vsel %vm18, %v15, 0.0
  %23 = vadd.xlane.f32.xlu0 %v22
  %v24 = vpop.xlane.xlu0 %23
  %v25 = vrcp.pop 32.0
  %v26 = vmul.f32 %v21, %v25
  %v27 = vmul.f32 %v24, %v25
  %v28 = vsub.f32 %v14, %v26
  %v29 = vsub.f32 %v15, %v27
  %v30 = vmul.f32 %v28, %v28
  %v31 = vmul.f32 %v29, %v29
  %v32 = vsel %vm18, %v30, 0.0
  %33 = vadd.xlane.f32.xlu0 %v32
  %v34 = vpop.xlane.xlu0 %33
  %v35 = vsel %vm18, %v31, 0.0
  %36 = vadd.xlane.f32.xlu0 %v35
  %v37 = vpop.xlane.xlu0 %36
  %v38 = vmul.f32 %v34, %v25
  %v39 = vmul.f32 %v37, %v25
  %v40 = vadd.f32 %v38, 1e-05
  %v41 = vadd.f32 %v39, 1e-05
  %v42 = vrsqrt.pop %v40
  %v43 = vrsqrt.pop %v41
  %v44 = vmul.f32 %v28, %v42
  %v45 = vmul.f32 %v29, %v43
  %v47 = vlaneseq
  %v48 = vshrl.u32 %v47, 7
  %v49 = vsub.s32 0, %v48
  %v50 = vrot.slane %v16, %v49
  %v52 = vmul.f32 %v44, %v50
  %v53 = vmul.f32 %v45, %v50
  %v55 = vlaneseq
  %v56 = vshrl.u32 %v55, 7
  %v57 = vsub.s32 0, %v56
  %v58 = vrot.slane %v17, %v57
  %v60 = vadd.f32 %v52, %v58
  %v61 = vadd.f32 %v53, %v58
  %v62 = vpack.c.bf16 %v61, %v60
  %v64 = vunpack.c.l.b16 %v62
  %v65 = vunpack.c.h.b16 %v62
  %v66 = vpack.c.b16 %v64, %v64
  %v67 = vpack.c.b16 %v65, %v65
  %vm70 = vcmask 257024
  %71 = vst.msk [vmem:[%s3] sm:$0xf] %vm70, %v66
  %72 = vst.msk [vmem:[%s3 + $0x4] sm:$0xf] %vm70, %v67
  // Predicated region
  $region14: #{bert_forward.11} parent=0 // pred_check
    _
  $region15: #{bert_forward.11} parent=0 // pred_check_branch
    %74 = sbr.rel (0) target = $region17
  $region16: #{bert_forward.11} parent=0 // pred_region
    _
  $region17: #{bert_forward.11} parent=0 // pred_fallthru
    _
  // Predicated region
  $region18: #{bert_forward.11} parent=0 // pred_check
    _
  $region19: #{bert_forward.11} parent=0 // pred_check_branch
    %76 = sbr.rel (0) target = $region21
  $region20: #{bert_forward.11} parent=0 // pred_region
    _
  $region21: #{bert_forward.11} parent=0 // pred_fallthru
    _

// kernel: bert_forward.14
$region0: #{bert_forward.14}
  #allocation0 [shape = 'u32[]', space=smem, size = 0x4, offset = 0x4, fixed_abs, tag = 'smem constant byte address 0x4 - core index']
  #allocation1 [shape = 'u32[144,128]{1,0:T(1,128)}', space=vmem, size = 0x12000, scoped, tag = 'internal scratch']
  %s0 = inlined_call_operand.vmem [shape: bf16[4,16,8], index: 0, kind: input, shape index: {}]
  %s1 = inlined_call_operand.vmem [shape: bf16[4,8,32], index: 1, kind: input, shape index: {}]
  %s2 = inlined_call_operand.vmem [shape: f32[1,32], index: 2, kind: input, shape index: {}]
  %s3 = inlined_call_operand.vmem [shape: f32[16,32], index: 3, kind: input, shape index: {}, may-alias: {3,6}]
  %s4 = inlined_call_operand.vmem [shape: f32[1,32], index: 4, kind: input, shape index: {}]
  %s5 = inlined_call_operand.vmem [shape: f32[1,32], index: 5, kind: input, shape index: {}]
  %s6 = inlined_call_operand.vmem [shape: f32[16,32], index: 6, kind: output, shape index: {0}, may-alias: {3,6}]
  %s7 = inlined_call_operand.vmem [shape: bf16[16,32], index: 7, kind: output, shape index: {1}]
  %8 = xla_tuple %s6, %s7
  %s9 = sld [smem:[#allocation0]]
  $region42: #{bert_forward.14} parent=0
    _
  %s11 = ssub.s32 1, %s9
  %s12 = scalar_select 0, %s11, %s9
  // Predicated region
  $region2: #{bert_forward.14} parent=0 // pred_check
    _
  $region3: #{bert_forward.14} parent=0 // pred_check_branch
    %14 = sbr.rel (0) target = $region5
  $region4: #{bert_forward.14} parent=0 // pred_region
    _
  $region5: #{bert_forward.14} parent=0 // pred_fallthru
    _
  // Predicated region
  $region6: #{bert_forward.14} parent=0 // pred_check
    _
  $region7: #{bert_forward.14} parent=0 // pred_check_branch
    %16 = sbr.rel (0) target = $region9
  $region8: #{bert_forward.14} parent=0 // pred_region
    _
  $region9: #{bert_forward.14} parent=0 // pred_fallthru
    _
  // Predicated region
  $region10: #{bert_forward.14} parent=0 // pred_check
    _
  $region11: #{bert_forward.14} parent=0 // pred_check_branch
    %18 = sbr.rel (0) target = $region13
  $region12: #{bert_forward.14} parent=0 // pred_region
    _
  $region13: #{bert_forward.14} parent=0 // pred_fallthru
    _
  // Predicated region
  $region14: #{bert_forward.14} parent=0 // pred_check
    _
  $region15: #{bert_forward.14} parent=0 // pred_check_branch
    %20 = sbr.rel (0) target = $region17
  $region16: #{bert_forward.14} parent=0 // pred_region
    _
  $region17: #{bert_forward.14} parent=0 // pred_fallthru
    _
  // Predicated region
  $region18: #{bert_forward.14} parent=0 // pred_check
    _
  $region19: #{bert_forward.14} parent=0 // pred_check_branch
    %22 = sbr.rel (0) target = $region21
  $region20: #{bert_forward.14} parent=0 // pred_region
    _
  $region21: #{bert_forward.14} parent=0 // pred_fallthru
    _
  // Predicated region
  $region22: #{bert_forward.14} parent=0 // pred_check
    _
  $region23: #{bert_forward.14} parent=0 // pred_check_branch
    %24 = sbr.rel (0) target = $region25
  $region24: #{bert_forward.14} parent=0 // pred_region
    _
  $region25: #{bert_forward.14} parent=0 // pred_fallthru
    _
  %v26 = vld [vmem:[%s0] sm:$0xf]
  %v27 = vld [vmem:[%s0 + $0x4] sm:$0xf]
  %v28 = vld [vmem:[%s1] sm:$0xf]
  %s29 = scalar_lea.vmem %s0, 8
  %v30 = vld [vmem:[%s29] sm:$0xf]
  %v31 = vld [vmem:[%s29 + $0x4] sm:$0xf]
  %s32 = scalar_lea.vmem %s1, 4
  %v33 = vld [vmem:[%s32] sm:$0xf]
  %v36 = vunpack.c.l.b16 %v30
  %v37 = vunpack.c.l.b16 %v31
  %v38 = vpack.c.b16 %v37, %v36
  %vm39 = vcmask 64512
  %v41 = vsel %vm39, %v38, 0
  %vm43 = vcmask 1043456
  %v45 = vsel %vm43, %v33, 0
  %47 = vmatprep.subr.bf16.mxu0 0
  %48 = vmatpush1.bf16.msra.mxu0 %v45
  %49 = vmatprep.subr.bf16.mxu0 0
  %50 = vmatpush1.bf16.msra.mxu0 0
  %51 = vmatprep.subr.bf16.mxu0 0
  %52 = vmatpush1.bf16.msra.mxu0 0
  %53 = vmatprep.subr.bf16.mxu0 0
  %54 = vmatpush1.bf16.msra.mxu0 0
  %55 = vmatprep.subr.bf16.mxu0 0
  %56 = vmatpush1.bf16.msra.mxu0 0
  %57 = vmatprep.subr.bf16.mxu0 0
  %58 = vmatpush1.bf16.msra.mxu0 0
  %59 = vmatprep.subr.bf16.mxu0 0
  %60 = vmatpush1.bf16.msra.mxu0 0
  %61 = vmatprep.subr.bf16.mxu0 0
  %62 = vmatpush1.bf16.msra.mxu0 0
  %63 = vmatprep.subr.bf16.mxu0 0
  %64 = vmatpush1.bf16.msra.mxu0 0
  %65 = vmatprep.subr.bf16.mxu0 0
  %66 = vmatpush1.bf16.msra.mxu0 0
  %67 = vmatprep.subr.bf16.mxu0 0
  %68 = vmatpush1.bf16.msra.mxu0 0
  %69 = vmatprep.subr.bf16.mxu0 0
  %70 = vmatpush1.bf16.msra.mxu0 0
  %71 = vmatprep.subr.bf16.mxu0 0
  %72 = vmatpush1.bf16.msra.mxu0 0
  %73 = vmatprep.subr.bf16.mxu0 0
  %74 = vmatpush1.bf16.msra.mxu0 0
  %75 = vmatprep.subr.bf16.mxu0 0
  %76 = vmatpush1.bf16.msra.mxu0 0
  %77 = vmatprep.subr.bf16.mxu0 0
  %78 = vmatpush1.bf16.msra.mxu0 0
  %79 = vmatprep.mubr.bf16.mxu0 0
  %80 = vmatmul.mubr.bf16.gmra.mrb[0].mxu0 %v41
  %v81 = vpop.f32.mrb[0].mxu0
  %v82 = vadd.f32 0.0, %v81
  %v83 = vpop.f32.mrb[0].mxu0
  %v84 = vpop.f32.mrb[0].mxu0
  %v85 = vadd.f32 0.0, %v84
  %v86 = vpop.f32.mrb[0].mxu0
  %87 = vdwg.mxu0
  %v90 = vunpack.c.l.b16 %v26
  %v91 = vunpack.c.l.b16 %v27
  %v92 = vpack.c.b16 %v91, %v90
  %v94 = vsel %vm39, %v92, 0
  %v97 = vsel %vm43, %v28, 0
  %99 = vmatprep.subr.bf16.mxu0 0
  %100 = vmatpush1.bf16.msra.mxu0 %v97
  %101 = vmatprep.subr.bf16.mxu0 0
  %102 = vmatpush1.bf16.msra.mxu0 0
  %103 = vmatprep.subr.bf16.mxu0 0
  %104 = vmatpush1.bf16.msra.mxu0 0
  %105 = vmatprep.subr.bf16.mxu0 0
  %106 = vmatpush1.bf16.msra.mxu0 0
  %107 = vmatprep.subr.bf16.mxu0 0
  %108 = vmatpush1.bf16.msra.mxu0 0
  %109 = vmatprep.subr.bf16.mxu0 0
  %110 = vmatpush1.bf16.msra.mxu0 0
  %111 = vmatprep.subr.bf16.mxu0 0
  %112 = vmatpush1.bf16.msra.mxu0 0
  %113 = vmatprep.subr.bf16.mxu0 0
  %114 = vmatpush1.bf16.msra.mxu0 0
  %115 = vmatprep.subr.bf16.mxu0 0
  %116 = vmatpush1.bf16.msra.mxu0 0
  %117 = vmatprep.subr.bf16.mxu0 0
  %118 = vmatpush1.bf16.msra.mxu0 0
  %119 = vmatprep.subr.bf16.mxu0 0
  %120 = vmatpush1.bf16.msra.mxu0 0
  %121 = vmatprep.subr.bf16.mxu0 0
  %122 = vmatpush1.bf16.msra.mxu0 0
  %123 = vmatprep.subr.bf16.mxu0 0
  %124 = vmatpush1.bf16.msra.mxu0 0
  %125 = vmatprep.subr.bf16.mxu0 0
  %126 = vmatpush1.bf16.msra.mxu0 0
  %127 = vmatprep.subr.bf16.mxu0 0
  %128 = vmatpush1.bf16.msra.mxu0 0
  %129 = vmatprep.subr.bf16.mxu0 0
  %130 = vmatpush1.bf16.msra.mxu0 0
  %131 = vmatprep.mubr.bf16.mxu0 0
  %132 = vmatmul.mubr.bf16.gmra.mrb[0].mxu0 %v94
  %v133 = vpop.f32.mrb[0].mxu0
  %v134 = vadd.f32 %v82, %v133
  %v135 = vpop.f32.mrb[0].mxu0
  %v136 = vpop.f32.mrb[0].mxu0
  %v137 = vadd.f32 %v85, %v136
  %v138 = vpop.f32.mrb[0].mxu0
  %139 = vdwg.mxu0
  %s140 = scalar_lea.vmem %s0, 16
  %v141 = vld [vmem:[%s140] sm:$0xf]
  %v142 = vld [vmem:[%s140 + $0x4] sm:$0xf]
  %s143 = scalar_lea.vmem %s1, 8
  %v144 = vld [vmem:[%s143] sm:$0xf]
  %v147 = vunpack.c.l.b16 %v141
  %v148 = vunpack.c.l.b16 %v142
  %v149 = vpack.c.b16 %v148, %v147
  %v151 = vsel %vm39, %v149, 0
  %v154 = vsel %vm43, %v144, 0
  %156 = vmatprep.subr.bf16.mxu0 0
  %157 = vmatpush1.bf16.msra.mxu0 %v154
  %158 = vmatprep.subr.bf16.mxu0 0
  %159 = vmatpush1.bf16.msra.mxu0 0
  %160 = vmatprep.subr.bf16.mxu0 0
  %161 = vmatpush1.bf16.msra.mxu0 0
  %162 = vmatprep.subr.bf16.mxu0 0
  %163 = vmatpush1.bf16.msra.mxu0 0
  %164 = vmatprep.subr.bf16.mxu0 0
  %165 = vmatpush1.bf16.msra.mxu0 0
  %166 = vmatprep.subr.bf16.mxu0 0
  %167 = vmatpush1.bf16.msra.mxu0 0
  %168 = vmatprep.subr.bf16.mxu0 0
  %169 = vmatpush1.bf16.msra.mxu0 0
  %170 = vmatprep.subr.bf16.mxu0 0
  %171 = vmatpush1.bf16.msra.mxu0 0
  %172 = vmatprep.subr.bf16.mxu0 0
  %173 = vmatpush1.bf16.msra.mxu0 0
  %174 = vmatprep.subr.bf16.mxu0 0
  %175 = vmatpush1.bf16.msra.mxu0 0
  %176 = vmatprep.subr.bf16.mxu0 0
  %177 = vmatpush1.bf16.msra.mxu0 0
  %178 = vmatprep.subr.bf16.mxu0 0
  %179 = vmatpush1.bf16.msra.mxu0 0
  %180 = vmatprep.subr.bf16.mxu0 0
  %181 = vmatpush1.bf16.msra.mxu0 0
  %182 = vmatprep.subr.bf16.mxu0 0
  %183 = vmatpush1.bf16.msra.mxu0 0
  %184 = vmatprep.subr.bf16.mxu0 0
  %185 = vmatpush1.bf16.msra.mxu0 0
  %186 = vmatprep.subr.bf16.mxu0 0
  %187 = vmatpush1.bf16.msra.mxu0 0
  %188 = vmatprep.mubr.bf16.mxu0 0
  %189 = vmatmul.mubr.bf16.gmra.mrb[0].mxu0 %v151
  %v190 = vpop.f32.mrb[0].mxu0
  %v191 = vadd.f32 0.0, %v190
  %v192 = vpop.f32.mrb[0].mxu0
  %v193 = vpop.f32.mrb[0].mxu0
  %v194 = vadd.f32 0.0, %v193
  %v195 = vpop.f32.mrb[0].mxu0
  %196 = vdwg.mxu0
  %v197 = vadd.f32 %v134, %v191
  %v198 = vadd.f32 %v137, %v194
  %s199 = scalar_lea.vmem %s0, 24
  %v200 = vld [vmem:[%s199] sm:$0xf]
  %v201 = vld [vmem:[%s199 + $0x4] sm:$0xf]
  %s202 = scalar_lea.vmem %s1, 12
  %v203 = vld [vmem:[%s202] sm:$0xf]
  %v206 = vunpack.c.l.b16 %v200
  %v207 = vunpack.c.l.b16 %v201
  %v208 = vpack.c.b16 %v207, %v206
  %v210 = vsel %vm39, %v208, 0
  %v213 = vsel %vm43, %v203, 0
  %215 = vmatprep.subr.bf16.mxu0 0
  %216 = vmatpush1.bf16.msra.mxu0 %v213
  %217 = vmatprep.subr.bf16.mxu0 0
  %218 = vmatpush1.bf16.msra.mxu0 0
  %219 = vmatprep.subr.bf16.mxu0 0
  %220 = vmatpush1.bf16.msra.mxu0 0
  %221 = vmatprep.subr.bf16.mxu0 0
  %222 = vmatpush1.bf16.msra.mxu0 0
  %223 = vmatprep.subr.bf16.mxu0 0
  %224 = vmatpush1.bf16.msra.mxu0 0
  %225 = vmatprep.subr.bf16.mxu0 0
  %226 = vmatpush1.bf16.msra.mxu0 0
  %227 = vmatprep.subr.bf16.mxu0 0
  %228 = vmatpush1.bf16.msra.mxu0 0
  %229 = vmatprep.subr.bf16.mxu0 0
  %230 = vmatpush1.bf16.msra.mxu0 0
  %231 = vmatprep.subr.bf16.mxu0 0
  %232 = vmatpush1.bf16.msra.mxu0 0
  %233 = vmatprep.subr.bf16.mxu0 0
  %234 = vmatpush1.bf16.msra.mxu0 0
  %235 = vmatprep.subr.bf16.mxu0 0
  %236 = vmatpush1.bf16.msra.mxu0 0
  %237 = vmatprep.subr.bf16.mxu0 0
  %238 = vmatpush1.bf16.msra.mxu0 0
  %239 = vmatprep.subr.bf16.mxu0 0
  %240 = vmatpush1.bf16.msra.mxu0 0
  %241 = vmatprep.subr.bf16.mxu0 0
  %242 = vmatpush1.bf16.msra.mxu0 0
  %243 = vmatprep.subr.bf16.mxu0 0
  %244 = vmatpush1.bf16.msra.mxu0 0
  %245 = vmatprep.subr.bf16.mxu0 0
  %246 = vmatpush1.bf16.msra.mxu0 0
  %247 = vmatprep.mubr.bf16.mxu0 0
  %248 = vmatmul.mubr.bf16.gmra.mrb[0].mxu0 %v210
  %v249 = vpop.f32.mrb[0].mxu0
  %v250 = vadd.f32 0.0, %v249
  %v251 = vpop.f32.mrb[0].mxu0
  %v252 = vpop.f32.mrb[0].mxu0
  %v253 = vadd.f32 0.0, %v252
  %v254 = vpop.f32.mrb[0].mxu0
  %255 = vdwg.mxu0
  %v256 = vadd.f32 %v197, %v250
  %v257 = vadd.f32 %v198, %v253
  %v258 = vld [vmem:[%s2] sm:$0x1]
  %v260 = vlaneseq
  %v261 = vshrl.u32 %v260, 7
  %v262 = vsub.s32 0, %v261
  %v263 = vrot.slane %v258, %v262
  %v265 = vadd.f32 %v256, %v263
  %v266 = vadd.f32 %v257, %v263
  %v267 = vld [vmem:[%s3] sm:$0xff]
  %v268 = vld [vmem:[%s3 + $0x8] sm:$0xff]
  %v269 = vadd.f32 %v265, %v267
  %v270 = vadd.f32 %v266, %v268
  %vm271 = vcmask 261120
  %272 = vst.msk [vmem:[%s6] sm:$0xff] %vm271, %v269
  %273 = vst.msk [vmem:[%s6 + $0x8] sm:$0xff] %vm271, %v270
  %v274 = vld [vmem:[%s4] sm:$0x1]
  %v275 = vld [vmem:[%s5] sm:$0x1]
  %v276 = vsel %vm271, %v269, 0.0
  %277 = vadd.xlane.f32.xlu0 %v276
  %v278 = vpop.xlane.xlu0 %277
  %v279 = vsel %vm271, %v270, 0.0
  %280 = vadd.xlane.f32.xlu0 %v279
  %v281 = vpop.xlane.xlu0 %280
  %v282 = vrcp.pop 32.0
  %v283 = vmul.f32 %v278, %v282
  %v284 = vmul.f32 %v281, %v282
  %v285 = vsub.f32 %v269, %v283
  %v286 = vsub.f32 %v270, %v284
  %v287 = vmul.f32 %v285, %v285
  %v288 = vmul.f32 %v286, %v286
  %v289 = vsel %vm271, %v287, 0.0
  %290 = vadd.xlane.f32.xlu0 %v289
  %v291 = vpop.xlane.xlu0 %290
  %v292 = vsel %vm271, %v288, 0.0
  %293 = vadd.xlane.f32.xlu0 %v292
  %v294 = vpop.xlane.xlu0 %293
  %v295 = vmul.f32 %v291, %v282
  %v296 = vmul.f32 %v294, %v282
  %v297 = vadd.f32 %v295, 1e-05
  %v298 = vadd.f32 %v296, 1e-05
  %v299 = vrsqrt.pop %v297
  %v300 = vrsqrt.pop %v298
  %v301 = vmul.f32 %v285, %v299
  %v302 = vmul.f32 %v286, %v300
  %v304 = vlaneseq
  %v305 = vshrl.u32 %v304, 7
  %v306 = vsub.s32 0, %v305
  %v307 = vrot.slane %v274, %v306
  %v309 = vmul.f32 %v301, %v307
  %v310 = vmul.f32 %v302, %v307
  %v312 = vlaneseq
  %v313 = vshrl.u32 %v312, 7
  %v314 = vsub.s32 0, %v313
  %v315 = vrot.slane %v275, %v314
  %v317 = vadd.f32 %v309, %v315
  %v318 = vadd.f32 %v310, %v315
  %v319 = vpack.c.bf16 %v318, %v317
  %v321 = vunpack.c.l.b16 %v319
  %v322 = vunpack.c.h.b16 %v319
  %v323 = vpack.c.b16 %v321, %v321
  %v324 = vpack.c.b16 %v322, %v322
  %vm327 = vcmask 257024
  %328 = vst.msk [vmem:[%s7] sm:$0xf] %vm327, %v323
  %329 = vst.msk [vmem:[%s7 + $0x4] sm:$0xf] %vm327, %v324
  // Predicated region
  $region26: #{bert_forward.14} parent=0 // pred_check
    _
  $region27: #{bert_forward.14} parent=0 // pred_check_branch
    %331 = sbr.rel (0) target = $region29
  $region28: #{bert_forward.14} parent=0 // pred_region
    _
  $region29: #{bert_forward.14} parent=0 // pred_fallthru
    _
  // Predicated region
  $region30: #{bert_forward.14} parent=0 // pred_check
    _
  $region31: #{bert_forward.14} parent=0 // pred_check_branch
    %333 = sbr.rel (0) target = $region33
  $region32: #{bert_forward.14} parent=0 // pred_region
    _
  $region33: #{bert_forward.14} parent=0 // pred_fallthru
    _
  // Predicated region
  $region34: #{bert_forward.14} parent=0 // pred_check
    _
  $region35: #{bert_forward.14} parent=0 // pred_check_branch
    %335 = sbr.rel (0) target = $region37
  $region36: #{bert_forward.14} parent=0 // pred_region
    _
  $region37: #{bert_forward.14} parent=0 // pred_fallthru
    _
  // Predicated region
  $region38: #{bert_forward.14} parent=0 // pred_check
    _
  $region39: #{bert_forward.14} parent=0 // pred_check_branch
    %337 = sbr.rel (0) target = $region41
  $region40: #{bert_forward.14} parent=0 // pred_region
    _
  $region41: #{bert_forward.14} parent=0 // pred_fallthru
    _

// kernel: bert_forward.12
$region0: #{bert_forward.12}
  #allocation0 [shape = 'u32[]', space=smem, size = 0x4, offset = 0x4, fixed_abs, tag = 'smem constant byte address 0x4 - core index']
  #allocation1 [shape = 'u32[144,128]{1,0:T(1,128)}', space=vmem, size = 0x12000, scoped, tag = 'internal scratch']
  %s0 = inlined_call_operand.vmem [shape: bf16[16,32], index: 0, kind: input, shape index: {}]
  %s1 = inlined_call_operand.vmem [shape: bf16[32,32], index: 1, kind: input, shape index: {}]
  %s2 = inlined_call_operand.vmem [shape: f32[1,32], index: 2, kind: input, shape index: {}]
  %s3 = inlined_call_operand.vmem [shape: bf16[32,32], index: 3, kind: input, shape index: {}]
  %s4 = inlined_call_operand.vmem [shape: f32[1,32], index: 4, kind: input, shape index: {}]
  %s5 = inlined_call_operand.vmem [shape: bf16[32,32], index: 5, kind: input, shape index: {}]
  %s6 = inlined_call_operand.vmem [shape: f32[1,32], index: 6, kind: input, shape index: {}]
  %s7 = inlined_call_operand.vmem [shape: bf16[16,32], index: 7, kind: output, shape index: {0}]
  %s8 = inlined_call_operand.vmem [shape: bf16[16,32], index: 8, kind: output, shape index: {1}]
  %s9 = inlined_call_operand.vmem [shape: bf16[16,32], index: 9, kind: output, shape index: {2}]
  %10 = xla_tuple %s7, %s8, %s9
  %s11 = sld [smem:[#allocation0]]
  $region54: #{bert_forward.12} parent=0
    _
  %s13 = ssub.s32 1, %s11
  %s14 = scalar_select 0, %s13, %s11
  // Predicated region
  $region2: #{bert_forward.12} parent=0 // pred_check
    _
  $region3: #{bert_forward.12} parent=0 // pred_check_branch
    %16 = sbr.rel (0) target = $region5
  $region4: #{bert_forward.12} parent=0 // pred_region
    _
  $region5: #{bert_forward.12} parent=0 // pred_fallthru
    _
  // Predicated region
  $region6: #{bert_forward.12} parent=0 // pred_check
    _
  $region7: #{bert_forward.12} parent=0 // pred_check_branch
    %18 = sbr.rel (0) target = $region9
  $region8: #{bert_forward.12} parent=0 // pred_region
    _
  $region9: #{bert_forward.12} parent=0 // pred_fallthru
    _
  // Predicated region
  $region10: #{bert_forward.12} parent=0 // pred_check
    _
  $region11: #{bert_forward.12} parent=0 // pred_check_branch
    %20 = sbr.rel (0) target = $region13
  $region12: #{bert_forward.12} parent=0 // pred_region
    _
  $region13: #{bert_forward.12} parent=0 // pred_fallthru
    _
  // Predicated region
  $region14: #{bert_forward.12} parent=0 // pred_check
    _
  $region15: #{bert_forward.12} parent=0 // pred_check_branch
    %22 = sbr.rel (0) target = $region17
  $region16: #{bert_forward.12} parent=0 // pred_region
    _
  $region17: #{bert_forward.12} parent=0 // pred_fallthru
    _
  // Predicated region
  $region18: #{bert_forward.12} parent=0 // pred_check
    _
  $region19: #{bert_forward.12} parent=0 // pred_check_branch
    %24 = sbr.rel (0) target = $region21
  $region20: #{bert_forward.12} parent=0 // pred_region
    _
  $region21: #{bert_forward.12} parent=0 // pred_fallthru
    _
  // Predicated region
  $region22: #{bert_forward.12} parent=0 // pred_check
    _
  $region23: #{bert_forward.12} parent=0 // pred_check_branch
    %26 = sbr.rel (0) target = $region25
  $region24: #{bert_forward.12} parent=0 // pred_region
    _
  $region25: #{bert_forward.12} parent=0 // pred_fallthru
    _
  // Predicated region
  $region26: #{bert_forward.12} parent=0 // pred_check
    _
  $region27: #{bert_forward.12} parent=0 // pred_check_branch
    %28 = sbr.rel (0) target = $region29
  $region28: #{bert_forward.12} parent=0 // pred_region
    _
  $region29: #{bert_forward.12} parent=0 // pred_fallthru
    _
  %v30 = vld [vmem:[%s0] sm:$0xf]
  %v31 = vld [vmem:[%s0 + $0x4] sm:$0xf]
  %v32 = vld [vmem:[%s1] sm:$0xf]
  %v33 = vld [vmem:[%s1 + $0x4] sm:$0xf]
  %v34 = vld [vmem:[%s1 + $0x8] sm:$0xf]
  %v35 = vld [vmem:[%s1 + $0xc] sm:$0xf]
  %v36 = vld [vmem:[%s2] sm:$0x1]
  %v38 = vlaneseq
  %v39 = vshrl.u32 %v38, 7
  %v40 = vsub.s32 0, %v39
  %v41 = vrot.slane %v36, %v40
  %v45 = vunpack.c.l.b16 %v30
  %v46 = vunpack.c.l.b16 %v31
  %v47 = vpack.c.b16 %v46, %v45
  %v52 = vunpack.c.l.b16 %v32
  %v53 = vunpack.c.l.b16 %v33
  %v54 = vunpack.c.l.b16 %v34
  %v55 = vunpack.c.l.b16 %v35
  %v56 = vpack.c.b16 %v53, %v52
  %v57 = vpack.c.b16 %v55, %v54
  %vm60 = vcmask 261120
  %v62 = vsel %vm60, %v47, 0
  %64 = vmatprep.subr.bf16.mxu0 0
  %65 = vmatpush1.bf16.msra.mxu0 %v56
  %66 = vmatprep.subr.bf16.mxu0 0
  %67 = vmatpush1.bf16.msra.mxu0 %v57
  %68 = vmatprep.subr.bf16.mxu0 0
  %69 = vmatpush1.bf16.msra.mxu0 0
  %70 = vmatprep.subr.bf16.mxu0 0
  %71 = vmatpush1.bf16.msra.mxu0 0
  %72 = vmatprep.subr.bf16.mxu0 0
  %73 = vmatpush1.bf16.msra.mxu0 0
  %74 = vmatprep.subr.bf16.mxu0 0
  %75 = vmatpush1.bf16.msra.mxu0 0
  %76 = vmatprep.subr.bf16.mxu0 0
  %77 = vmatpush1.bf16.msra.mxu0 0
  %78 = vmatprep.subr.bf16.mxu0 0
  %79 = vmatpush1.bf16.msra.mxu0 0
  %80 = vmatprep.subr.bf16.mxu0 0
  %81 = vmatpush1.bf16.msra.mxu0 0
  %82 = vmatprep.subr.bf16.mxu0 0
  %83 = vmatpush1.bf16.msra.mxu0 0
  %84 = vmatprep.subr.bf16.mxu0 0
  %85 = vmatpush1.bf16.msra.mxu0 0
  %86 = vmatprep.subr.bf16.mxu0 0
  %87 = vmatpush1.bf16.msra.mxu0 0
  %88 = vmatprep.subr.bf16.mxu0 0
  %89 = vmatpush1.bf16.msra.mxu0 0
  %90 = vmatprep.subr.bf16.mxu0 0
  %91 = vmatpush1.bf16.msra.mxu0 0
  %92 = vmatprep.subr.bf16.mxu0 0
  %93 = vmatpush1.bf16.msra.mxu0 0
  %94 = vmatprep.subr.bf16.mxu0 0
  %95 = vmatpush1.bf16.msra.mxu0 0
  %96 = vmatprep.mubr.bf16.mxu0 0
  %97 = vmatmul.mubr.bf16.gmra.mrb[0].mxu0 %v62
  %v98 = vpop.f32.mrb[0].mxu0
  %v99 = vadd.f32 %v41, %v98
  %v100 = vpop.f32.mrb[0].mxu0
  %v101 = vpop.f32.mrb[0].mxu0
  %v102 = vadd.f32 %v41, %v101
  %v103 = vpop.f32.mrb[0].mxu0
  %104 = vdwg.mxu0
  %v105 = vpack.c.bf16 %v102, %v99
  %v107 = vunpack.c.l.b16 %v105
  %v108 = vunpack.c.h.b16 %v105
  %v109 = vpack.c.b16 %v107, %v107
  %v110 = vpack.c.b16 %v108, %v108
  %vm113 = vcmask 257024
  %114 = vst.msk [vmem:[%s7] sm:$0xf] %vm113, %v109
  %115 = vst.msk [vmem:[%s7 + $0x4] sm:$0xf] %vm113, %v110
  %v116 = vld [vmem:[%s3] sm:$0xf]
  %v117 = vld [vmem:[%s3 + $0x4] sm:$0xf]
  %v118 = vld [vmem:[%s3 + $0x8] sm:$0xf]
  %v119 = vld [vmem:[%s3 + $0xc] sm:$0xf]
  %v120 = vld [vmem:[%s4] sm:$0x1]
  %v122 = vlaneseq
  %v123 = vshrl.u32 %v122, 7
  %v124 = vsub.s32 0, %v123
  %v125 = vrot.slane %v120, %v124
  %v131 = vunpack.c.l.b16 %v116
  %v132 = vunpack.c.l.b16 %v117
  %v133 = vunpack.c.l.b16 %v118
  %v134 = vunpack.c.l.b16 %v119
  %v135 = vpack.c.b16 %v132, %v131
  %v136 = vpack.c.b16 %v134, %v133
  %139 = vmatprep.subr.bf16.mxu0 0
  %140 = vmatpush1.bf16.msra.mxu0 %v135
  %141 = vmatprep.subr.bf16.mxu0 0
  %142 = vmatpush1.bf16.msra.mxu0 %v136
  %143 = vmatprep.subr.bf16.mxu0 0
  %144 = vmatpush1.bf16.msra.mxu0 0
  %145 = vmatprep.subr.bf16.mxu0 0
  %146 = vmatpush1.bf16.msra.mxu0 0
  %147 = vmatprep.subr.bf16.mxu0 0
  %148 = vmatpush1.bf16.msra.mxu0 0
  %149 = vmatprep.subr.bf16.mxu0 0
  %150 = vmatpush1.bf16.msra.mxu0 0
  %151 = vmatprep.subr.bf16.mxu0 0
  %152 = vmatpush1.bf16.msra.mxu0 0
  %153 = vmatprep.subr.bf16.mxu0 0
  %154 = vmatpush1.bf16.msra.mxu0 0
  %155 = vmatprep.subr.bf16.mxu0 0
  %156 = vmatpush1.bf16.msra.mxu0 0
  %157 = vmatprep.subr.bf16.mxu0 0
  %158 = vmatpush1.bf16.msra.mxu0 0
  %159 = vmatprep.subr.bf16.mxu0 0
  %160 = vmatpush1.bf16.msra.mxu0 0
  %161 = vmatprep.subr.bf16.mxu0 0
  %162 = vmatpush1.bf16.msra.mxu0 0
  %163 = vmatprep.subr.bf16.mxu0 0
  %164 = vmatpush1.bf16.msra.mxu0 0
  %165 = vmatprep.subr.bf16.mxu0 0
  %166 = vmatpush1.bf16.msra.mxu0 0
  %167 = vmatprep.subr.bf16.mxu0 0
  %168 = vmatpush1.bf16.msra.mxu0 0
  %169 = vmatprep.subr.bf16.mxu0 0
  %170 = vmatpush1.bf16.msra.mxu0 0
  %171 = vmatprep.mubr.bf16.mxu0 0
  %172 = vmatmul.mubr.bf16.gmra.mrb[0].mxu0 %v62
  %v173 = vpop.f32.mrb[0].mxu0
  %v174 = vadd.f32 %v125, %v173
  %v175 = vpop.f32.mrb[0].mxu0
  %v176 = vpop.f32.mrb[0].mxu0
  %v177 = vadd.f32 %v125, %v176
  %v178 = vpop.f32.mrb[0].mxu0
  %179 = vdwg.mxu0
  %v180 = vpack.c.bf16 %v177, %v174
  %v182 = vunpack.c.l.b16 %v180
  %v183 = vunpack.c.h.b16 %v180
  %v184 = vpack.c.b16 %v182, %v182
  %v185 = vpack.c.b16 %v183, %v183
  %188 = vst.msk [vmem:[%s8] sm:$0xf] %vm113, %v184
  %189 = vst.msk [vmem:[%s8 + $0x4] sm:$0xf] %vm113, %v185
  %v190 = vld [vmem:[%s5] sm:$0xf]
  %v191 = vld [vmem:[%s5 + $0x4] sm:$0xf]
  %v192 = vld [vmem:[%s5 + $0x8] sm:$0xf]
  %v193 = vld [vmem:[%s5 + $0xc] sm:$0xf]
  %v194 = vld [vmem:[%s6] sm:$0x1]
  %v196 = vlaneseq
  %v197 = vshrl.u32 %v196, 7
  %v198 = vsub.s32 0, %v197
  %v199 = vrot.slane %v194, %v198
  %v205 = vunpack.c.l.b16 %v190
  %v206 = vunpack.c.l.b16 %v191
  %v207 = vunpack.c.l.b16 %v192
  %v208 = vunpack.c.l.b16 %v193
  %v209 = vpack.c.b16 %v206, %v205
  %v210 = vpack.c.b16 %v208, %v207
  %213 = vmatprep.subr.bf16.mxu0 0
  %214 = vmatpush1.bf16.msra.mxu0 %v209
  %215 = vmatprep.subr.bf16.mxu0 0
  %216 = vmatpush1.bf16.msra.mxu0 %v210
  %217 = vmatprep.subr.bf16.mxu0 0
  %218 = vmatpush1.bf16.msra.mxu0 0
  %219 = vmatprep.subr.bf16.mxu0 0
  %220 = vmatpush1.bf16.msra.mxu0 0
  %221 = vmatprep.subr.bf16.mxu0 0
  %222 = vmatpush1.bf16.msra.mxu0 0
  %223 = vmatprep.subr.bf16.mxu0 0
  %224 = vmatpush1.bf16.msra.mxu0 0
  %225 = vmatprep.subr.bf16.mxu0 0
  %226 = vmatpush1.bf16.msra.mxu0 0
  %227 = vmatprep.subr.bf16.mxu0 0
  %228 = vmatpush1.bf16.msra.mxu0 0
  %229 = vmatprep.subr.bf16.mxu0 0
  %230 = vmatpush1.bf16.msra.mxu0 0
  %231 = vmatprep.subr.bf16.mxu0 0
  %232 = vmatpush1.bf16.msra.mxu0 0
  %233 = vmatprep.subr.bf16.mxu0 0
  %234 = vmatpush1.bf16.msra.mxu0 0
  %235 = vmatprep.subr.bf16.mxu0 0
  %236 = vmatpush1.bf16.msra.mxu0 0
  %237 = vmatprep.subr.bf16.mxu0 0
  %238 = vmatpush1.bf16.msra.mxu0 0
  %239 = vmatprep.subr.bf16.mxu0 0
  %240 = vmatpush1.bf16.msra.mxu0 0
  %241 = vmatprep.subr.bf16.mxu0 0
  %242 = vmatpush1.bf16.msra.mxu0 0
  %243 = vmatprep.subr.bf16.mxu0 0
  %244 = vmatpush1.bf16.msra.mxu0 0
  %245 = vmatprep.mubr.bf16.mxu0 0
  %246 = vmatmul.mubr.bf16.gmra.mrb[0].mxu0 %v62
  %v247 = vpop.f32.mrb[0].mxu0
  %v248 = vadd.f32 %v199, %v247
  %v249 = vpop.f32.mrb[0].mxu0
  %v250 = vpop.f32.mrb[0].mxu0
  %v251 = vadd.f32 %v199, %v250
  %v252 = vpop.f32.mrb[0].mxu0
  %253 = vdwg.mxu0
  %v254 = vpack.c.bf16 %v251, %v248
  %v256 = vunpack.c.l.b16 %v254
  %v257 = vunpack.c.h.b16 %v254
  %v258 = vpack.c.b16 %v256, %v256
  %v259 = vpack.c.b16 %v257, %v257
  %262 = vst.msk [vmem:[%s9] sm:$0xf] %vm113, %v258
  %263 = vst.msk [vmem:[%s9 + $0x4] sm:$0xf] %vm113, %v259
  // Predicated region
  $region30: #{bert_forward.12} parent=0 // pred_check
    _
  $region31: #{bert_forward.12} parent=0 // pred_check_branch
    %265 = sbr.rel (0) target = $region33
  $region32: #{bert_forward.12} parent=0 // pred_region
    _
  $region33: #{bert_forward.12} parent=0 // pred_fallthru
    _
  // Predicated region
  $region34: #{bert_forward.12} parent=0 // pred_check
    _
  $region35: #{bert_forward.12} parent=0 // pred_check_branch
    %267 = sbr.rel (0) target = $region37
  $region36: #{bert_forward.12} parent=0 // pred_region
    _
  $region37: #{bert_forward.12} parent=0 // pred_fallthru
    _
  // Predicated region
  $region38: #{bert_forward.12} parent=0 // pred_check
    _
  $region39: #{bert_forward.12} parent=0 // pred_check_branch
    %269 = sbr.rel (0) target = $region41
  $region40: #{bert_forward.12} parent=0 // pred_region
    _
  $region41: #{bert_forward.12} parent=0 // pred_fallthru
    _
  // Predicated region
  $region42: #{bert_forward.12} parent=0 // pred_check
    _
  $region43: #{bert_forward.12} parent=0 // pred_check_branch
    %271 = sbr.rel (0) target = $region45
  $region44: #{bert_forward.12} parent=0 // pred_region
    _
  $region45: #{bert_forward.12} parent=0 // pred_fallthru
    _
  // Predicated region
  $region46: #{bert_forward.12} parent=0 // pred_check
    _
  $region47: #{bert_forward.12} parent=0 // pred_check_branch
    %273 = sbr.rel (0) target = $region49
  $region48: #{bert_forward.12} parent=0 // pred_region
    _
  $region49: #{bert_forward.12} parent=0 // pred_fallthru
    _
  // Predicated region
  $region50: #{bert_forward.12} parent=0 // pred_check
    _
  $region51: #{bert_forward.12} parent=0 // pred_check_branch
    %275 = sbr.rel (0) target = $region53
  $region52: #{bert_forward.12} parent=0 // pred_region
    _
  $region53: #{bert_forward.12} parent=0 // pred_fallthru
    _

// kernel: bert_forward.13
$region0: #{bert_forward.13}
  #allocation0 [shape = 'u32[]', space=smem, size = 0x4, offset = 0x4, fixed_abs, tag = 'smem constant byte address 0x4 - core index']
  #allocation1 [shape = 'u32[144,128]{1,0:T(1,128)}', space=vmem, size = 0x12000, scoped, tag = 'internal scratch']
  #allocation2 [shape = 'f32[4,8,1]{2,1,0:T(8,128)}', space=vmem, size = 0x4000, scoped, tag = 'scratch operand']
  #allocation3 [shape = 'f32[4,8,1]{2,1,0:T(8,128)}', space=vmem, size = 0x4000, scoped, tag = 'scratch operand']
  #allocation4 [shape = 'f32[4,8,8]{2,1,0:T(8,128)}', space=vmem, size = 0x4000, scoped, tag = 'scratch operand']
  %s0 = inlined_call_operand.vmem [shape: s32[2,1,8], index: 0, kind: input, shape index: {}]
  %s1 = inlined_call_operand.vmem [shape: bf16[2,4,8,8], index: 1, kind: input, shape index: {}]
  %s2 = inlined_call_operand.vmem [shape: bf16[2,4,8,8], index: 2, kind: input, shape index: {}]
  %s3 = inlined_call_operand.vmem [shape: bf16[2,4,8,8], index: 3, kind: input, shape index: {}]
  %s4 = inlined_call_operand.vmem [shape: bf16[4,16,8], index: 4, kind: output, shape index: {}]
  %s5 = sld [smem:[#allocation0]]
  $region94: #{bert_forward.13} parent=0
    _
  %s7 = ssub.s32 1, %s5
  %s8 = scalar_select 0, %s7, %s5
  $region1: #{bert_forward.13} parent=0
    #allocation5 [shape = 'u8[16384]{0}', space=vmem, size = 0x4000, scoped, tag = 'output window, operand 0']
    loop: start=0, step=1, limit=4
    $region2: #{bert_forward.13} parent=1 // loop_pre_header
      _
    $region3: #{bert_forward.13} parent=1 // loop_header
      %s10 = sphi 0, %s14
      %p11 = scmp.ge.s32.totalorder %s10, 4
      %s17 = sphi 0, %s43
      %s18 = sphi 0, %s39
      %s19 = sphi 0, %s35
      %s20 = sphi 0, %s31
      %s21 = sphi 0, %s17
      %s22 = sphi 0, %s18
      %s23 = sphi 0, %s19
      %s24 = sphi 0, %s20
      %s25 = sphi 0, %s21
      %s26 = sphi 0, %s22
      %s27 = sphi 0, %s23
      %s28 = sphi 0, %s24
      %s48 = sphi 0, %s50
      %s51 = sphi 0, %s48
      %s52 = sphi 0, %s51
      %s68 = sphi 0, %s52
      %s78 = sphi 0, %s80
      %s81 = sphi 0, %s78
      %s82 = sphi 0, %s81
      %s98 = sphi 0, %s82
      %s108 = sphi 0, %s110
      %s111 = sphi 0, %s108
      %s112 = sphi 0, %s111
      %s128 = sphi 0, %s112
      %s138 = sphi 0, %s140
      %s141 = sphi 0, %s138
      %s142 = sphi 0, %s141
      %s158 = sphi 0, %s142
      %s168 = sphi 0, %s170
      %s171 = sphi 0, %s168
      %s172 = sphi 0, %s171
      %s188 = sphi 0, %s172
    $region4: #{bert_forward.13} parent=1 // loop_header_branch
      %13 = sbr.rel (%p11) target = $region8
    $region5: #{bert_forward.13} parent=1 // loop_body
      %s15 = ssub.s32 %s10, 1
      %s16 = ssub.s32 %s10, 2
      %s29 = sadd.s32 1, %s20
      %p30 = scmp.ge.s32.totalorder %s29, 1
      %s31 = scalar_select %p30, 0, %s29
      %s32 = sadd.s32 1, %s19
      %s33 = scalar_select %p30, %s32, %s19
      %p34 = scmp.ge.s32.totalorder %s33, 1
      %s35 = scalar_select %p34, 0, %s33
      %s36 = sadd.s32 1, %s18
      %s37 = scalar_select %p34, %s36, %s18
      %p38 = scmp.ge.s32.totalorder %s37, 1
      %s39 = scalar_select %p38, 0, %s37
      %s40 = sadd.s32 1, %s17
      %s41 = scalar_select %p38, %s40, %s17
      %p42 = scmp.ge.s32.totalorder %s41, 2
      %s43 = scalar_select %p42, 0, %s41
      %s44 = ssub.s32 %s17, %s43
      %s45 = ssub.s32 %s20, %s31
      %s46 = sor.u32 %s44, %s45
      %p47 = scmp.eq.s32.totalorder %s46, 0
      %s49 = sadd.s32 %s48, 1
      %s50 = scalar_select %p47, %s48, %s49
      %p53 = pneg %p47
      %p54 = scmp.eq.s32.totalorder %s10, 1
      %p55 = por %p53, %p54
      %p56 = scmp.ne.s32.totalorder %s48, %s51
      %p57 = scmp.eq.s32.totalorder %s10, 0
      %p58 = por %p56, %p57
      %p59 = scmp.ne.s32.totalorder %s48, %s51
      %p60 = scmp.eq.s32.totalorder %s15, 1
      %p61 = por %p59, %p60
      %p62 = scmp.ne.s32.totalorder %s51, %s52
      %p63 = scmp.eq.s32.totalorder %s15, 0
      %p64 = por %p62, %p63
      %p65 = scmp.ne.s32.totalorder %s51, %s52
      %p66 = scmp.eq.s32.totalorder %s16, 1
      %p67 = por %p65, %p66
      %p69 = scmp.ne.s32.totalorder %s52, %s68
      %p70 = scmp.eq.s32.totalorder %s16, 0
      %p71 = por %p69, %p70
      %s72 = ssub.s32 %s17, %s43
      %s73 = ssub.s32 %s18, %s39
      %s74 = sor.u32 %s72, %s73
      %s75 = ssub.s32 %s19, %s35
      %s76 = sor.u32 %s74, %s75
      %p77 = scmp.eq.s32.totalorder %s76, 0
      %s79 = sadd.s32 %s78, 1
      %s80 = scalar_select %p77, %s78, %s79
      %p83 = pneg %p77
      %p84 = scmp.eq.s32.totalorder %s10, 1
      %p85 = por %p83, %p84
      %p86 = scmp.ne.s32.totalorder %s78, %s81
      %p87 = scmp.eq.s32.totalorder %s10, 0
      %p88 = por %p86, %p87
      %p89 = scmp.ne.s32.totalorder %s78, %s81
      %p90 = scmp.eq.s32.totalorder %s15, 1
      %p91 = por %p89, %p90
      %p92 = scmp.ne.s32.totalorder %s81, %s82
      %p93 = scmp.eq.s32.totalorder %s15, 0
      %p94 = por %p92, %p93
      %p95 = scmp.ne.s32.totalorder %s81, %s82
      %p96 = scmp.eq.s32.totalorder %s16, 1
      %p97 = por %p95, %p96
      %p99 = scmp.ne.s32.totalorder %s82, %s98
      %p100 = scmp.eq.s32.totalorder %s16, 0
      %p101 = por %p99, %p100
      %s102 = ssub.s32 %s17, %s43
      %s103 = ssub.s32 %s18, %s39
      %s104 = sor.u32 %s102, %s103
      %s105 = ssub.s32 %s20, %s31
      %s106 = sor.u32 %s104, %s105
      %p107 = scmp.eq.s32.totalorder %s106, 0
      %s109 = sadd.s32 %s108, 1
      %s110 = scalar_select %p107, %s108, %s109
      %p113 = pneg %p107
      %p114 = scmp.eq.s32.totalorder %s10, 1
      %p115 = por %p113, %p114
      %p116 = scmp.ne.s32.totalorder %s108, %s111
      %p117 = scmp.eq.s32.totalorder %s10, 0
      %p118 = por %p116, %p117
      %p119 = scmp.ne.s32.totalorder %s108, %s111
      %p120 = scmp.eq.s32.totalorder %s15, 1
      %p121 = por %p119, %p120
      %p122 = scmp.ne.s32.totalorder %s111, %s112
      %p123 = scmp.eq.s32.totalorder %s15, 0
      %p124 = por %p122, %p123
      %p125 = scmp.ne.s32.totalorder %s111, %s112
      %p126 = scmp.eq.s32.totalorder %s16, 1
      %p127 = por %p125, %p126
      %p129 = scmp.ne.s32.totalorder %s112, %s128
      %p130 = scmp.eq.s32.totalorder %s16, 0
      %p131 = por %p129, %p130
      %s132 = ssub.s32 %s17, %s43
      %s133 = ssub.s32 %s18, %s39
      %s134 = sor.u32 %s132, %s133
      %s135 = ssub.s32 %s20, %s31
      %s136 = sor.u32 %s134, %s135
      %p137 = scmp.eq.s32.totalorder %s136, 0
      %s139 = sadd.s32 %s138, 1
      %s140 = scalar_select %p137, %s138, %s139
      %p143 = pneg %p137
      %p144 = scmp.eq.s32.totalorder %s10, 1
      %p145 = por %p143, %p144
      %p146 = scmp.ne.s32.totalorder %s138, %s141
      %p147 = scmp.eq.s32.totalorder %s10, 0
      %p148 = por %p146, %p147
      %p149 = scmp.ne.s32.totalorder %s138, %s141
      %p150 = scmp.eq.s32.totalorder %s15, 1
      %p151 = por %p149, %p150
      %p152 = scmp.ne.s32.totalorder %s141, %s142
      %p153 = scmp.eq.s32.totalorder %s15, 0
      %p154 = por %p152, %p153
      %p155 = scmp.ne.s32.totalorder %s141, %s142
      %p156 = scmp.eq.s32.totalorder %s16, 1
      %p157 = por %p155, %p156
      %p159 = scmp.ne.s32.totalorder %s142, %s158
      %p160 = scmp.eq.s32.totalorder %s16, 0
      %p161 = por %p159, %p160
      %s162 = sadd.s32 %s17, %s19
      %s163 = sadd.s32 %s43, %s35
      %s164 = ssub.s32 %s18, %s39
      %s165 = ssub.s32 %s162, %s163
      %s166 = sor.u32 %s164, %s165
      %p167 = scmp.eq.s32.totalorder %s166, 0
      %s169 = sadd.s32 %s168, 1
      %s170 = scalar_select %p167, %s168, %s169
      %p173 = pneg %p167
      %p174 = scmp.eq.s32.totalorder %s10, 1
      %p175 = por %p173, %p174
      %p176 = scmp.ne.s32.totalorder %s168, %s171
      %p177 = scmp.eq.s32.totalorder %s10, 0
      %p178 = por %p176, %p177
      %p179 = scmp.ne.s32.totalorder %s168, %s171
      %p180 = scmp.eq.s32.totalorder %s15, 1
      %p181 = por %p179, %p180
      %p182 = scmp.ne.s32.totalorder %s171, %s172
      %p183 = scmp.eq.s32.totalorder %s15, 0
      %p184 = por %p182, %p183
      %p185 = scmp.ne.s32.totalorder %s171, %s172
      %p186 = scmp.eq.s32.totalorder %s16, 1
      %p187 = por %p185, %p186
      %p189 = scmp.ne.s32.totalorder %s172, %s188
      %p190 = scmp.eq.s32.totalorder %s16, 0
      %p191 = por %p189, %p190
      %p192 = scmp.le.s32.totalorder 1, %s10
      %p193 = scmp.lt.s32.totalorder %s10, 3
      %p194 = pnand %p192, %p193
      %p195 = pneg %p194
      // Predicated region
      $region9: #{bert_forward.13} parent=5 // pred_check
        _
      $region10: #{bert_forward.13} parent=5 // pred_check_branch
        %197 = sbr.rel (%p194) target = $region12
      $region11: #{bert_forward.13} parent=5 // pred_region
        %s198 = ssub.s32 %s10, 1
      $region12: #{bert_forward.13} parent=5 // pred_fallthru
        _
      %p199 = scmp.lt.s32.totalorder %s10, 2
      // Predicated region
      $region13: #{bert_forward.13} parent=5 // pred_check
        %p200 = pneg %p199
      $region14: #{bert_forward.13} parent=5 // pred_check_branch
        %202 = sbr.rel (%p200) target = $region16
      $region15: #{bert_forward.13} parent=5 // pred_region
        // Predicated region
        $region17: #{bert_forward.13} parent=15 // pred_check
          %p203 = pneg %p58
        $region18: #{bert_forward.13} parent=15 // pred_check_branch
          %205 = sbr.rel (%p203) target = $region20
        $region19: #{bert_forward.13} parent=15 // pred_region
          %p206 = scmp.lt.s32.totalorder %s17, 1
          %s207 = scalar_select %p206, %s17, 1
          %p208 = scmp.lt.s32.totalorder %s20, 0
          %s209 = scalar_select %p208, %s20, 0
          %s210 = sadd.s32 %s209, %s207
          %s211 = scalar_lea.vmem %s0, %s210
        $region20: #{bert_forward.13} parent=15 // pred_fallthru
          _
        // Predicated region
        $region21: #{bert_forward.13} parent=15 // pred_check
          %p212 = pneg %p88
        $region22: #{bert_forward.13} parent=15 // pred_check_branch
          %214 = sbr.rel (%p212) target = $region24
        $region23: #{bert_forward.13} parent=15 // pred_region
          %s215 = smul.u32 4, %s18
          %p216 = scmp.lt.s32.totalorder %s17, 1
          %s217 = scalar_select %p216, %s17, 1
          %p218 = scmp.lt.s32.totalorder %s215, 3
          %s219 = scalar_select %p218, %s215, 3
          %p220 = scmp.lt.s32.totalorder %s19, 0
          %s221 = scalar_select %p220, %s19, 0
          %s222 = sadd.s32 %s221, %s219
          %s223 = smul.addr %s217, 4
          %s224 = sadd.s32 %s222, %s223
          %s225 = smul.addr %s224, 4
          %s226 = scalar_lea.vmem %s1, %s225
          %s227 = smul.u32 4, %s18
        $region24: #{bert_forward.13} parent=15 // pred_fallthru
          _
        // Predicated region
        $region25: #{bert_forward.13} parent=15 // pred_check
          %p228 = pneg %p118
        $region26: #{bert_forward.13} parent=15 // pred_check_branch
          %230 = sbr.rel (%p228) target = $region28
        $region27: #{bert_forward.13} parent=15 // pred_region
          %s231 = smul.u32 4, %s18
          %p232 = scmp.lt.s32.totalorder %s17, 1
          %s233 = scalar_select %p232, %s17, 1
          %p234 = scmp.lt.s32.totalorder %s231, 3
          %s235 = scalar_select %p234, %s231, 3
          %p236 = scmp.lt.s32.totalorder %s20, 0
          %s237 = scalar_select %p236, %s20, 0
          %s238 = sadd.s32 %s237, %s235
          %s239 = smul.addr %s233, 4
          %s240 = sadd.s32 %s238, %s239
          %s241 = smul.addr %s240, 4
          %s242 = scalar_lea.vmem %s2, %s241
          %s243 = smul.u32 4, %s18
        $region28: #{bert_forward.13} parent=15 // pred_fallthru
          _
        // Predicated region
        $region29: #{bert_forward.13} parent=15 // pred_check
          %p244 = pneg %p148
        $region30: #{bert_forward.13} parent=15 // pred_check_branch
          %246 = sbr.rel (%p244) target = $region32
        $region31: #{bert_forward.13} parent=15 // pred_region
          %s247 = smul.u32 4, %s18
          %p248 = scmp.lt.s32.totalorder %s17, 1
          %s249 = scalar_select %p248, %s17, 1
          %p250 = scmp.lt.s32.totalorder %s247, 3
          %s251 = scalar_select %p250, %s247, 3
          %p252 = scmp.lt.s32.totalorder %s20, 0
          %s253 = scalar_select %p252, %s20, 0
          %s254 = sadd.s32 %s253, %s251
          %s255 = smul.addr %s249, 4
          %s256 = sadd.s32 %s254, %s255
          %s257 = smul.addr %s256, 4
          %s258 = scalar_lea.vmem %s3, %s257
          %s259 = smul.u32 4, %s18
        $region32: #{bert_forward.13} parent=15 // pred_fallthru
          _
      $region16: #{bert_forward.13} parent=5 // pred_fallthru
        _
      %p260 = scmp.le.s32.totalorder 1, %s10
      %p261 = scmp.lt.s32.totalorder %s10, 3
      %p262 = pnand %p260, %p261
      %p263 = pneg %p262
      // Predicated region
      $region33: #{bert_forward.13} parent=5 // pred_check
        _
      $region34: #{bert_forward.13} parent=5 // pred_check_branch
        %265 = sbr.rel (%p262) target = $region36
      $region35: #{bert_forward.13} parent=5 // pred_region
        %s266 = ssub.s32 %s10, 1
        %p267 = scmp.lt.s32.totalorder %s21, 1
        %s268 = scalar_select %p267, %s21, 1
        %p269 = scmp.lt.s32.totalorder %s24, 0
        %s270 = scalar_select %p269, %s24, 0
        %s271 = sadd.s32 %s270, %s268
        %s272 = scalar_lea.vmem %s0, %s271
        %p273 = pneg %p64
        %p274 = pneg %p61
        %s275 = smul.u32 4, %s22
        %p276 = scmp.lt.s32.totalorder %s21, 1
        %s277 = scalar_select %p276, %s21, 1
        %p278 = scmp.lt.s32.totalorder %s275, 3
        %s279 = scalar_select %p278, %s275, 3
        %p280 = scmp.lt.s32.totalorder %s23, 0
        %s281 = scalar_select %p280, %s23, 0
        %s282 = sadd.s32 %s281, %s279
        %s283 = smul.addr %s277, 4
        %s284 = sadd.s32 %s282, %s283
        %s285 = smul.addr %s284, 4
        %s286 = scalar_lea.vmem %s1, %s285
        %p287 = pneg %p94
        %p288 = pneg %p91
        %s289 = smul.u32 4, %s22
        %p290 = scmp.lt.s32.totalorder %s21, 1
        %s291 = scalar_select %p290, %s21, 1
        %p292 = scmp.lt.s32.totalorder %s289, 3
        %s293 = scalar_select %p292, %s289, 3
        %p294 = scmp.lt.s32.totalorder %s24, 0
        %s295 = scalar_select %p294, %s24, 0
        %s296 = sadd.s32 %s295, %s293
        %s297 = smul.addr %s291, 4
        %s298 = sadd.s32 %s296, %s297
        %s299 = smul.addr %s298, 4
        %s300 = scalar_lea.vmem %s2, %s299
        %p301 = pneg %p124
        %p302 = pneg %p121
        %s303 = smul.u32 4, %s22
        %p304 = scmp.lt.s32.totalorder %s21, 1
        %s305 = scalar_select %p304, %s21, 1
        %p306 = scmp.lt.s32.totalorder %s303, 3
        %s307 = scalar_select %p306, %s303, 3
        %p308 = scmp.lt.s32.totalorder %s24, 0
        %s309 = scalar_select %p308, %s24, 0
        %s310 = sadd.s32 %s309, %s307
        %s311 = smul.addr %s305, 4
        %s312 = sadd.s32 %s310, %s311
        %s313 = smul.addr %s312, 4
        %s314 = scalar_lea.vmem %s3, %s313
        %p315 = pneg %p154
        %p316 = pneg %p151
        %p317 = pneg %p184
        %p318 = pneg %p181
        %s319 = sand.u32 %s171, 1
        %s320 = sand.u32 %s171, 1
        %s321 = smul.addr %s320, 16
        %s322 = scalar_lea.vmem [#allocation5], %s321
        %p323 = scmp.lt.s32.totalorder %s21, 1
        %s324 = scalar_select %p323, %s21, 1
        %p325 = scmp.lt.s32.totalorder %s24, 0
        %s326 = scalar_select %p325, %s24, 0
        %s327 = sadd.s32 %s326, %s324
        %s328 = scalar_lea.vmem %s0, %s327
        %s329 = smul.u32 4, %s22
        %p330 = scmp.lt.s32.totalorder %s21, 1
        %s331 = scalar_select %p330, %s21, 1
        %p332 = scmp.lt.s32.totalorder %s329, 3
        %s333 = scalar_select %p332, %s329, 3
        %p334 = scmp.lt.s32.totalorder %s23, 0
        %s335 = scalar_select %p334, %s23, 0
        %s336 = sadd.s32 %s335, %s333
        %s337 = smul.addr %s331, 4
        %s338 = sadd.s32 %s336, %s337
        %s339 = smul.addr %s338, 4
        %s340 = scalar_lea.vmem %s1, %s339
        %s341 = smul.u32 4, %s22
        %s342 = smul.u32 4, %s22
        %p343 = scmp.lt.s32.totalorder %s21, 1
        %s344 = scalar_select %p343, %s21, 1
        %p345 = scmp.lt.s32.totalorder %s342, 3
        %s346 = scalar_select %p345, %s342, 3
        %p347 = scmp.lt.s32.totalorder %s24, 0
        %s348 = scalar_select %p347, %s24, 0
        %s349 = sadd.s32 %s348, %s346
        %s350 = smul.addr %s344, 4
        %s351 = sadd.s32 %s349, %s350
        %s352 = smul.addr %s351, 4
        %s353 = scalar_lea.vmem %s2, %s352
        %s354 = smul.u32 4, %s22
        %s355 = smul.u32 4, %s22
        %p356 = scmp.lt.s32.totalorder %s21, 1
        %s357 = scalar_select %p356, %s21, 1
        %p358 = scmp.lt.s32.totalorder %s355, 3
        %s359 = scalar_select %p358, %s355, 3
        %p360 = scmp.lt.s32.totalorder %s24, 0
        %s361 = scalar_select %p360, %s24, 0
        %s362 = sadd.s32 %s361, %s359
        %s363 = smul.addr %s357, 4
        %s364 = sadd.s32 %s362, %s363
        %s365 = smul.addr %s364, 4
        %s366 = scalar_lea.vmem %s3, %s365
        %s367 = smul.u32 4, %s22
        %s368 = sadd.s32 %s21, %s23
        %s369 = smul.u32 4, %s22
        %p371 = scmp.eq.s32.totalorder %s24, 0
        // Predicated region
        $region37: #{bert_forward.13} parent=35 // pred_check
          %p372 = pneg %p371
        $region38: #{bert_forward.13} parent=35 // pred_check_branch
          %374 = sbr.rel (%p372) target = $region40
        $region39: #{bert_forward.13} parent=35 // pred_region
          %vm375 = vcmask 7168
          %376 = vst.msk [vmem:[#allocation2] sm:$0xff] %vm375, -inf
          %377 = vst.msk [vmem:[#allocation2 + $0x8] sm:$0xff] %vm375, -inf
          %378 = vst.msk [vmem:[#allocation2 + $0x10] sm:$0xff] %vm375, -inf
          %379 = vst.msk [vmem:[#allocation2 + $0x18] sm:$0xff] %vm375, -inf
          %380 = vst.msk [vmem:[#allocation3] sm:$0xff] %vm375, 0.0
          %381 = vst.msk [vmem:[#allocation3 + $0x8] sm:$0xff] %vm375, 0.0
          %382 = vst.msk [vmem:[#allocation3 + $0x10] sm:$0xff] %vm375, 0.0
          %383 = vst.msk [vmem:[#allocation3 + $0x18] sm:$0xff] %vm375, 0.0
          %vm384 = vcmask 64512
          %385 = vst.msk [vmem:[#allocation4] sm:$0xff] %vm384, 0.0
          %386 = vst.msk [vmem:[#allocation4 + $0x8] sm:$0xff] %vm384, 0.0
          %387 = vst.msk [vmem:[#allocation4 + $0x10] sm:$0xff] %vm384, 0.0
          %388 = vst.msk [vmem:[#allocation4 + $0x18] sm:$0xff] %vm384, 0.0
        $region40: #{bert_forward.13} parent=35 // pred_fallthru
          _
        %v389 = vld [vmem:[%s340] sm:$0xf]
        %v390 = vld [vmem:[%s340 + $0x4] sm:$0xf]
        %v391 = vld [vmem:[%s340 + $0x8] sm:$0xf]
        %v392 = vld [vmem:[%s340 + $0xc] sm:$0xf]
        %v393 = vld [vmem:[%s353] sm:$0xf]
        %v394 = vld [vmem:[%s353 + $0x4] sm:$0xf]
        %v395 = vld [vmem:[%s353 + $0x8] sm:$0xf]
        %v396 = vld [vmem:[%s353 + $0xc] sm:$0xf]
        %v397 = vld [vmem:[%s366] sm:$0xf]
        %v398 = vld [vmem:[%s366 + $0x4] sm:$0xf]
        %v399 = vld [vmem:[%s366 + $0x8] sm:$0xf]
        %v400 = vld [vmem:[%s366 + $0xc] sm:$0xf]
        %vm401 = vcmask 64512
        %v403 = vsel %vm401, %v389, 0
        %v406 = vsel %vm401, %v393, 0
        %408 = vmatprep.subr.bf16.mxu0 0
        %409 = vmatpush1.bf16.xpose.msra.mxu0 %v406
        %410 = vmatprep.subr.bf16.mxu0 0
        %411 = vmatpush1.bf16.xpose.msra.mxu0 0
        %412 = vmatprep.subr.bf16.mxu0 0
        %413 = vmatpush1.bf16.xpose.msra.mxu0 0
        %414 = vmatprep.subr.bf16.mxu0 0
        %415 = vmatpush1.bf16.xpose.msra.mxu0 0
        %416 = vmatprep.subr.bf16.mxu0 0
        %417 = vmatpush1.bf16.xpose.msra.mxu0 0
        %418 = vmatprep.subr.bf16.mxu0 0
        %419 = vmatpush1.bf16.xpose.msra.mxu0 0
        %420 = vmatprep.subr.bf16.mxu0 0
        %421 = vmatpush1.bf16.xpose.msra.mxu0 0
        %422 = vmatprep.subr.bf16.mxu0 0
        %423 = vmatpush1.bf16.xpose.msra.mxu0 0
        %424 = vmatprep.subr.bf16.mxu0 0
        %425 = vmatpush1.bf16.xpose.msra.mxu0 0
        %426 = vmatprep.subr.bf16.mxu0 0
        %427 = vmatpush1.bf16.xpose.msra.mxu0 0
        %428 = vmatprep.subr.bf16.mxu0 0
        %429 = vmatpush1.bf16.xpose.msra.mxu0 0
        %430 = vmatprep.subr.bf16.mxu0 0
        %431 = vmatpush1.bf16.xpose.msra.mxu0 0
        %432 = vmatprep.subr.bf16.mxu0 0
        %433 = vmatpush1.bf16.xpose.msra.mxu0 0
        %434 = vmatprep.subr.bf16.mxu0 0
        %435 = vmatpush1.bf16.xpose.msra.mxu0 0
        %436 = vmatprep.subr.bf16.mxu0 0
        %437 = vmatpush1.bf16.xpose.msra.mxu0 0
        %438 = vmatprep.subr.bf16.mxu0 0
        %439 = vmatpush1.bf16.xpose.msra.mxu0 0
        %440 = vmatprep.mubr.bf16.mxu0 0
        %441 = vmatmul.mubr.bf16.gmra.mrb[0].mxu0 %v403
        %v442 = vpop.f32.mrb[0].mxu0
        %v443 = vadd.f32 0.0, %v442
        %v444 = vpop.f32.mrb[0].mxu0
        %v445 = vpop.f32.mrb[0].mxu0
        %v446 = vpop.f32.mrb[0].mxu0
        %447 = vdwg.mxu0
        %v449 = vsel %vm401, %v390, 0
        %v452 = vsel %vm401, %v394, 0
        %454 = vmatprep.subr.bf16.mxu0 0
        %455 = vmatpush1.bf16.xpose.msra.mxu0 %v452
        %456 = vmatprep.subr.bf16.mxu0 0
        %457 = vmatpush1.bf16.xpose.msra.mxu0 0
        %458 = vmatprep.subr.bf16.mxu0 0
        %459 = vmatpush1.bf16.xpose.msra.mxu0 0
        %460 = vmatprep.subr.bf16.mxu0 0
        %461 = vmatpush1.bf16.xpose.msra.mxu0 0
        %462 = vmatprep.subr.bf16.mxu0 0
        %463 = vmatpush1.bf16.xpose.msra.mxu0 0
        %464 = vmatprep.subr.bf16.mxu0 0
        %465 = vmatpush1.bf16.xpose.msra.mxu0 0
        %466 = vmatprep.subr.bf16.mxu0 0
        %467 = vmatpush1.bf16.xpose.msra.mxu0 0
        %468 = vmatprep.subr.bf16.mxu0 0
        %469 = vmatpush1.bf16.xpose.msra.mxu0 0
        %470 = vmatprep.subr.bf16.mxu0 0
        %471 = vmatpush1.bf16.xpose.msra.mxu0 0
        %472 = vmatprep.subr.bf16.mxu0 0
        %473 = vmatpush1.bf16.xpose.msra.mxu0 0
        %474 = vmatprep.subr.bf16.mxu0 0
        %475 = vmatpush1.bf16.xpose.msra.mxu0 0
        %476 = vmatprep.subr.bf16.mxu0 0
        %477 = vmatpush1.bf16.xpose.msra.mxu0 0
        %478 = vmatprep.subr.bf16.mxu0 0
        %479 = vmatpush1.bf16.xpose.msra.mxu0 0
        %480 = vmatprep.subr.bf16.mxu0 0
        %481 = vmatpush1.bf16.xpose.msra.mxu0 0
        %482 = vmatprep.subr.bf16.mxu0 0
        %483 = vmatpush1.bf16.xpose.msra.mxu0 0
        %484 = vmatprep.subr.bf16.mxu0 0
        %485 = vmatpush1.bf16.xpose.msra.mxu0 0
        %486 = vmatprep.mubr.bf16.mxu0 0
        %487 = vmatmul.mubr.bf16.gmra.mrb[0].mxu0 %v449
        %v488 = vpop.f32.mrb[0].mxu0
        %v489 = vadd.f32 0.0, %v488
        %v490 = vpop.f32.mrb[0].mxu0
        %v491 = vpop.f32.mrb[0].mxu0
        %v492 = vpop.f32.mrb[0].mxu0
        %493 = vdwg.mxu0
        %v495 = vsel %vm401, %v391, 0
        %v498 = vsel %vm401, %v395, 0
        %500 = vmatprep.subr.bf16.mxu0 0
        %501 = vmatpush1.bf16.xpose.msra.mxu0 %v498
        %502 = vmatprep.subr.bf16.mxu0 0
        %503 = vmatpush1.bf16.xpose.msra.mxu0 0
        %504 = vmatprep.subr.bf16.mxu0 0
        %505 = vmatpush1.bf16.xpose.msra.mxu0 0
        %506 = vmatprep.subr.bf16.mxu0 0
        %507 = vmatpush1.bf16.xpose.msra.mxu0 0
        %508 = vmatprep.subr.bf16.mxu0 0
        %509 = vmatpush1.bf16.xpose.msra.mxu0 0
        %510 = vmatprep.subr.bf16.mxu0 0
        %511 = vmatpush1.bf16.xpose.msra.mxu0 0
        %512 = vmatprep.subr.bf16.mxu0 0
        %513 = vmatpush1.bf16.xpose.msra.mxu0 0
        %514 = vmatprep.subr.bf16.mxu0 0
        %515 = vmatpush1.bf16.xpose.msra.mxu0 0
        %516 = vmatprep.subr.bf16.mxu0 0
        %517 = vmatpush1.bf16.xpose.msra.mxu0 0
        %518 = vmatprep.subr.bf16.mxu0 0
        %519 = vmatpush1.bf16.xpose.msra.mxu0 0
        %520 = vmatprep.subr.bf16.mxu0 0
        %521 = vmatpush1.bf16.xpose.msra.mxu0 0
        %522 = vmatprep.subr.bf16.mxu0 0
        %523 = vmatpush1.bf16.xpose.msra.mxu0 0
        %524 = vmatprep.subr.bf16.mxu0 0
        %525 = vmatpush1.bf16.xpose.msra.mxu0 0
        %526 = vmatprep.subr.bf16.mxu0 0
        %527 = vmatpush1.bf16.xpose.msra.mxu0 0
        %528 = vmatprep.subr.bf16.mxu0 0
        %529 = vmatpush1.bf16.xpose.msra.mxu0 0
        %530 = vmatprep.subr.bf16.mxu0 0
        %531 = vmatpush1.bf16.xpose.msra.mxu0 0
        %532 = vmatprep.mubr.bf16.mxu0 0
        %533 = vmatmul.mubr.bf16.gmra.mrb[0].mxu0 %v495
        %v534 = vpop.f32.mrb[0].mxu0
        %v535 = vadd.f32 0.0, %v534
        %v536 = vpop.f32.mrb[0].mxu0
        %v537 = vpop.f32.mrb[0].mxu0
        %v538 = vpop.f32.mrb[0].mxu0
        %539 = vdwg.mxu0
        %v541 = vsel %vm401, %v392, 0
        %v544 = vsel %vm401, %v396, 0
        %546 = vmatprep.subr.bf16.mxu0 0
        %547 = vmatpush1.bf16.xpose.msra.mxu0 %v544
        %548 = vmatprep.subr.bf16.mxu0 0
        %549 = vmatpush1.bf16.xpose.msra.mxu0 0
        %550 = vmatprep.subr.bf16.mxu0 0
        %551 = vmatpush1.bf16.xpose.msra.mxu0 0
        %552 = vmatprep.subr.bf16.mxu0 0
        %553 = vmatpush1.bf16.xpose.msra.mxu0 0
        %554 = vmatprep.subr.bf16.mxu0 0
        %555 = vmatpush1.bf16.xpose.msra.mxu0 0
        %556 = vmatprep.subr.bf16.mxu0 0
        %557 = vmatpush1.bf16.xpose.msra.mxu0 0
        %558 = vmatprep.subr.bf16.mxu0 0
        %559 = vmatpush1.bf16.xpose.msra.mxu0 0
        %560 = vmatprep.subr.bf16.mxu0 0
        %561 = vmatpush1.bf16.xpose.msra.mxu0 0
        %562 = vmatprep.subr.bf16.mxu0 0
        %563 = vmatpush1.bf16.xpose.msra.mxu0 0
        %564 = vmatprep.subr.bf16.mxu0 0
        %565 = vmatpush1.bf16.xpose.msra.mxu0 0
        %566 = vmatprep.subr.bf16.mxu0 0
        %567 = vmatpush1.bf16.xpose.msra.mxu0 0
        %568 = vmatprep.subr.bf16.mxu0 0
        %569 = vmatpush1.bf16.xpose.msra.mxu0 0
        %570 = vmatprep.subr.bf16.mxu0 0
        %571 = vmatpush1.bf16.xpose.msra.mxu0 0
        %572 = vmatprep.subr.bf16.mxu0 0
        %573 = vmatpush1.bf16.xpose.msra.mxu0 0
        %574 = vmatprep.subr.bf16.mxu0 0
        %575 = vmatpush1.bf16.xpose.msra.mxu0 0
        %576 = vmatprep.subr.bf16.mxu0 0
        %577 = vmatpush1.bf16.xpose.msra.mxu0 0
        %578 = vmatprep.mubr.bf16.mxu0 0
        %579 = vmatmul.mubr.bf16.gmra.mrb[0].mxu0 %v541
        %v580 = vpop.f32.mrb[0].mxu0
        %v581 = vadd.f32 0.0, %v580
        %v582 = vpop.f32.mrb[0].mxu0
        %v583 = vpop.f32.mrb[0].mxu0
        %v584 = vpop.f32.mrb[0].mxu0
        %585 = vdwg.mxu0
        %v586 = vmul.f32 %v443, 0.35355338
        %v587 = vmul.f32 %v489, 0.35355338
        %v588 = vmul.f32 %v535, 0.35355338
        %v589 = vmul.f32 %v581, 0.35355338
        %v590 = vld [vmem:[%s328] sm:$0x1]
        %vm591 = vcmp.eq.s32.totalorder %v590, 0
        %v592 = vsel %vm591, 1, 0
        %v593 = vlaneseq
        %v594 = vshrl.u32 %v593, 7
        %v595 = vsub.s32 0, %v594
        %v596 = vrot.slane %v592, %v595
        %vm597 = vcmp.eq.s32.totalorder %v596, 1
        %v598 = vsel %vm597, -1e+09, %v586
        %v599 = vsel %vm597, -1e+09, %v587
        %v600 = vsel %vm597, -1e+09, %v588
        %v601 = vsel %vm597, -1e+09, %v589
        %v602 = vld [vmem:[#allocation2] sm:$0xff]
        %v603 = vld [vmem:[#allocation2 + $0x8] sm:$0xff]
        %v604 = vld [vmem:[#allocation2 + $0x10] sm:$0xff]
        %v605 = vld [vmem:[#allocation2 + $0x18] sm:$0xff]
        %v606 = vsel %vm401, %v598, -inf
        %607 = vmax.xlane.f32.xlu0 %v606
        %v608 = vpop.xlane.xlu0 %607
        %v609 = vsel %vm401, %v599, -inf
        %610 = vmax.xlane.f32.xlu0 %v609
        %v611 = vpop.xlane.xlu0 %610
        %v612 = vsel %vm401, %v600, -inf
        %613 = vmax.xlane.f32.xlu0 %v612
        %v614 = vpop.xlane.xlu0 %613
        %v615 = vsel %vm401, %v601, -inf
        %616 = vmax.xlane.f32.xlu0 %v615
        %v617 = vpop.xlane.xlu0 %616
        %v618 = vmax.f32 %v602, %v608
        %v619 = vmax.f32 %v603, %v611
        %v620 = vmax.f32 %v604, %v614
        %v621 = vmax.f32 %v605, %v617
        %v622 = vsub.f32 %v602, %v618
        %v623 = vsub.f32 %v603, %v619
        %v624 = vsub.f32 %v604, %v620
        %v625 = vsub.f32 %v605, %v621
        %v626 = vmul.f32 %v622, 1.442695
        %v627 = vpow.pop %v626
        %v628 = vmul.f32 %v623, 1.442695
        %v629 = vpow.pop %v628
        %v630 = vmul.f32 %v624, 1.442695
        %v631 = vpow.pop %v630
        %v632 = vmul.f32 %v625, 1.442695
        %v633 = vpow.pop %v632
        %635 = vset.pattern.permute.xlu0 0
        %636 = vperm.xlu0 %635, %v618
        %v637 = vpop.permute.xlu0 %636
        %640 = vset.pattern.permute.xlu0 0
        %641 = vperm.xlu0 %640, %v619
        %v642 = vpop.permute.xlu0 %641
        %645 = vset.pattern.permute.xlu0 0
        %646 = vperm.xlu0 %645, %v620
        %v647 = vpop.permute.xlu0 %646
        %650 = vset.pattern.permute.xlu0 0
        %651 = vperm.xlu0 %650, %v621
        %v652 = vpop.permute.xlu0 %651
        %v654 = vsub.f32 %v598, %v637
        %v655 = vsub.f32 %v599, %v642
        %v656 = vsub.f32 %v600, %v647
        %v657 = vsub.f32 %v601, %v652
        %v658 = vmul.f32 %v654, 1.442695
        %v659 = vpow.pop %v658
        %v660 = vmul.f32 %v655, 1.442695
        %v661 = vpow.pop %v660
        %v662 = vmul.f32 %v656, 1.442695
        %v663 = vpow.pop %v662
        %v664 = vmul.f32 %v657, 1.442695
        %v665 = vpow.pop %v664
        %v666 = vld [vmem:[#allocation3] sm:$0xff]
        %v667 = vld [vmem:[#allocation3 + $0x8] sm:$0xff]
        %v668 = vld [vmem:[#allocation3 + $0x10] sm:$0xff]
        %v669 = vld [vmem:[#allocation3 + $0x18] sm:$0xff]
        %v670 = vmul.f32 %v627, %v666
        %v671 = vmul.f32 %v629, %v667
        %v672 = vmul.f32 %v631, %v668
        %v673 = vmul.f32 %v633, %v669
        %v674 = vsel %vm401, %v659, 0.0
        %675 = vadd.xlane.f32.xlu0 %v674
        %v676 = vpop.xlane.xlu0 %675
        %v677 = vsel %vm401, %v661, 0.0
        %678 = vadd.xlane.f32.xlu0 %v677
        %v679 = vpop.xlane.xlu0 %678
        %v680 = vsel %vm401, %v663, 0.0
        %681 = vadd.xlane.f32.xlu0 %v680
        %v682 = vpop.xlane.xlu0 %681
        %v683 = vsel %vm401, %v665, 0.0
        %684 = vadd.xlane.f32.xlu0 %v683
        %v685 = vpop.xlane.xlu0 %684
        %v686 = vadd.f32 %v670, %v676
        %v687 = vadd.f32 %v671, %v679
        %v688 = vadd.f32 %v672, %v682
        %v689 = vadd.f32 %v673, %v685
        %vm690 = vcmask 7168
        %691 = vst.msk [vmem:[#allocation3] sm:$0xff] %vm690, %v686
        %692 = vst.msk [vmem:[#allocation3 + $0x8] sm:$0xff] %vm690, %v687
        %693 = vst.msk [vmem:[#allocation3 + $0x10] sm:$0xff] %vm690, %v688
        %694 = vst.msk [vmem:[#allocation3 + $0x18] sm:$0xff] %vm690, %v689
        %v695 = vpack.c.bf16 %v659, %v659
        %v696 = vpack.c.bf16 %v661, %v661
        %v697 = vpack.c.bf16 %v663, %v663
        %v698 = vpack.c.bf16 %v665, %v665
        %v700 = vsel %vm401, %v695, 0
        %vm702 = vcmask 1043456
        %v704 = vsel %vm702, %v397, 0
        %706 = vmatprep.subr.bf16.mxu0 0
        %707 = vmatpush1.bf16.msra.mxu0 %v704
        %708 = vmatprep.subr.bf16.mxu0 0
        %709 = vmatpush1.bf16.msra.mxu0 0
        %710 = vmatprep.subr.bf16.mxu0 0
        %711 = vmatpush1.bf16.msra.mxu0 0
        %712 = vmatprep.subr.bf16.mxu0 0
        %713 = vmatpush1.bf16.msra.mxu0 0
        %714 = vmatprep.subr.bf16.mxu0 0
        %715 = vmatpush1.bf16.msra.mxu0 0
        %716 = vmatprep.subr.bf16.mxu0 0
        %717 = vmatpush1.bf16.msra.mxu0 0
        %718 = vmatprep.subr.bf16.mxu0 0
        %719 = vmatpush1.bf16.msra.mxu0 0
        %720 = vmatprep.subr.bf16.mxu0 0
        %721 = vmatpush1.bf16.msra.mxu0 0
        %722 = vmatprep.subr.bf16.mxu0 0
        %723 = vmatpush1.bf16.msra.mxu0 0
        %724 = vmatprep.subr.bf16.mxu0 0
        %725 = vmatpush1.bf16.msra.mxu0 0
        %726 = vmatprep.subr.bf16.mxu0 0
        %727 = vmatpush1.bf16.msra.mxu0 0
        %728 = vmatprep.subr.bf16.mxu0 0
        %729 = vmatpush1.bf16.msra.mxu0 0
        %730 = vmatprep.subr.bf16.mxu0 0
        %731 = vmatpush1.bf16.msra.mxu0 0
        %732 = vmatprep.subr.bf16.mxu0 0
        %733 = vmatpush1.bf16.msra.mxu0 0
        %734 = vmatprep.subr.bf16.mxu0 0
        %735 = vmatpush1.bf16.msra.mxu0 0
        %736 = vmatprep.subr.bf16.mxu0 0
        %737 = vmatpush1.bf16.msra.mxu0 0
        %738 = vmatprep.mubr.bf16.mxu0 0
        %739 = vmatmul.mubr.bf16.gmra.mrb[0].mxu0 %v700
        %v740 = vpop.f32.mrb[0].mxu0
        %v741 = vadd.f32 0.0, %v740
        %v742 = vpop.f32.mrb[0].mxu0
        %v743 = vpop.f32.mrb[0].mxu0
        %v744 = vpop.f32.mrb[0].mxu0
        %745 = vdwg.mxu0
        %v747 = vsel %vm401, %v696, 0
        %v750 = vsel %vm702, %v398, 0
        %752 = vmatprep.subr.bf16.mxu0 0
        %753 = vmatpush1.bf16.msra.mxu0 %v750
        %754 = vmatprep.subr.bf16.mxu0 0
        %755 = vmatpush1.bf16.msra.mxu0 0
        %756 = vmatprep.subr.bf16.mxu0 0
        %757 = vmatpush1.bf16.msra.mxu0 0
        %758 = vmatprep.subr.bf16.mxu0 0
        %759 = vmatpush1.bf16.msra.mxu0 0
        %760 = vmatprep.subr.bf16.mxu0 0
        %761 = vmatpush1.bf16.msra.mxu0 0
        %762 = vmatprep.subr.bf16.mxu0 0
        %763 = vmatpush1.bf16.msra.mxu0 0
        %764 = vmatprep.subr.bf16.mxu0 0
        %765 = vmatpush1.bf16.msra.mxu0 0
        %766 = vmatprep.subr.bf16.mxu0 0
        %767 = vmatpush1.bf16.msra.mxu0 0
        %768 = vmatprep.subr.bf16.mxu0 0
        %769 = vmatpush1.bf16.msra.mxu0 0
        %770 = vmatprep.subr.bf16.mxu0 0
        %771 = vmatpush1.bf16.msra.mxu0 0
        %772 = vmatprep.subr.bf16.mxu0 0
        %773 = vmatpush1.bf16.msra.mxu0 0
        %774 = vmatprep.subr.bf16.mxu0 0
        %775 = vmatpush1.bf16.msra.mxu0 0
        %776 = vmatprep.subr.bf16.mxu0 0
        %777 = vmatpush1.bf16.msra.mxu0 0
        %778 = vmatprep.subr.bf16.mxu0 0
        %779 = vmatpush1.bf16.msra.mxu0 0
        %780 = vmatprep.subr.bf16.mxu0 0
        %781 = vmatpush1.bf16.msra.mxu0 0
        %782 = vmatprep.subr.bf16.mxu0 0
        %783 = vmatpush1.bf16.msra.mxu0 0
        %784 = vmatprep.mubr.bf16.mxu0 0
        %785 = vmatmul.mubr.bf16.gmra.mrb[0].mxu0 %v747
        %v786 = vpop.f32.mrb[0].mxu0
        %v787 = vadd.f32 0.0, %v786
        %v788 = vpop.f32.mrb[0].mxu0
        %v789 = vpop.f32.mrb[0].mxu0
        %v790 = vpop.f32.mrb[0].mxu0
        %791 = vdwg.mxu0
        %v793 = vsel %vm401, %v697, 0
        %v796 = vsel %vm702, %v399, 0
        %798 = vmatprep.subr.bf16.mxu0 0
        %799 = vmatpush1.bf16.msra.mxu0 %v796
        %800 = vmatprep.subr.bf16.mxu0 0
        %801 = vmatpush1.bf16.msra.mxu0 0
        %802 = vmatprep.subr.bf16.mxu0 0
        %803 = vmatpush1.bf16.msra.mxu0 0
        %804 = vmatprep.subr.bf16.mxu0 0
        %805 = vmatpush1.bf16.msra.mxu0 0
        %806 = vmatprep.subr.bf16.mxu0 0
        %807 = vmatpush1.bf16.msra.mxu0 0
        %808 = vmatprep.subr.bf16.mxu0 0
        %809 = vmatpush1.bf16.msra.mxu0 0
        %810 = vmatprep.subr.bf16.mxu0 0
        %811 = vmatpush1.bf16.msra.mxu0 0
        %812 = vmatprep.subr.bf16.mxu0 0
        %813 = vmatpush1.bf16.msra.mxu0 0
        %814 = vmatprep.subr.bf16.mxu0 0
        %815 = vmatpush1.bf16.msra.mxu0 0
        %816 = vmatprep.subr.bf16.mxu0 0
        %817 = vmatpush1.bf16.msra.mxu0 0
        %818 = vmatprep.subr.bf16.mxu0 0
        %819 = vmatpush1.bf16.msra.mxu0 0
        %820 = vmatprep.subr.bf16.mxu0 0
        %821 = vmatpush1.bf16.msra.mxu0 0
        %822 = vmatprep.subr.bf16.mxu0 0
        %823 = vmatpush1.bf16.msra.mxu0 0
        %824 = vmatprep.subr.bf16.mxu0 0
        %825 = vmatpush1.bf16.msra.mxu0 0
        %826 = vmatprep.subr.bf16.mxu0 0
        %827 = vmatpush1.bf16.msra.mxu0 0
        %828 = vmatprep.subr.bf16.mxu0 0
        %829 = vmatpush1.bf16.msra.mxu0 0
        %830 = vmatprep.mubr.bf16.mxu0 0
        %831 = vmatmul.mubr.bf16.gmra.mrb[0].mxu0 %v793
        %v832 = vpop.f32.mrb[0].mxu0
        %v833 = vadd.f32 0.0, %v832
        %v834 = vpop.f32.mrb[0].mxu0
        %v835 = vpop.f32.mrb[0].mxu0
        %v836 = vpop.f32.mrb[0].mxu0
        %837 = vdwg.mxu0
        %v839 = vsel %vm401, %v698, 0
        %v842 = vsel %vm702, %v400, 0
        %844 = vmatprep.subr.bf16.mxu0 0
        %845 = vmatpush1.bf16.msra.mxu0 %v842
        %846 = vmatprep.subr.bf16.mxu0 0
        %847 = vmatpush1.bf16.msra.mxu0 0
        %848 = vmatprep.subr.bf16.mxu0 0
        %849 = vmatpush1.bf16.msra.mxu0 0
        %850 = vmatprep.subr.bf16.mxu0 0
        %851 = vmatpush1.bf16.msra.mxu0 0
        %852 = vmatprep.subr.bf16.mxu0 0
        %853 = vmatpush1.bf16.msra.mxu0 0
        %854 = vmatprep.subr.bf16.mxu0 0
        %855 = vmatpush1.bf16.msra.mxu0 0
        %856 = vmatprep.subr.bf16.mxu0 0
        %857 = vmatpush1.bf16.msra.mxu0 0
        %858 = vmatprep.subr.bf16.mxu0 0
        %859 = vmatpush1.bf16.msra.mxu0 0
        %860 = vmatprep.subr.bf16.mxu0 0
        %861 = vmatpush1.bf16.msra.mxu0 0
        %862 = vmatprep.subr.bf16.mxu0 0
        %863 = vmatpush1.bf16.msra.mxu0 0
        %864 = vmatprep.subr.bf16.mxu0 0
        %865 = vmatpush1.bf16.msra.mxu0 0
        %866 = vmatprep.subr.bf16.mxu0 0
        %867 = vmatpush1.bf16.msra.mxu0 0
        %868 = vmatprep.subr.bf16.mxu0 0
        %869 = vmatpush1.bf16.msra.mxu0 0
        %870 = vmatprep.subr.bf16.mxu0 0
        %871 = vmatpush1.bf16.msra.mxu0 0
        %872 = vmatprep.subr.bf16.mxu0 0
        %873 = vmatpush1.bf16.msra.mxu0 0
        %874 = vmatprep.subr.bf16.mxu0 0
        %875 = vmatpush1.bf16.msra.mxu0 0
        %876 = vmatprep.mubr.bf16.mxu0 0
        %877 = vmatmul.mubr.bf16.gmra.mrb[0].mxu0 %v839
        %v878 = vpop.f32.mrb[0].mxu0
        %v879 = vadd.f32 0.0, %v878
        %v880 = vpop.f32.mrb[0].mxu0
        %v881 = vpop.f32.mrb[0].mxu0
        %v882 = vpop.f32.mrb[0].mxu0
        %883 = vdwg.mxu0
        %v884 = vld [vmem:[#allocation4] sm:$0xff]
        %v885 = vld [vmem:[#allocation4 + $0x8] sm:$0xff]
        %v886 = vld [vmem:[#allocation4 + $0x10] sm:$0xff]
        %v887 = vld [vmem:[#allocation4 + $0x18] sm:$0xff]
        %889 = vset.pattern.permute.xlu0 0
        %890 = vperm.xlu0 %889, %v627
        %v891 = vpop.permute.xlu0 %890
        %894 = vset.pattern.permute.xlu0 0
        %895 = vperm.xlu0 %894, %v629
        %v896 = vpop.permute.xlu0 %895
        %899 = vset.pattern.permute.xlu0 0
        %900 = vperm.xlu0 %899, %v631
        %v901 = vpop.permute.xlu0 %900
        %904 = vset.pattern.permute.xlu0 0
        %905 = vperm.xlu0 %904, %v633
        %v906 = vpop.permute.xlu0 %905
        %v908 = vmul.f32 %v891, %v884
        %v909 = vmul.f32 %v896, %v885
        %v910 = vmul.f32 %v901, %v886
        %v911 = vmul.f32 %v906, %v887
        %v912 = vadd.f32 %v908, %v741
        %v913 = vadd.f32 %v909, %v787
        %v914 = vadd.f32 %v910, %v833
        %v915 = vadd.f32 %v911, %v879
        %916 = vst.msk [vmem:[#allocation4] sm:$0xff] %vm401, %v912
        %917 = vst.msk [vmem:[#allocation4 + $0x8] sm:$0xff] %vm401, %v913
        %918 = vst.msk [vmem:[#allocation4 + $0x10] sm:$0xff] %vm401, %v914
        %919 = vst.msk [vmem:[#allocation4 + $0x18] sm:$0xff] %vm401, %v915
        %920 = vst.msk [vmem:[#allocation2] sm:$0xff] %vm690, %v618
        %921 = vst.msk [vmem:[#allocation2 + $0x8] sm:$0xff] %vm690, %v619
        %922 = vst.msk [vmem:[#allocation2 + $0x10] sm:$0xff] %vm690, %v620
        %923 = vst.msk [vmem:[#allocation2 + $0x18] sm:$0xff] %vm690, %v621
        // Predicated region
        $region41: #{bert_forward.13} parent=35 // pred_check
          %p924 = pneg %p371
        $region42: #{bert_forward.13} parent=35 // pred_check_branch
          %926 = sbr.rel (%p924) target = $region44
        $region43: #{bert_forward.13} parent=35 // pred_region
          %v927 = vld [vmem:[#allocation3] sm:$0xff]
          %v928 = vld [vmem:[#allocation3 + $0x8] sm:$0xff]
          %v929 = vld [vmem:[#allocation3 + $0x10] sm:$0xff]
          %v930 = vld [vmem:[#allocation3 + $0x18] sm:$0xff]
          %v931 = vrcp.pop %v927
          %v932 = vrcp.pop %v928
          %v933 = vrcp.pop %v929
          %v934 = vrcp.pop %v930
          %v935 = vld [vmem:[#allocation4] sm:$0xff]
          %v936 = vld [vmem:[#allocation4 + $0x8] sm:$0xff]
          %v937 = vld [vmem:[#allocation4 + $0x10] sm:$0xff]
          %v938 = vld [vmem:[#allocation4 + $0x18] sm:$0xff]
          %940 = vset.pattern.permute.xlu0 0
          %941 = vperm.xlu0 %940, %v931
          %v942 = vpop.permute.xlu0 %941
          %945 = vset.pattern.permute.xlu0 0
          %946 = vperm.xlu0 %945, %v932
          %v947 = vpop.permute.xlu0 %946
          %950 = vset.pattern.permute.xlu0 0
          %951 = vperm.xlu0 %950, %v933
          %v952 = vpop.permute.xlu0 %951
          %955 = vset.pattern.permute.xlu0 0
          %956 = vperm.xlu0 %955, %v934
          %v957 = vpop.permute.xlu0 %956
          %v959 = vmul.f32 %v935, %v942
          %v960 = vmul.f32 %v936, %v947
          %v961 = vmul.f32 %v937, %v952
          %v962 = vmul.f32 %v938, %v957
          %v963 = vpack.c.bf16 %v959, %v959
          %v964 = vpack.c.bf16 %v960, %v960
          %v965 = vpack.c.bf16 %v961, %v961
          %v966 = vpack.c.bf16 %v962, %v962
          %vm967 = vcmask 60416
          %968 = vst.msk [vmem:[%s322] sm:$0xf] %vm967, %v963
          %969 = vst.msk [vmem:[%s322 + $0x4] sm:$0xf] %vm967, %v964
          %970 = vst.msk [vmem:[%s322 + $0x8] sm:$0xf] %vm967, %v965
          %971 = vst.msk [vmem:[%s322 + $0xc] sm:$0xf] %vm967, %v966
        $region44: #{bert_forward.13} parent=35 // pred_fallthru
          _
        %s972 = sand.u32 %s171, 1
        %s973 = sand.u32 %s171, 1
        %s974 = smul.addr %s973, 16
        %s975 = scalar_lea.vmem [#allocation5], %s974
        // Predicated region
        $region45: #{bert_forward.13} parent=35 // pred_check
          %p976 = pneg %p181
        $region46: #{bert_forward.13} parent=35 // pred_check_branch
          %978 = sbr.rel (%p976) target = $region48
        $region47: #{bert_forward.13} parent=35 // pred_region
          %s979 = sadd.s32 %s21, %s23
          %s980 = smul.u32 4, %s22
          %s981 = smul.addr %s980, 2
          %s982 = sadd.s32 %s979, %s981
          %s983 = smul.addr %s982, 4
          %s984 = scalar_lea.vmem %s4, %s983
          // Predicated region
          $region49: #{bert_forward.13} parent=47 // pred_check
            _
          $region50: #{bert_forward.13} parent=47 // pred_check_branch
            %986 = sbr.rel (0) target = $region52
          $region51: #{bert_forward.13} parent=47 // pred_region
            // Predicated region
            $region53: #{bert_forward.13} parent=51 // pred_check
              _
            $region54: #{bert_forward.13} parent=51 // pred_check_branch
              %988 = sbr.rel target = $region56
            $region55: #{bert_forward.13} parent=51 // pred_region
              // Predicated region
              $region68: #{bert_forward.13} parent=55 // pred_check
                _
              $region69: #{bert_forward.13} parent=55 // pred_check_branch
                %1009 = sbr.rel (0) target = $region71
              $region70: #{bert_forward.13} parent=55 // pred_region
                loop: start=0, step=1, limit=1
                $region72: #{bert_forward.13} parent=70 // loop_pre_header
                  _
                $region73: #{bert_forward.13} parent=70 // loop_header
                  %s1011 = sphi 0, %s1015
                  %p1012 = scmp.ge.s32.totalorder %s1011, 1
                  %s1016 = sphi %s975, %s975
                  %s1017 = sphi %s984, %s984
                $region74: #{bert_forward.13} parent=70 // loop_header_branch
                  %1014 = sbr.rel (%p1012) target = $region78
                $region75: #{bert_forward.13} parent=70 // loop_body
                  _
                $region76: #{bert_forward.13} parent=70 // loop_footer
                  %s1015 = sadd.s32 1, %s1011
                $region77: #{bert_forward.13} parent=70 // loop_footer_branch
                  %1010 = sbr.rel target = $region73
                $region78: #{bert_forward.13} parent=70 // loop_exit
                  _
                loop: start=0, step=1, limit=1
                $region79: #{bert_forward.13} parent=70 // loop_pre_header
                  _
                $region80: #{bert_forward.13} parent=70 // loop_header
                  %s1020 = sphi 0, %s1024
                  %p1021 = scmp.ge.s32.totalorder %s1020, 1
                  %s1025 = sphi %s975, %s975
                  %s1026 = sphi %s984, %s984
                $region81: #{bert_forward.13} parent=70 // loop_header_branch
                  %1023 = sbr.rel (%p1021) target = $region85
                $region82: #{bert_forward.13} parent=70 // loop_body
                  %v1027 = vld [vmem:[%s1025] sm:$0xf]
                  %1028 = vst [vmem:[%s1026] sm:$0xf] %v1027
                  %v1029 = vld [vmem:[%s1025 + $0x4] sm:$0xf]
                  %1030 = vst [vmem:[%s1026 + $0x8] sm:$0xf] %v1029
                  %v1031 = vld [vmem:[%s1025 + $0x8] sm:$0xf]
                  %1032 = vst [vmem:[%s1026 + $0x10] sm:$0xf] %v1031
                  %v1033 = vld [vmem:[%s1025 + $0xc] sm:$0xf]
                  %1034 = vst [vmem:[%s1026 + $0x18] sm:$0xf] %v1033
                $region83: #{bert_forward.13} parent=70 // loop_footer
                  %s1024 = sadd.s32 1, %s1020
                $region84: #{bert_forward.13} parent=70 // loop_footer_branch
                  %1019 = sbr.rel target = $region80
                $region85: #{bert_forward.13} parent=70 // loop_exit
                  _
              $region71: #{bert_forward.13} parent=55 // pred_fallthru
                _
            $region56: #{bert_forward.13} parent=51 // pred_fallthru
              _
            // Predicated region
            $region57: #{bert_forward.13} parent=51 // pred_check
              _
            $region58: #{bert_forward.13} parent=51 // pred_check_branch
              %990 = sbr.rel (0) target = $region60
            $region59: #{bert_forward.13} parent=51 // pred_region
              loop: start=0, step=1, limit=1
              $region61: #{bert_forward.13} parent=59 // loop_pre_header
                _
              $region62: #{bert_forward.13} parent=59 // loop_header
                %s993 = sphi 0, %s997
                %p994 = scmp.ge.s32.totalorder %s993, 1
                %s998 = sphi %s975, %s975
                %s999 = sphi %s984, %s984
              $region63: #{bert_forward.13} parent=59 // loop_header_branch
                %996 = sbr.rel (%p994) target = $region67
              $region64: #{bert_forward.13} parent=59 // loop_body
                %v1000 = vld [vmem:[%s998] sm:$0xf]
                %1001 = vst [vmem:[%s999] sm:$0xf] %v1000
                %v1002 = vld [vmem:[%s998 + $0x4] sm:$0xf]
                %1003 = vst [vmem:[%s999 + $0x8] sm:$0xf] %v1002
                %v1004 = vld [vmem:[%s998 + $0x8] sm:$0xf]
                %1005 = vst [vmem:[%s999 + $0x10] sm:$0xf] %v1004
                %v1006 = vld [vmem:[%s998 + $0xc] sm:$0xf]
                %1007 = vst [vmem:[%s999 + $0x18] sm:$0xf] %v1006
              $region65: #{bert_forward.13} parent=59 // loop_footer
                %s997 = sadd.s32 1, %s993
              $region66: #{bert_forward.13} parent=59 // loop_footer_branch
                %992 = sbr.rel target = $region62
              $region67: #{bert_forward.13} parent=59 // loop_exit
                _
            $region60: #{bert_forward.13} parent=51 // pred_fallthru
              _
          $region52: #{bert_forward.13} parent=47 // pred_fallthru
            _
          %1035 = vnop
        $region48: #{bert_forward.13} parent=35 // pred_fallthru
          _
      $region36: #{bert_forward.13} parent=5 // pred_fallthru
        _
      %p1036 = scmp.le.s32.totalorder 2, %s10
      // Predicated region
      $region86: #{bert_forward.13} parent=5 // pred_check
        %p1037 = pneg %p1036
      $region87: #{bert_forward.13} parent=5 // pred_check_branch
        %1039 = sbr.rel (%p1037) target = $region89
      $region88: #{bert_forward.13} parent=5 // pred_region
        %s1040 = ssub.s32 %s10, 2
        // Predicated region
        $region90: #{bert_forward.13} parent=88 // pred_check
          %p1041 = pneg %p187
        $region91: #{bert_forward.13} parent=88 // pred_check_branch
          %1043 = sbr.rel (%p1041) target = $region93
        $region92: #{bert_forward.13} parent=88 // pred_region
          %s1044 = sand.u32 %s172, 1
          %s1045 = sand.u32 %s172, 1
          %s1046 = smul.addr %s1045, 16
          %s1047 = scalar_lea.vmem [#allocation5], %s1046
        $region93: #{bert_forward.13} parent=88 // pred_fallthru
          _
      $region89: #{bert_forward.13} parent=5 // pred_fallthru
        _
    $region6: #{bert_forward.13} parent=1 // loop_footer
      %s14 = sadd.s32 1, %s10
    $region7: #{bert_forward.13} parent=1 // loop_footer_branch
      %9 = sbr.rel target = $region3
    $region8: #{bert_forward.13} parent=1 // loop_exit
      _

// kernel: bert_forward.15
$region0: #{bert_forward.15}
  #allocation0 [shape = 'u32[]', space=smem, size = 0x4, offset = 0x4, fixed_abs, tag = 'smem constant byte address 0x4 - core index']
  #allocation1 [shape = 'u32[144,128]{1,0:T(1,128)}', space=vmem, size = 0x12000, scoped, tag = 'internal scratch']
  %s0 = inlined_call_operand.vmem [shape: bf16[16,32], index: 0, kind: input, shape index: {}]
  %s1 = inlined_call_operand.vmem [shape: bf16[32,128], index: 1, kind: input, shape index: {}]
  %s2 = inlined_call_operand.vmem [shape: f32[1,128], index: 2, kind: input, shape index: {}]
  %s3 = inlined_call_operand.vmem [shape: bf16[16,128], index: 3, kind: output, shape index: {}]
  %s4 = sld [smem:[#allocation0]]
  $region22: #{bert_forward.15} parent=0
    _
  %s6 = ssub.s32 1, %s4
  %s7 = scalar_select 0, %s6, %s4
  // Predicated region
  $region2: #{bert_forward.15} parent=0 // pred_check
    _
  $region3: #{bert_forward.15} parent=0 // pred_check_branch
    %9 = sbr.rel (0) target = $region5
  $region4: #{bert_forward.15} parent=0 // pred_region
    _
  $region5: #{bert_forward.15} parent=0 // pred_fallthru
    _
  // Predicated region
  $region6: #{bert_forward.15} parent=0 // pred_check
    _
  $region7: #{bert_forward.15} parent=0 // pred_check_branch
    %11 = sbr.rel (0) target = $region9
  $region8: #{bert_forward.15} parent=0 // pred_region
    _
  $region9: #{bert_forward.15} parent=0 // pred_fallthru
    _
  // Predicated region
  $region10: #{bert_forward.15} parent=0 // pred_check
    _
  $region11: #{bert_forward.15} parent=0 // pred_check_branch
    %13 = sbr.rel (0) target = $region13
  $region12: #{bert_forward.15} parent=0 // pred_region
    _
  $region13: #{bert_forward.15} parent=0 // pred_fallthru
    _
  %v15 = vld [vmem:[%s0] sm:$0xf]
  %v16 = vld [vmem:[%s0 + $0x4] sm:$0xf]
  %v17 = vld [vmem:[%s1] sm:$0xf]
  %v18 = vld [vmem:[%s1 + $0x4] sm:$0xf]
  %v19 = vld [vmem:[%s1 + $0x8] sm:$0xf]
  %v20 = vld [vmem:[%s1 + $0xc] sm:$0xf]
  %v21 = vld [vmem:[%s2] sm:$0x1]
  %v23 = vlaneseq
  %v24 = vshrl.u32 %v23, 7
  %v25 = vsub.s32 0, %v24
  %v26 = vrot.slane %v21, %v25
  %v30 = vunpack.c.l.b16 %v15
  %v31 = vunpack.c.l.b16 %v16
  %v32 = vpack.c.b16 %v31, %v30
  %v37 = vunpack.c.l.b16 %v17
  %v38 = vunpack.c.l.b16 %v18
  %v39 = vunpack.c.l.b16 %v19
  %v40 = vunpack.c.l.b16 %v20
  %v41 = vpack.c.b16 %v38, %v37
  %v42 = vpack.c.b16 %v40, %v39
  %vm45 = vcmask 261120
  %v47 = vsel %vm45, %v32, 0
  %49 = vmatprep.subr.bf16.mxu0 0
  %50 = vmatpush1.bf16.msra.mxu0 %v41
  %51 = vmatprep.subr.bf16.mxu0 0
  %52 = vmatpush1.bf16.msra.mxu0 %v42
  %53 = vmatprep.subr.bf16.mxu0 0
  %54 = vmatpush1.bf16.msra.mxu0 0
  %55 = vmatprep.subr.bf16.mxu0 0
  %56 = vmatpush1.bf16.msra.mxu0 0
  %57 = vmatprep.subr.bf16.mxu0 0
  %58 = vmatpush1.bf16.msra.mxu0 0
  %59 = vmatprep.subr.bf16.mxu0 0
  %60 = vmatpush1.bf16.msra.mxu0 0
  %61 = vmatprep.subr.bf16.mxu0 0
  %62 = vmatpush1.bf16.msra.mxu0 0
  %63 = vmatprep.subr.bf16.mxu0 0
  %64 = vmatpush1.bf16.msra.mxu0 0
  %65 = vmatprep.subr.bf16.mxu0 0
  %66 = vmatpush1.bf16.msra.mxu0 0
  %67 = vmatprep.subr.bf16.mxu0 0
  %68 = vmatpush1.bf16.msra.mxu0 0
  %69 = vmatprep.subr.bf16.mxu0 0
  %70 = vmatpush1.bf16.msra.mxu0 0
  %71 = vmatprep.subr.bf16.mxu0 0
  %72 = vmatpush1.bf16.msra.mxu0 0
  %73 = vmatprep.subr.bf16.mxu0 0
  %74 = vmatpush1.bf16.msra.mxu0 0
  %75 = vmatprep.subr.bf16.mxu0 0
  %76 = vmatpush1.bf16.msra.mxu0 0
  %77 = vmatprep.subr.bf16.mxu0 0
  %78 = vmatpush1.bf16.msra.mxu0 0
  %79 = vmatprep.subr.bf16.mxu0 0
  %80 = vmatpush1.bf16.msra.mxu0 0
  %81 = vmatprep.mubr.bf16.mxu0 0
  %82 = vmatmul.mubr.bf16.gmra.mrb[0].mxu0 %v47
  %v83 = vpop.f32.mrb[0].mxu0
  %v84 = vadd.f32 %v26, %v83
  %v85 = vpop.f32.mrb[0].mxu0
  %v86 = vpop.f32.mrb[0].mxu0
  %v87 = vadd.f32 %v26, %v86
  %v88 = vpop.f32.mrb[0].mxu0
  %89 = vdwg.mxu0
  %v90 = vmul.f32 %v84, 0.5
  %v91 = vmul.f32 %v87, 0.5
  %v92 = vmul.f32 %v84, 0.70710677
  %v93 = vmul.f32 %v87, 0.70710677
  %v94 = verf.f32.pop %v92
  %v95 = verf.f32.pop %v93
  %v96 = vadd.f32 %v94, 1.0
  %v97 = vadd.f32 %v95, 1.0
  %v98 = vmul.f32 %v90, %v96
  %v99 = vmul.f32 %v91, %v97
  %v100 = vpack.c.bf16 %v99, %v98
  %v102 = vunpack.c.l.b16 %v100
  %v103 = vunpack.c.h.b16 %v100
  %v104 = vpack.c.b16 %v102, %v102
  %v105 = vpack.c.b16 %v103, %v103
  %108 = vst [vmem:[%s3] sm:$0xf] %v104
  %109 = vst [vmem:[%s3 + $0x4] sm:$0xf] %v105
  // Predicated region
  $region14: #{bert_forward.15} parent=0 // pred_check
    _
  $region15: #{bert_forward.15} parent=0 // pred_check_branch
    %111 = sbr.rel (0) target = $region17
  $region16: #{bert_forward.15} parent=0 // pred_region
    _
  $region17: #{bert_forward.15} parent=0 // pred_fallthru
    _
  // Predicated region
  $region18: #{bert_forward.15} parent=0 // pred_check
    _
  $region19: #{bert_forward.15} parent=0 // pred_check_branch
    %113 = sbr.rel (0) target = $region21
  $region20: #{bert_forward.15} parent=0 // pred_region
    _
  $region21: #{bert_forward.15} parent=0 // pred_fallthru
    _

// kernel: bert_forward.16
$region0: #{bert_forward.16}
  #allocation0 [shape = 'u32[]', space=smem, size = 0x4, offset = 0x4, fixed_abs, tag = 'smem constant byte address 0x4 - core index']
  #allocation1 [shape = 'u32[144,128]{1,0:T(1,128)}', space=vmem, size = 0x12000, scoped, tag = 'internal scratch']
  #allocation2 [shape = 'f32[16,32]{1,0:T(8,128)}', space=vmem, size = 0x2000, scoped, tag = 'scratch operand']
  %s0 = inlined_call_operand.vmem [shape: bf16[16,128], index: 0, kind: input, shape index: {}]
  %s1 = inlined_call_operand.vmem [shape: bf16[128,32], index: 1, kind: input, shape index: {}]
  %s2 = inlined_call_operand.vmem [shape: f32[1,32], index: 2, kind: input, shape index: {}]
  %s3 = inlined_call_operand.vmem [shape: f32[16,32], index: 3, kind: input, shape index: {}, may-alias: {3,6}]
  %s4 = inlined_call_operand.vmem [shape: f32[1,32], index: 4, kind: input, shape index: {}]
  %s5 = inlined_call_operand.vmem [shape: f32[1,32], index: 5, kind: input, shape index: {}]
  %s6 = inlined_call_operand.vmem [shape: f32[16,32], index: 6, kind: output, shape index: {0}, may-alias: {3,6}]
  %s7 = inlined_call_operand.vmem [shape: bf16[16,32], index: 7, kind: output, shape index: {1}]
  %8 = xla_tuple %s6, %s7
  %s9 = sld [smem:[#allocation0]]
  $region50: #{bert_forward.16} parent=0
    _
  %s11 = ssub.s32 1, %s9
  %s12 = scalar_select 0, %s11, %s9
  // Predicated region
  $region2: #{bert_forward.16} parent=0 // pred_check
    _
  $region3: #{bert_forward.16} parent=0 // pred_check_branch
    %14 = sbr.rel (0) target = $region5
  $region4: #{bert_forward.16} parent=0 // pred_region
    _
  $region5: #{bert_forward.16} parent=0 // pred_fallthru
    _
  // Predicated region
  $region6: #{bert_forward.16} parent=0 // pred_check
    _
  $region7: #{bert_forward.16} parent=0 // pred_check_branch
    %16 = sbr.rel (0) target = $region9
  $region8: #{bert_forward.16} parent=0 // pred_region
    _
  $region9: #{bert_forward.16} parent=0 // pred_fallthru
    _
  // Predicated region
  $region10: #{bert_forward.16} parent=0 // pred_check
    _
  $region11: #{bert_forward.16} parent=0 // pred_check_branch
    %18 = sbr.rel (0) target = $region13
  $region12: #{bert_forward.16} parent=0 // pred_region
    _
  $region13: #{bert_forward.16} parent=0 // pred_fallthru
    _
  // Predicated region
  $region14: #{bert_forward.16} parent=0 // pred_check
    _
  $region15: #{bert_forward.16} parent=0 // pred_check_branch
    %20 = sbr.rel (0) target = $region17
  $region16: #{bert_forward.16} parent=0 // pred_region
    _
  $region17: #{bert_forward.16} parent=0 // pred_fallthru
    _
  // Predicated region
  $region18: #{bert_forward.16} parent=0 // pred_check
    _
  $region19: #{bert_forward.16} parent=0 // pred_check_branch
    %22 = sbr.rel (0) target = $region21
  $region20: #{bert_forward.16} parent=0 // pred_region
    _
  $region21: #{bert_forward.16} parent=0 // pred_fallthru
    _
  // Predicated region
  $region22: #{bert_forward.16} parent=0 // pred_check
    _
  $region23: #{bert_forward.16} parent=0 // pred_check_branch
    %24 = sbr.rel (0) target = $region25
  $region24: #{bert_forward.16} parent=0 // pred_region
    _
  $region25: #{bert_forward.16} parent=0 // pred_fallthru
    _
  %p26 = scmp.eq.s32.totalorder 0, 0
  // Predicated region
  $region26: #{bert_forward.16} parent=0 // pred_check
    %p27 = pneg %p26
  $region27: #{bert_forward.16} parent=0 // pred_check_branch
    %29 = sbr.rel (%p27) target = $region29
  $region28: #{bert_forward.16} parent=0 // pred_region
    %vm30 = vcmask 261120
    %31 = vst.msk [vmem:[#allocation2] sm:$0xff] %vm30, 0.0
    %32 = vst.msk [vmem:[#allocation2 + $0x8] sm:$0xff] %vm30, 0.0
  $region29: #{bert_forward.16} parent=0 // pred_fallthru
    _
  %v33 = vld [vmem:[#allocation2] sm:$0xff]
  %v34 = vld [vmem:[#allocation2 + $0x8] sm:$0xff]
  %v35 = vld [vmem:[%s0] sm:$0xf]
  %v36 = vld [vmem:[%s0 + $0x4] sm:$0xf]
  %v37 = vld [vmem:[%s1] sm:$0xf]
  %v38 = vld [vmem:[%s1 + $0x4] sm:$0xf]
  %v39 = vld [vmem:[%s1 + $0x8] sm:$0xf]
  %v40 = vld [vmem:[%s1 + $0xc] sm:$0xf]
  %v41 = vld [vmem:[%s1 + $0x10] sm:$0xf]
  %v42 = vld [vmem:[%s1 + $0x14] sm:$0xf]
  %v43 = vld [vmem:[%s1 + $0x18] sm:$0xf]
  %v44 = vld [vmem:[%s1 + $0x1c] sm:$0xf]
  %v45 = vld [vmem:[%s1 + $0x20] sm:$0xf]
  %v46 = vld [vmem:[%s1 + $0x24] sm:$0xf]
  %v47 = vld [vmem:[%s1 + $0x28] sm:$0xf]
  %v48 = vld [vmem:[%s1 + $0x2c] sm:$0xf]
  %v49 = vld [vmem:[%s1 + $0x30] sm:$0xf]
  %v50 = vld [vmem:[%s1 + $0x34] sm:$0xf]
  %v51 = vld [vmem:[%s1 + $0x38] sm:$0xf]
  %v52 = vld [vmem:[%s1 + $0x3c] sm:$0xf]
  %v55 = vunpack.c.l.b16 %v35
  %v56 = vunpack.c.l.b16 %v36
  %v57 = vpack.c.b16 %v56, %v55
  %v75 = vunpack.c.l.b16 %v37
  %v76 = vunpack.c.l.b16 %v38
  %v77 = vunpack.c.l.b16 %v39
  %v78 = vunpack.c.l.b16 %v40
  %v79 = vunpack.c.l.b16 %v41
  %v80 = vunpack.c.l.b16 %v42
  %v81 = vunpack.c.l.b16 %v43
  %v82 = vunpack.c.l.b16 %v44
  %v83 = vunpack.c.l.b16 %v45
  %v84 = vunpack.c.l.b16 %v46
  %v85 = vunpack.c.l.b16 %v47
  %v86 = vunpack.c.l.b16 %v48
  %v87 = vunpack.c.l.b16 %v49
  %v88 = vunpack.c.l.b16 %v50
  %v89 = vunpack.c.l.b16 %v51
  %v90 = vunpack.c.l.b16 %v52
  %v91 = vpack.c.b16 %v76, %v75
  %v92 = vpack.c.b16 %v78, %v77
  %v93 = vpack.c.b16 %v80, %v79
  %v94 = vpack.c.b16 %v82, %v81
  %v95 = vpack.c.b16 %v84, %v83
  %v96 = vpack.c.b16 %v86, %v85
  %v97 = vpack.c.b16 %v88, %v87
  %v98 = vpack.c.b16 %v90, %v89
  %107 = vmatprep.subr.bf16.mxu0 0
  %108 = vmatpush1.bf16.msra.mxu0 %v91
  %109 = vmatprep.subr.bf16.mxu0 0
  %110 = vmatpush1.bf16.msra.mxu0 %v92
  %111 = vmatprep.subr.bf16.mxu0 0
  %112 = vmatpush1.bf16.msra.mxu0 %v93
  %113 = vmatprep.subr.bf16.mxu0 0
  %114 = vmatpush1.bf16.msra.mxu0 %v94
  %115 = vmatprep.subr.bf16.mxu0 0
  %116 = vmatpush1.bf16.msra.mxu0 %v95
  %117 = vmatprep.subr.bf16.mxu0 0
  %118 = vmatpush1.bf16.msra.mxu0 %v96
  %119 = vmatprep.subr.bf16.mxu0 0
  %120 = vmatpush1.bf16.msra.mxu0 %v97
  %121 = vmatprep.subr.bf16.mxu0 0
  %122 = vmatpush1.bf16.msra.mxu0 %v98
  %123 = vmatprep.subr.bf16.mxu0 0
  %124 = vmatpush1.bf16.msra.mxu0 0
  %125 = vmatprep.subr.bf16.mxu0 0
  %126 = vmatpush1.bf16.msra.mxu0 0
  %127 = vmatprep.subr.bf16.mxu0 0
  %128 = vmatpush1.bf16.msra.mxu0 0
  %129 = vmatprep.subr.bf16.mxu0 0
  %130 = vmatpush1.bf16.msra.mxu0 0
  %131 = vmatprep.subr.bf16.mxu0 0
  %132 = vmatpush1.bf16.msra.mxu0 0
  %133 = vmatprep.subr.bf16.mxu0 0
  %134 = vmatpush1.bf16.msra.mxu0 0
  %135 = vmatprep.subr.bf16.mxu0 0
  %136 = vmatpush1.bf16.msra.mxu0 0
  %137 = vmatprep.subr.bf16.mxu0 0
  %138 = vmatpush1.bf16.msra.mxu0 0
  %139 = vmatprep.mubr.bf16.mxu0 0
  %140 = vmatmul.mubr.bf16.gmra.mrb[0].mxu0 %v57
  %v141 = vpop.f32.mrb[0].mxu0
  %v142 = vadd.f32 0.0, %v141
  %v143 = vpop.f32.mrb[0].mxu0
  %v144 = vpop.f32.mrb[0].mxu0
  %v145 = vadd.f32 0.0, %v144
  %v146 = vpop.f32.mrb[0].mxu0
  %147 = vdwg.mxu0
  %v148 = vadd.f32 %v33, %v142
  %v149 = vadd.f32 %v34, %v145
  %vm150 = vcmask 261120
  %151 = vst.msk [vmem:[#allocation2] sm:$0xff] %vm150, %v148
  %152 = vst.msk [vmem:[#allocation2 + $0x8] sm:$0xff] %vm150, %v149
  // Predicated region
  $region30: #{bert_forward.16} parent=0 // pred_check
    %p153 = pneg %p26
  $region31: #{bert_forward.16} parent=0 // pred_check_branch
    %155 = sbr.rel (%p153) target = $region33
  $region32: #{bert_forward.16} parent=0 // pred_region
    %v156 = vld [vmem:[#allocation2] sm:$0xff]
    %v157 = vld [vmem:[#allocation2 + $0x8] sm:$0xff]
    %v158 = vld [vmem:[%s2] sm:$0x1]
    %v160 = vlaneseq
    %v161 = vshrl.u32 %v160, 7
    %v162 = vsub.s32 0, %v161
    %v163 = vrot.slane %v158, %v162
    %v165 = vadd.f32 %v156, %v163
    %v166 = vadd.f32 %v157, %v163
    %v167 = vld [vmem:[%s3] sm:$0xff]
    %v168 = vld [vmem:[%s3 + $0x8] sm:$0xff]
    %v169 = vadd.f32 %v165, %v167
    %v170 = vadd.f32 %v166, %v168
    %171 = vst.msk [vmem:[%s6] sm:$0xff] %vm150, %v169
    %172 = vst.msk [vmem:[%s6 + $0x8] sm:$0xff] %vm150, %v170
    %v173 = vld [vmem:[%s4] sm:$0x1]
    %v174 = vld [vmem:[%s5] sm:$0x1]
    %v175 = vsel %vm150, %v169, 0.0
    %176 = vadd.xlane.f32.xlu0 %v175
    %v177 = vpop.xlane.xlu0 %176
    %v178 = vsel %vm150, %v170, 0.0
    %179 = vadd.xlane.f32.xlu0 %v178
    %v180 = vpop.xlane.xlu0 %179
    %v181 = vrcp.pop 32.0
    %v182 = vmul.f32 %v177, %v181
    %v183 = vmul.f32 %v180, %v181
    %v184 = vsub.f32 %v169, %v182
    %v185 = vsub.f32 %v170, %v183
    %v186 = vmul.f32 %v184, %v184
    %v187 = vmul.f32 %v185, %v185
    %v188 = vsel %vm150, %v186, 0.0
    %189 = vadd.xlane.f32.xlu0 %v188
    %v190 = vpop.xlane.xlu0 %189
    %v191 = vsel %vm150, %v187, 0.0
    %192 = vadd.xlane.f32.xlu0 %v191
    %v193 = vpop.xlane.xlu0 %192
    %v194 = vmul.f32 %v190, %v181
    %v195 = vmul.f32 %v193, %v181
    %v196 = vadd.f32 %v194, 1e-05
    %v197 = vadd.f32 %v195, 1e-05
    %v198 = vrsqrt.pop %v196
    %v199 = vrsqrt.pop %v197
    %v200 = vmul.f32 %v184, %v198
    %v201 = vmul.f32 %v185, %v199
    %v203 = vlaneseq
    %v204 = vshrl.u32 %v203, 7
    %v205 = vsub.s32 0, %v204
    %v206 = vrot.slane %v173, %v205
    %v208 = vmul.f32 %v200, %v206
    %v209 = vmul.f32 %v201, %v206
    %v211 = vlaneseq
    %v212 = vshrl.u32 %v211, 7
    %v213 = vsub.s32 0, %v212
    %v214 = vrot.slane %v174, %v213
    %v216 = vadd.f32 %v208, %v214
    %v217 = vadd.f32 %v209, %v214
    %v218 = vpack.c.bf16 %v217, %v216
    %v220 = vunpack.c.l.b16 %v218
    %v221 = vunpack.c.h.b16 %v218
    %v222 = vpack.c.b16 %v220, %v220
    %v223 = vpack.c.b16 %v221, %v221
    %vm226 = vcmask 257024
    %227 = vst.msk [vmem:[%s7] sm:$0xf] %vm226, %v222
    %228 = vst.msk [vmem:[%s7 + $0x4] sm:$0xf] %vm226, %v223
  $region33: #{bert_forward.16} parent=0 // pred_fallthru
    _
  // Predicated region
  $region34: #{bert_forward.16} parent=0 // pred_check
    _
  $region35: #{bert_forward.16} parent=0 // pred_check_branch
    %230 = sbr.rel (0) target = $region37
  $region36: #{bert_forward.16} parent=0 // pred_region
    _
  $region37: #{bert_forward.16} parent=0 // pred_fallthru
    _
  // Predicated region
  $region38: #{bert_forward.16} parent=0 // pred_check
    _
  $region39: #{bert_forward.16} parent=0 // pred_check_branch
    %232 = sbr.rel (0) target = $region41
  $region40: #{bert_forward.16} parent=0 // pred_region
    _
  $region41: #{bert_forward.16} parent=0 // pred_fallthru
    _
  // Predicated region
  $region42: #{bert_forward.16} parent=0 // pred_check
    _
  $region43: #{bert_forward.16} parent=0 // pred_check_branch
    %234 = sbr.rel (0) target = $region45
  $region44: #{bert_forward.16} parent=0 // pred_region
    _
  $region45: #{bert_forward.16} parent=0 // pred_fallthru
    _
  // Predicated region
  $region46: #{bert_forward.16} parent=0 // pred_check
    _
  $region47: #{bert_forward.16} parent=0 // pred_check_branch
    %236 = sbr.rel (0) target = $region49
  $region48: #{bert_forward.16} parent=0 // pred_region
    _
  $region49: #{bert_forward.16} parent=0 // pred_fallthru
    _

// kernel: bert_forward.21
$region0: #{bert_forward.21}
  #allocation0 [shape = 'u32[]', space=smem, size = 0x4, offset = 0x4, fixed_abs, tag = 'smem constant byte address 0x4 - core index']
  #allocation1 [shape = 'u32[144,128]{1,0:T(1,128)}', space=vmem, size = 0x12000, scoped, tag = 'internal scratch']
  #allocation2 [shape = 'f32[16,32]{1,0:T(8,128)}', space=vmem, size = 0x2000, scoped, tag = 'scratch operand']
  %s0 = inlined_call_operand.vmem [shape: bf16[16,128], index: 0, kind: input, shape index: {}]
  %s1 = inlined_call_operand.vmem [shape: bf16[128,32], index: 1, kind: input, shape index: {}]
  %s2 = inlined_call_operand.vmem [shape: f32[1,32], index: 2, kind: input, shape index: {}]
  %s3 = inlined_call_operand.vmem [shape: f32[16,32], index: 3, kind: input, shape index: {}, may-alias: {3,6}]
  %s4 = inlined_call_operand.vmem [shape: f32[1,32], index: 4, kind: input, shape index: {}]
  %s5 = inlined_call_operand.vmem [shape: f32[1,32], index: 5, kind: input, shape index: {}]
  %s6 = inlined_call_operand.vmem [shape: f32[16,32], index: 6, kind: output, shape index: {0}, may-alias: {3,6}]
  %s7 = inlined_call_operand.hbm [shape: bf16[16,32], index: 7, kind: output, shape index: {1}]
  %8 = xla_tuple %s6, %s7
  %s9 = sld [smem:[#allocation0]]
  $region50: #{bert_forward.21} parent=0
    _
  %s11 = ssub.s32 1, %s9
  %s12 = scalar_select 0, %s11, %s9
  $region1: #{bert_forward.21} parent=0
    #allocation3 [shape = 'u8[4096]{0}', space=vmem, size = 0x1000, scoped, tag = 'output window, operand 1, single buffered']
    #allocation4 [shape = 's32[1]{0}', space=sflag, size = 0x4, scoped, tag = 'scoped memory for bert_forward.21']
    %13 = vsyncpa [#allocation4], 0
    // Predicated region
    $region2: #{bert_forward.21} parent=1 // pred_check
      _
    $region3: #{bert_forward.21} parent=1 // pred_check_branch
      %15 = sbr.rel (0) target = $region5
    $region4: #{bert_forward.21} parent=1 // pred_region
      _
    $region5: #{bert_forward.21} parent=1 // pred_fallthru
      _
    // Predicated region
    $region6: #{bert_forward.21} parent=1 // pred_check
      _
    $region7: #{bert_forward.21} parent=1 // pred_check_branch
      %17 = sbr.rel (0) target = $region9
    $region8: #{bert_forward.21} parent=1 // pred_region
      _
    $region9: #{bert_forward.21} parent=1 // pred_fallthru
      _
    // Predicated region
    $region10: #{bert_forward.21} parent=1 // pred_check
      _
    $region11: #{bert_forward.21} parent=1 // pred_check_branch
      %19 = sbr.rel (0) target = $region13
    $region12: #{bert_forward.21} parent=1 // pred_region
      _
    $region13: #{bert_forward.21} parent=1 // pred_fallthru
      _
    // Predicated region
    $region14: #{bert_forward.21} parent=1 // pred_check
      _
    $region15: #{bert_forward.21} parent=1 // pred_check_branch
      %21 = sbr.rel (0) target = $region17
    $region16: #{bert_forward.21} parent=1 // pred_region
      _
    $region17: #{bert_forward.21} parent=1 // pred_fallthru
      _
    // Predicated region
    $region18: #{bert_forward.21} parent=1 // pred_check
      _
    $region19: #{bert_forward.21} parent=1 // pred_check_branch
      %23 = sbr.rel (0) target = $region21
    $region20: #{bert_forward.21} parent=1 // pred_region
      _
    $region21: #{bert_forward.21} parent=1 // pred_fallthru
      _
    // Predicated region
    $region22: #{bert_forward.21} parent=1 // pred_check
      _
    $region23: #{bert_forward.21} parent=1 // pred_check_branch
      %25 = sbr.rel (0) target = $region25
    $region24: #{bert_forward.21} parent=1 // pred_region
      _
    $region25: #{bert_forward.21} parent=1 // pred_fallthru
      _
    %p27 = scmp.eq.s32.totalorder 0, 0
    // Predicated region
    $region26: #{bert_forward.21} parent=1 // pred_check
      %p28 = pneg %p27
    $region27: #{bert_forward.21} parent=1 // pred_check_branch
      %30 = sbr.rel (%p28) target = $region29
    $region28: #{bert_forward.21} parent=1 // pred_region
      %vm31 = vcmask 261120
      %32 = vst.msk [vmem:[#allocation2] sm:$0xff] %vm31, 0.0
      %33 = vst.msk [vmem:[#allocation2 + $0x8] sm:$0xff] %vm31, 0.0
    $region29: #{bert_forward.21} parent=1 // pred_fallthru
      _
    %v34 = vld [vmem:[#allocation2] sm:$0xff]
    %v35 = vld [vmem:[#allocation2 + $0x8] sm:$0xff]
    %v36 = vld [vmem:[%s0] sm:$0xf]
    %v37 = vld [vmem:[%s0 + $0x4] sm:$0xf]
    %v38 = vld [vmem:[%s1] sm:$0xf]
    %v39 = vld [vmem:[%s1 + $0x4] sm:$0xf]
    %v40 = vld [vmem:[%s1 + $0x8] sm:$0xf]
    %v41 = vld [vmem:[%s1 + $0xc] sm:$0xf]
    %v42 = vld [vmem:[%s1 + $0x10] sm:$0xf]
    %v43 = vld [vmem:[%s1 + $0x14] sm:$0xf]
    %v44 = vld [vmem:[%s1 + $0x18] sm:$0xf]
    %v45 = vld [vmem:[%s1 + $0x1c] sm:$0xf]
    %v46 = vld [vmem:[%s1 + $0x20] sm:$0xf]
    %v47 = vld [vmem:[%s1 + $0x24] sm:$0xf]
    %v48 = vld [vmem:[%s1 + $0x28] sm:$0xf]
    %v49 = vld [vmem:[%s1 + $0x2c] sm:$0xf]
    %v50 = vld [vmem:[%s1 + $0x30] sm:$0xf]
    %v51 = vld [vmem:[%s1 + $0x34] sm:$0xf]
    %v52 = vld [vmem:[%s1 + $0x38] sm:$0xf]
    %v53 = vld [vmem:[%s1 + $0x3c] sm:$0xf]
    %v56 = vunpack.c.l.b16 %v36
    %v57 = vunpack.c.l.b16 %v37
    %v58 = vpack.c.b16 %v57, %v56
    %v76 = vunpack.c.l.b16 %v38
    %v77 = vunpack.c.l.b16 %v39
    %v78 = vunpack.c.l.b16 %v40
    %v79 = vunpack.c.l.b16 %v41
    %v80 = vunpack.c.l.b16 %v42
    %v81 = vunpack.c.l.b16 %v43
    %v82 = vunpack.c.l.b16 %v44
    %v83 = vunpack.c.l.b16 %v45
    %v84 = vunpack.c.l.b16 %v46
    %v85 = vunpack.c.l.b16 %v47
    %v86 = vunpack.c.l.b16 %v48
    %v87 = vunpack.c.l.b16 %v49
    %v88 = vunpack.c.l.b16 %v50
    %v89 = vunpack.c.l.b16 %v51
    %v90 = vunpack.c.l.b16 %v52
    %v91 = vunpack.c.l.b16 %v53
    %v92 = vpack.c.b16 %v77, %v76
    %v93 = vpack.c.b16 %v79, %v78
    %v94 = vpack.c.b16 %v81, %v80
    %v95 = vpack.c.b16 %v83, %v82
    %v96 = vpack.c.b16 %v85, %v84
    %v97 = vpack.c.b16 %v87, %v86
    %v98 = vpack.c.b16 %v89, %v88
    %v99 = vpack.c.b16 %v91, %v90
    %108 = vmatprep.subr.bf16.mxu0 0
    %109 = vmatpush1.bf16.msra.mxu0 %v92
    %110 = vmatprep.subr.bf16.mxu0 0
    %111 = vmatpush1.bf16.msra.mxu0 %v93
    %112 = vmatprep.subr.bf16.mxu0 0
    %113 = vmatpush1.bf16.msra.mxu0 %v94
    %114 = vmatprep.subr.bf16.mxu0 0
    %115 = vmatpush1.bf16.msra.mxu0 %v95
    %116 = vmatprep.subr.bf16.mxu0 0
    %117 = vmatpush1.bf16.msra.mxu0 %v96
    %118 = vmatprep.subr.bf16.mxu0 0
    %119 = vmatpush1.bf16.msra.mxu0 %v97
    %120 = vmatprep.subr.bf16.mxu0 0
    %121 = vmatpush1.bf16.msra.mxu0 %v98
    %122 = vmatprep.subr.bf16.mxu0 0
    %123 = vmatpush1.bf16.msra.mxu0 %v99
    %124 = vmatprep.subr.bf16.mxu0 0
    %125 = vmatpush1.bf16.msra.mxu0 0
    %126 = vmatprep.subr.bf16.mxu0 0
    %127 = vmatpush1.bf16.msra.mxu0 0
    %128 = vmatprep.subr.bf16.mxu0 0
    %129 = vmatpush1.bf16.msra.mxu0 0
    %130 = vmatprep.subr.bf16.mxu0 0
    %131 = vmatpush1.bf16.msra.mxu0 0
    %132 = vmatprep.subr.bf16.mxu0 0
    %133 = vmatpush1.bf16.msra.mxu0 0
    %134 = vmatprep.subr.bf16.mxu0 0
    %135 = vmatpush1.bf16.msra.mxu0 0
    %136 = vmatprep.subr.bf16.mxu0 0
    %137 = vmatpush1.bf16.msra.mxu0 0
    %138 = vmatprep.subr.bf16.mxu0 0
    %139 = vmatpush1.bf16.msra.mxu0 0
    %140 = vmatprep.mubr.bf16.mxu0 0
    %141 = vmatmul.mubr.bf16.gmra.mrb[0].mxu0 %v58
    %v142 = vpop.f32.mrb[0].mxu0
    %v143 = vadd.f32 0.0, %v142
    %v144 = vpop.f32.mrb[0].mxu0
    %v145 = vpop.f32.mrb[0].mxu0
    %v146 = vadd.f32 0.0, %v145
    %v147 = vpop.f32.mrb[0].mxu0
    %148 = vdwg.mxu0
    %v149 = vadd.f32 %v34, %v143
    %v150 = vadd.f32 %v35, %v146
    %vm151 = vcmask 261120
    %152 = vst.msk [vmem:[#allocation2] sm:$0xff] %vm151, %v149
    %153 = vst.msk [vmem:[#allocation2 + $0x8] sm:$0xff] %vm151, %v150
    // Predicated region
    $region30: #{bert_forward.21} parent=1 // pred_check
      %p154 = pneg %p27
    $region31: #{bert_forward.21} parent=1 // pred_check_branch
      %156 = sbr.rel (%p154) target = $region33
    $region32: #{bert_forward.21} parent=1 // pred_region
      %v157 = vld [vmem:[#allocation2] sm:$0xff]
      %v158 = vld [vmem:[#allocation2 + $0x8] sm:$0xff]
      %v159 = vld [vmem:[%s2] sm:$0x1]
      %v161 = vlaneseq
      %v162 = vshrl.u32 %v161, 7
      %v163 = vsub.s32 0, %v162
      %v164 = vrot.slane %v159, %v163
      %v166 = vadd.f32 %v157, %v164
      %v167 = vadd.f32 %v158, %v164
      %v168 = vld [vmem:[%s3] sm:$0xff]
      %v169 = vld [vmem:[%s3 + $0x8] sm:$0xff]
      %v170 = vadd.f32 %v166, %v168
      %v171 = vadd.f32 %v167, %v169
      %172 = vst.msk [vmem:[%s6] sm:$0xff] %vm151, %v170
      %173 = vst.msk [vmem:[%s6 + $0x8] sm:$0xff] %vm151, %v171
      %v174 = vld [vmem:[%s4] sm:$0x1]
      %v175 = vld [vmem:[%s5] sm:$0x1]
      %v176 = vsel %vm151, %v170, 0.0
      %177 = vadd.xlane.f32.xlu0 %v176
      %v178 = vpop.xlane.xlu0 %177
      %v179 = vsel %vm151, %v171, 0.0
      %180 = vadd.xlane.f32.xlu0 %v179
      %v181 = vpop.xlane.xlu0 %180
      %v182 = vrcp.pop 32.0
      %v183 = vmul.f32 %v178, %v182
      %v184 = vmul.f32 %v181, %v182
      %v185 = vsub.f32 %v170, %v183
      %v186 = vsub.f32 %v171, %v184
      %v187 = vmul.f32 %v185, %v185
      %v188 = vmul.f32 %v186, %v186
      %v189 = vsel %vm151, %v187, 0.0
      %190 = vadd.xlane.f32.xlu0 %v189
      %v191 = vpop.xlane.xlu0 %190
      %v192 = vsel %vm151, %v188, 0.0
      %193 = vadd.xlane.f32.xlu0 %v192
      %v194 = vpop.xlane.xlu0 %193
      %v195 = vmul.f32 %v191, %v182
      %v196 = vmul.f32 %v194, %v182
      %v197 = vadd.f32 %v195, 1e-05
      %v198 = vadd.f32 %v196, 1e-05
      %v199 = vrsqrt.pop %v197
      %v200 = vrsqrt.pop %v198
      %v201 = vmul.f32 %v185, %v199
      %v202 = vmul.f32 %v186, %v200
      %v204 = vlaneseq
      %v205 = vshrl.u32 %v204, 7
      %v206 = vsub.s32 0, %v205
      %v207 = vrot.slane %v174, %v206
      %v209 = vmul.f32 %v201, %v207
      %v210 = vmul.f32 %v202, %v207
      %v212 = vlaneseq
      %v213 = vshrl.u32 %v212, 7
      %v214 = vsub.s32 0, %v213
      %v215 = vrot.slane %v175, %v214
      %v217 = vadd.f32 %v209, %v215
      %v218 = vadd.f32 %v210, %v215
      %v219 = vpack.c.bf16 %v218, %v217
      %v221 = vunpack.c.l.b16 %v219
      %v222 = vunpack.c.h.b16 %v219
      %v223 = vpack.c.b16 %v221, %v221
      %v224 = vpack.c.b16 %v222, %v222
      %vm227 = vcmask 257024
      %228 = vst.msk [vmem:[#allocation3] sm:$0xf] %vm227, %v223
      %229 = vst.msk [vmem:[#allocation3 + $0x4] sm:$0xf] %vm227, %v224
    $region33: #{bert_forward.21} parent=1 // pred_fallthru
      _
    // Predicated region
    $region34: #{bert_forward.21} parent=1 // pred_check
      _
    $region35: #{bert_forward.21} parent=1 // pred_check_branch
      %231 = sbr.rel (0) target = $region37
    $region36: #{bert_forward.21} parent=1 // pred_region
      _
    $region37: #{bert_forward.21} parent=1 // pred_fallthru
      _
    // Predicated region
    $region38: #{bert_forward.21} parent=1 // pred_check
      _
    $region39: #{bert_forward.21} parent=1 // pred_check_branch
      %233 = sbr.rel (0) target = $region41
    $region40: #{bert_forward.21} parent=1 // pred_region
      %s235 = ssub.s32 128, 128
      %236 = vsyncadd [#allocation4], %s235
      %s237 = sshll.u32 [#allocation3], 4
      %s238 = int_to_ptr.vmem [resolvable:$true] %s237
      %243 = dma.vmem_to_hbm [thread:$0]  %s238, 128, %s7, [#allocation4], 64, 64, 4
    $region41: #{bert_forward.21} parent=1 // pred_fallthru
      _
    // Predicated region
    $region42: #{bert_forward.21} parent=1 // pred_check
      _
    $region43: #{bert_forward.21} parent=1 // pred_check_branch
      %245 = sbr.rel (0) target = $region45
    $region44: #{bert_forward.21} parent=1 // pred_region
      _
    $region45: #{bert_forward.21} parent=1 // pred_fallthru
      _
    // Predicated region
    $region46: #{bert_forward.21} parent=1 // pred_check
      _
    $region47: #{bert_forward.21} parent=1 // pred_check_branch
      %247 = sbr.rel (0) target = $region49
    $region48: #{bert_forward.21} parent=1 // pred_region
      %248 = dma.done [#allocation4], 128
    $region49: #{bert_forward.21} parent=1 // pred_fallthru
      _
    %249 = vsyncpa [#allocation4], 1

</llo_original>
